<compile_context>
chip_gen: v7x
topology: tpu7x:2x2x1
jax: 0.10.0
libtpu: 0.0.40
codegen_flags: <defaults>
</compile_context>

<pallas_src>
import functools

import numpy as np
import jax
import jax.numpy as jnp
from jax.experimental import pallas as pl
from jax.experimental.pallas import tpu as pltpu

_SQRT_HALF = 0.7071067811865476


def _erf(x):
    # Abramowitz & Stegun 7.1.26 rational approximation (|err| <= 1.5e-7, i.e.
    # float32-exact).  Matches PyTorch's exact (erf-based) F.gelu to f32
    # precision using only primitives guaranteed to lower in Mosaic.
    a1, a2, a3, a4, a5 = 0.254829592, -0.284496736, 1.421413741, -1.453152027, 1.061405429
    p = 0.3275911
    s = jnp.where(x >= 0.0, 1.0, -1.0)
    ax = jnp.abs(x)
    t = 1.0 / (1.0 + p * ax)
    poly = ((((a5 * t + a4) * t + a3) * t + a2) * t + a1) * t
    return s * (1.0 - poly * jnp.exp(-ax * ax))


def _gelu(x):
    # PyTorch F.gelu default = exact (erf) GELU.
    return 0.5 * x * (1.0 + _erf(x * _SQRT_HALF))


def _pick_tile(total, cap, align=1):
    """Largest divisor of `total` that is <= cap and a multiple of `align`;
    falls back to the full extent (which always satisfies TPU tiling rules)."""
    cap = max(1, min(cap, total))
    for t in range(cap, 0, -1):
        if total % t == 0 and t % align == 0:
            return t
    return total


# ----------------------------------------------------------------------------
# Kernel 1: multi-kernel depthwise conv ('same') + BatchNorm1d (training stats)
#           Channel-tiled: block = (TC, B, Npad) -> (TC, B, N).  BN stats span
#           (B, N) which live entirely inside each block, so tiling is exact.
# ----------------------------------------------------------------------------
def _dwconv_bn_kernel(xp_ref, w1_ref, w2_ref, bias_ref, gamma_ref, beta_ref,
                      o_ref, *, k1, k2, off1, off2, n, eps):
    xp = xp_ref[...].astype(jnp.float32)                  # (TC, B, Npad)
    w1 = w1_ref[...].astype(jnp.float32)                  # (TC, 1, k1)
    w2 = w2_ref[...].astype(jnp.float32)                  # (TC, 1, k2)
    acc = jnp.zeros(o_ref.shape, jnp.float32)             # (TC, B, N)
    # Depthwise cross-correlation.  Both kernel sizes read the single shared
    # padded buffer at different static offsets ('same' padding folded into
    # off1/off2).  NOTE: for very long kernels (e.g. 51) a pltpu.roll-based
    # formulation would move the per-tap shifts onto the XLU; plain static
    # slices are kept here for lowering robustness.
    for k in range(k1):
        acc = acc + xp[:, :, off1 + k: off1 + k + n] * w1[:, :, k:k + 1]
    for k in range(k2):
        acc = acc + xp[:, :, off2 + k: off2 + k + n] * w2[:, :, k:k + 1]
    acc = acc + bias_ref[...]                              # combined conv biases

    # BatchNorm1d, training-mode forward: biased batch statistics per channel
    # over (batch, time).  TODO(synk): running-stat updates (a training-time
    # side effect of nn.BatchNorm1d) are not materialized here.
    count = float(acc.shape[1] * acc.shape[2])
    s = jnp.sum(acc, axis=2, keepdims=True)
    s = jnp.sum(s, axis=1, keepdims=True)                  # (TC, 1, 1)
    mean = s / count
    diff = acc - mean
    v = jnp.sum(diff * diff, axis=2, keepdims=True)
    v = jnp.sum(v, axis=1, keepdims=True)
    inv = jax.lax.rsqrt(v / count + eps)                   # EUP rsqrt
    o_ref[...] = ((diff * inv) * gamma_ref[...] + beta_ref[...]).astype(o_ref.dtype)


# ----------------------------------------------------------------------------
# Kernel 2: ConvFFN1 (groups=M) + ConvFFN2 (groups=D, channel permutation
#           folded into the weights) + fused residual add.  Activations are
#           (C, B*N) slabs so the MXU free dim is lane-dense; grid over B*N
#           tiles ("parallel").
# ----------------------------------------------------------------------------
def _ffn_kernel(y_ref, res_ref, w1a_ref, b1a_ref, w1b_ref, b1b_ref,
                w2a_ref, b2a_ref, w2b_ref, b2b_ref, o_ref, *, compute_dtype):
    y = y_ref[...].astype(compute_dtype)                   # (C, TN)
    h = jnp.dot(w1a_ref[...], y, preferred_element_type=jnp.float32) + b1a_ref[...]
    h = _gelu(h).astype(compute_dtype)
    z = jnp.dot(w1b_ref[...], h, preferred_element_type=jnp.float32) + b1b_ref[...]
    h = jnp.dot(w2a_ref[...], z.astype(compute_dtype),
                preferred_element_type=jnp.float32) + b2a_ref[...]
    h = _gelu(h).astype(compute_dtype)
    z = jnp.dot(w2b_ref[...], h, preferred_element_type=jnp.float32) + b2b_ref[...]
    o_ref[...] = (z + res_ref[...].astype(jnp.float32)).astype(o_ref.dtype)


# ----------------------------------------------------------------------------
# Wrapper
# ----------------------------------------------------------------------------
def modern_tcn_block(x_emb, params, *, kernel_sizes, eps=1e-5,
                     matmul_dtype=jnp.float32,
                     channel_tile_cap=512, time_tile_cap=1024):
    B, M, D, N = x_emb.shape
    C = M * D
    k1, k2 = kernel_sizes
    kmax = max(k1, k2)
    pad_l = (kmax - 1) // 2                                # PyTorch 'same' (max kernel)
    pad_r = (kmax - 1) - pad_l
    npad = N + kmax - 1
    off1 = pad_l - (k1 - 1) // 2                           # window offsets inside the
    off2 = pad_l - (k2 - 1) // 2                           # single shared padded buffer

    # 'b m d n -> (m d) b n' (channel-major) + single padded HBM copy.
    x_cbn = jnp.transpose(x_emb, (1, 2, 0, 3)).reshape(C, B, N)
    x_pad = jnp.pad(x_cbn, ((0, 0), (0, 0), (pad_l, pad_r)))

    # Channel tile: bound double-buffered VMEM of (TC,B,Npad)+(TC,B,N) f32 blocks.
    budget = 24 * 1024 * 1024
    cap = max(1, min(channel_tile_cap, budget // (8 * B * (npad + N) * 4)))
    tc = _pick_tile(C, cap)

    inter_dtype = jnp.bfloat16 if matmul_dtype == jnp.bfloat16 else jnp.float32
    cparams = pltpu.CompilerParams(dimension_semantics=("parallel",),
                                   vmem_limit_bytes=48 * 1024 * 1024)

    y_bn = pl.pallas_call(
        functools.partial(_dwconv_bn_kernel, k1=k1, k2=k2,
                          off1=off1, off2=off2, n=N, eps=eps),
        out_shape=jax.ShapeDtypeStruct((C, B, N), inter_dtype),
        grid=(C // tc,),
        in_specs=[
            pl.BlockSpec((tc, B, npad), lambda i: (i, 0, 0)),
            pl.BlockSpec((tc, 1, k1), lambda i: (i, 0, 0)),
            pl.BlockSpec((tc, 1, k2), lambda i: (i, 0, 0)),
            pl.BlockSpec((tc, 1, 1), lambda i: (i, 0, 0)),
            pl.BlockSpec((tc, 1, 1), lambda i: (i, 0, 0)),
            pl.BlockSpec((tc, 1, 1), lambda i: (i, 0, 0)),
        ],
        out_specs=pl.BlockSpec((tc, B, N), lambda i: (i, 0, 0)),
        compiler_params=cparams,
    )(x_pad, params["dw_w1"], params["dw_w2"], params["dw_bias"],
      params["bn_gamma"], params["bn_beta"])

    # ---- kernel 2: grouped FFNs as block-diag matmuls on (C, B*N) slabs ----
    T = B * N
    tn = _pick_tile(T, time_tile_cap, align=128)            # lane-dense free dim
    y2 = y_bn.reshape(C, T)                                 # contiguous merge
    res = x_cbn.reshape(C, T)                                # channel-major residual
    rC = params["w1a"].shape[0]

    wdt = matmul_dtype
    w1a = params["w1a"].astype(wdt)
    w1b = params["w1b"].astype(wdt)
    w2a = params["w2a"].astype(wdt)
    w2b = params["w2b"].astype(wdt)

    shared = lambda shape: pl.BlockSpec(shape, lambda j: (0, 0))

    out2 = pl.pallas_call(
        functools.partial(_ffn_kernel, compute_dtype=wdt),
        out_shape=jax.ShapeDtypeStruct((C, T), jnp.float32),
        grid=(T // tn,),
        in_specs=[
            pl.BlockSpec((C, tn), lambda j: (0, j)),        # BN output slab
            pl.BlockSpec((C, tn), lambda j: (0, j)),        # residual slab
            shared((rC, C)), shared((rC, 1)),               # FFN1 pw_con1
            shared((C, rC)), shared((C, 1)),                # FFN1 pw_con2
            shared((rC, C)), shared((rC, 1)),               # FFN2 pw_con1 (perm-folded)
            shared((C, rC)), shared((C, 1)),                # FFN2 pw_con2 (perm-folded)
        ],
        out_specs=pl.BlockSpec((C, tn), lambda j: (0, j)),
        compiler_params=cparams,
    )(y2, res, w1a, params["b1a"], w1b, params["b1b"],
      w2a, params["b2a"], w2b, params["b2b"])

    # '(m d) b n -> b m d n' (the residual was already added inside kernel 2).
    out = jnp.transpose(out2.reshape(M, D, B, N), (2, 0, 1, 3))
    return out


# ----------------------------------------------------------------------------
# Deterministic synthetic parameters (shapes from the module's __init__)
# ----------------------------------------------------------------------------
def init_params(key, M, D, r, kernel_sizes):
    C, rD, rM, rC = M * D, r * D, r * M, r * M * D
    k1, k2 = kernel_sizes
    ks = jax.random.split(key, 14)

    def u(k, shape, fan_in):
        bound = 1.0 / np.sqrt(fan_in)
        return jax.random.uniform(k, shape, jnp.float32, -bound, bound)

    grouped = dict(
        dw_w1=u(ks[0], (C, k1), k1), dw_b1=u(ks[1], (C,), k1),
        dw_w2=u(ks[2], (C, k2), k2), dw_b2=u(ks[3], (C,), k2),
        bn_gamma=1.0 + 0.1 * jax.random.normal(ks[4], (C,), jnp.float32),
        bn_beta=0.1 * jax.random.normal(ks[5], (C,), jnp.float32),
        G1a=u(ks[6], (M, rD, D), D),  b1a=u(ks[7], (M, rD), D),     # ConvFFN1 (groups=M)
        G1b=u(ks[8], (M, D, rD), rD), b1b=u(ks[9], (M, D), rD),
        G2a=u(ks[10], (D, rM, M), M), b2a=u(ks[11], (D, rM), M),    # ConvFFN2 (groups=D)
        G2b=u(ks[12], (D, M, rM), rM), b2b=u(ks[13], (D, M), rM),
    )

    G1a, G1b = np.asarray(grouped["G1a"]), np.asarray(grouped["G1b"])
    G2a, G2b = np.asarray(grouped["G2a"]), np.asarray(grouped["G2b"])
    b2b_g = np.asarray(grouped["b2b"])

    # Grouped 1x1 convs as dense block-diagonal matrices acting on the (m d)
    # channel layout; FFN2's (m d)<->(d m) rearranges folded into cols/rows.
    W1a = np.zeros((rC, C), np.float32)
    W1b = np.zeros((C, rC), np.float32)
    for m in range(M):
        W1a[m * rD:(m + 1) * rD, m * D:(m + 1) * D] = G1a[m]
        W1b[m * D:(m + 1) * D, m * rD:(m + 1) * rD] = G1b[m]

    W2a = np.zeros((rC, C), np.float32)   # columns indexed in (m d) layout
    W2b = np.zeros((C, rC), np.float32)   # rows indexed in (m d) layout
    b2b = np.zeros((C, 1), np.float32)
    for d in range(D):
        for m in range(M):
            W2a[d * rM:(d + 1) * rM, m * D + d] = G2a[d, :, m]
            W2b[m * D + d, d * rM:(d + 1) * rM] = G2b[d, m]
            b2b[m * D + d, 0] = b2b_g[d, m]

    dense = dict(
        dw_w1=grouped["dw_w1"].reshape(C, 1, k1),
        dw_w2=grouped["dw_w2"].reshape(C, 1, k2),
        dw_bias=(grouped["dw_b1"] + grouped["dw_b2"]).reshape(C, 1, 1),
        bn_gamma=grouped["bn_gamma"].reshape(C, 1, 1),
        bn_beta=grouped["bn_beta"].reshape(C, 1, 1),
        w1a=jnp.asarray(W1a), b1a=jnp.asarray(np.asarray(grouped["b1a"]).reshape(rC, 1)),
        w1b=jnp.asarray(W1b), b1b=jnp.asarray(np.asarray(grouped["b1b"]).reshape(C, 1)),
        w2a=jnp.asarray(W2a), b2a=jnp.asarray(np.asarray(grouped["b2a"]).reshape(rC, 1)),
        w2b=jnp.asarray(W2b), b2b=jnp.asarray(b2b),
    )
    return dense, grouped


# ----------------------------------------------------------------------------
# Pure-JAX reference (mirrors the PyTorch forward op-by-op) for a sanity check
# ----------------------------------------------------------------------------
def reference_forward(x_emb, g, *, kernel_sizes, eps=1e-5):
    B, M, D, N = x_emb.shape
    C = M * D
    x = x_emb.reshape(B, C, N)
    acc = jnp.zeros_like(x)
    for w, b, K in ((g["dw_w1"], g["dw_b1"], kernel_sizes[0]),
                    (g["dw_w2"], g["dw_b2"], kernel_sizes[1])):
        left = (K - 1) // 2
        xp = jnp.pad(x, ((0, 0), (0, 0), (left, K - 1 - left)))
        y = sum(xp[:, :, k:k + N] * w[:, k][None, :, None] for k in range(K))
        acc = acc + y + b[None, :, None]
    mean = acc.mean(axis=(0, 2), keepdims=True)
    var = ((acc - mean) ** 2).mean(axis=(0, 2), keepdims=True)
    y = (acc - mean) / jnp.sqrt(var + eps)
    y = y * g["bn_gamma"][None, :, None] + g["bn_beta"][None, :, None]

    z = y.reshape(B, M, D, N)
    h = _gelu(jnp.einsum('mqd,bmdn->bmqn', g["G1a"], z) + g["b1a"][None, :, :, None])
    z1 = jnp.einsum('mdq,bmqn->bmdn', g["G1b"], h) + g["b1b"][None, :, :, None]
    zt = jnp.transpose(z1, (0, 2, 1, 3))                   # b d m n
    h2 = _gelu(jnp.einsum('dpm,bdmn->bdpn', g["G2a"], zt) + g["b2a"][None, :, :, None])
    z2 = jnp.einsum('dmp,bdpn->bdmn', g["G2b"], h2) + g["b2b"][None, :, :, None]
    return jnp.transpose(z2, (0, 2, 1, 3)) + x_emb


if __name__ == "__main__":
    B, M, D, N = 2, 4, 8, 16
    r = 2
    kernel_sizes = (3, 7)

    key = jax.random.PRNGKey(0)
    k_x, k_p = jax.random.split(key)
    x_emb = jax.random.normal(k_x, (B, M, D, N), jnp.float32)
    params, grouped = init_params(k_p, M, D, r, kernel_sizes)

    ref = reference_forward(x_emb, grouped, kernel_sizes=kernel_sizes)
    ref_scale = max(1.0, float(jnp.max(jnp.abs(ref))))

    # f32 MXU-operand path: tight tolerance against the PyTorch-equivalent reference.
    out = jax.block_until_ready(
        modern_tcn_block(x_emb, params, kernel_sizes=kernel_sizes))
    assert out.shape == (B, M, D, N) and out.dtype == jnp.float32
    assert bool(jnp.all(jnp.isfinite(out)))
    max_err = float(jnp.max(jnp.abs(out - ref)))
    if max_err > 5e-3 * ref_scale:
        raise AssertionError(f"f32 kernel/reference mismatch: max abs err {max_err}")

    # bf16 MXU-operand path (bf16 MXU peak; f32 accumulation); a small numeric
    # delta vs. the f32 reference is expected, hence the looser tolerance.
    out_bf16 = jax.block_until_ready(
        modern_tcn_block(x_emb, params, kernel_sizes=kernel_sizes,
                         matmul_dtype=jnp.bfloat16))
    assert bool(jnp.all(jnp.isfinite(out_bf16)))
    max_err_bf16 = float(jnp.max(jnp.abs(out_bf16 - ref)))
    if max_err_bf16 > 5e-2 * ref_scale:
        raise AssertionError(f"bf16 kernel/reference mismatch: max abs err {max_err_bf16}")

    print("KERNEL_OK")
</pallas_src>

<mosaic_0001>
module attributes {stable_mosaic.version = 11 : i64} {
  func.func @_dwconv_bn_kernel(%arg0: i32, %arg1: memref<32x2x22xf32, #tpu.memory_space<vmem>>, %arg2: memref<32x1x3xf32, #tpu.memory_space<vmem>>, %arg3: memref<32x1x7xf32, #tpu.memory_space<vmem>>, %arg4: memref<32x1x1xf32, #tpu.memory_space<vmem>>, %arg5: memref<32x1x1xf32, #tpu.memory_space<vmem>>, %arg6: memref<32x1x1xf32, #tpu.memory_space<vmem>>, %arg7: memref<32x2x16xf32, #tpu.memory_space<vmem>>) attributes {dimension_semantics = [#tpu.dimension_semantics<parallel>], iteration_bounds = array<i64: 1>, scalar_prefetch = 0 : i64, scratch_operands = 0 : i64, tpu.core_type = #tpu.core_type<tc>, window_params = [{transform_indices = @transform_0, window_bounds = array<i64: 32, 2, 22>}, {transform_indices = @transform_1, window_bounds = array<i64: 32, 1, 3>}, {transform_indices = @transform_2, window_bounds = array<i64: 32, 1, 7>}, {transform_indices = @transform_3, window_bounds = array<i64: 32, 1, 1>}, {transform_indices = @transform_4, window_bounds = array<i64: 32, 1, 1>}, {transform_indices = @transform_5, window_bounds = array<i64: 32, 1, 1>}, {transform_indices = @transform_6, window_bounds = array<i64: 32, 2, 16>}]} {
    %c0 = arith.constant 0 : index
    %c0_0 = arith.constant 0 : index
    %c0_1 = arith.constant 0 : index
    %0 = vector.load %arg1[%c0, %c0_0, %c0_1] : memref<32x2x22xf32, #tpu.memory_space<vmem>>, vector<32x2x22xf32>
    %c0_2 = arith.constant 0 : index
    %c0_3 = arith.constant 0 : index
    %c0_4 = arith.constant 0 : index
    %1 = vector.load %arg2[%c0_2, %c0_3, %c0_4] : memref<32x1x3xf32, #tpu.memory_space<vmem>>, vector<32x1x3xf32>
    %c0_5 = arith.constant 0 : index
    %c0_6 = arith.constant 0 : index
    %c0_7 = arith.constant 0 : index
    %2 = vector.load %arg3[%c0_5, %c0_6, %c0_7] : memref<32x1x7xf32, #tpu.memory_space<vmem>>, vector<32x1x7xf32>
    %cst = arith.constant 0.000000e+00 : f32
    %3 = vector.broadcast %cst : f32 to vector<32x2x16xf32>
    %4 = vector.extract_strided_slice %0 {offsets = [0, 0, 2], sizes = [32, 2, 16], strides = [1, 1, 1]} : vector<32x2x22xf32> to vector<32x2x16xf32>
    %5 = vector.extract_strided_slice %1 {offsets = [0, 0, 0], sizes = [32, 1, 1], strides = [1, 1, 1]} : vector<32x1x3xf32> to vector<32x1x1xf32>
    %6 = vector.broadcast %5 : vector<32x1x1xf32> to vector<32x2x16xf32>
    %7 = arith.mulf %4, %6 : vector<32x2x16xf32>
    %8 = arith.addf %3, %7 : vector<32x2x16xf32>
    %9 = vector.extract_strided_slice %0 {offsets = [0, 0, 3], sizes = [32, 2, 16], strides = [1, 1, 1]} : vector<32x2x22xf32> to vector<32x2x16xf32>
    %10 = vector.extract_strided_slice %1 {offsets = [0, 0, 1], sizes = [32, 1, 1], strides = [1, 1, 1]} : vector<32x1x3xf32> to vector<32x1x1xf32>
    %11 = vector.broadcast %10 : vector<32x1x1xf32> to vector<32x2x16xf32>
    %12 = arith.mulf %9, %11 : vector<32x2x16xf32>
    %13 = arith.addf %8, %12 : vector<32x2x16xf32>
    %14 = vector.extract_strided_slice %0 {offsets = [0, 0, 4], sizes = [32, 2, 16], strides = [1, 1, 1]} : vector<32x2x22xf32> to vector<32x2x16xf32>
    %15 = vector.extract_strided_slice %1 {offsets = [0, 0, 2], sizes = [32, 1, 1], strides = [1, 1, 1]} : vector<32x1x3xf32> to vector<32x1x1xf32>
    %16 = vector.broadcast %15 : vector<32x1x1xf32> to vector<32x2x16xf32>
    %17 = arith.mulf %14, %16 : vector<32x2x16xf32>
    %18 = arith.addf %13, %17 : vector<32x2x16xf32>
    %19 = vector.extract_strided_slice %0 {offsets = [0, 0, 0], sizes = [32, 2, 16], strides = [1, 1, 1]} : vector<32x2x22xf32> to vector<32x2x16xf32>
    %20 = vector.extract_strided_slice %2 {offsets = [0, 0, 0], sizes = [32, 1, 1], strides = [1, 1, 1]} : vector<32x1x7xf32> to vector<32x1x1xf32>
    %21 = vector.broadcast %20 : vector<32x1x1xf32> to vector<32x2x16xf32>
    %22 = arith.mulf %19, %21 : vector<32x2x16xf32>
    %23 = arith.addf %18, %22 : vector<32x2x16xf32>
    %24 = vector.extract_strided_slice %0 {offsets = [0, 0, 1], sizes = [32, 2, 16], strides = [1, 1, 1]} : vector<32x2x22xf32> to vector<32x2x16xf32>
    %25 = vector.extract_strided_slice %2 {offsets = [0, 0, 1], sizes = [32, 1, 1], strides = [1, 1, 1]} : vector<32x1x7xf32> to vector<32x1x1xf32>
    %26 = vector.broadcast %25 : vector<32x1x1xf32> to vector<32x2x16xf32>
    %27 = arith.mulf %24, %26 : vector<32x2x16xf32>
    %28 = arith.addf %23, %27 : vector<32x2x16xf32>
    %29 = vector.extract_strided_slice %0 {offsets = [0, 0, 2], sizes = [32, 2, 16], strides = [1, 1, 1]} : vector<32x2x22xf32> to vector<32x2x16xf32>
    %30 = vector.extract_strided_slice %2 {offsets = [0, 0, 2], sizes = [32, 1, 1], strides = [1, 1, 1]} : vector<32x1x7xf32> to vector<32x1x1xf32>
    %31 = vector.broadcast %30 : vector<32x1x1xf32> to vector<32x2x16xf32>
    %32 = arith.mulf %29, %31 : vector<32x2x16xf32>
    %33 = arith.addf %28, %32 : vector<32x2x16xf32>
    %34 = vector.extract_strided_slice %0 {offsets = [0, 0, 3], sizes = [32, 2, 16], strides = [1, 1, 1]} : vector<32x2x22xf32> to vector<32x2x16xf32>
    %35 = vector.extract_strided_slice %2 {offsets = [0, 0, 3], sizes = [32, 1, 1], strides = [1, 1, 1]} : vector<32x1x7xf32> to vector<32x1x1xf32>
    %36 = vector.broadcast %35 : vector<32x1x1xf32> to vector<32x2x16xf32>
    %37 = arith.mulf %34, %36 : vector<32x2x16xf32>
    %38 = arith.addf %33, %37 : vector<32x2x16xf32>
    %39 = vector.extract_strided_slice %0 {offsets = [0, 0, 4], sizes = [32, 2, 16], strides = [1, 1, 1]} : vector<32x2x22xf32> to vector<32x2x16xf32>
    %40 = vector.extract_strided_slice %2 {offsets = [0, 0, 4], sizes = [32, 1, 1], strides = [1, 1, 1]} : vector<32x1x7xf32> to vector<32x1x1xf32>
    %41 = vector.broadcast %40 : vector<32x1x1xf32> to vector<32x2x16xf32>
    %42 = arith.mulf %39, %41 : vector<32x2x16xf32>
    %43 = arith.addf %38, %42 : vector<32x2x16xf32>
    %44 = vector.extract_strided_slice %0 {offsets = [0, 0, 5], sizes = [32, 2, 16], strides = [1, 1, 1]} : vector<32x2x22xf32> to vector<32x2x16xf32>
    %45 = vector.extract_strided_slice %2 {offsets = [0, 0, 5], sizes = [32, 1, 1], strides = [1, 1, 1]} : vector<32x1x7xf32> to vector<32x1x1xf32>
    %46 = vector.broadcast %45 : vector<32x1x1xf32> to vector<32x2x16xf32>
    %47 = arith.mulf %44, %46 : vector<32x2x16xf32>
    %48 = arith.addf %43, %47 : vector<32x2x16xf32>
    %49 = vector.extract_strided_slice %0 {offsets = [0, 0, 6], sizes = [32, 2, 16], strides = [1, 1, 1]} : vector<32x2x22xf32> to vector<32x2x16xf32>
    %50 = vector.extract_strided_slice %2 {offsets = [0, 0, 6], sizes = [32, 1, 1], strides = [1, 1, 1]} : vector<32x1x7xf32> to vector<32x1x1xf32>
    %51 = vector.broadcast %50 : vector<32x1x1xf32> to vector<32x2x16xf32>
    %52 = arith.mulf %49, %51 : vector<32x2x16xf32>
    %53 = arith.addf %48, %52 : vector<32x2x16xf32>
    %c0_8 = arith.constant 0 : index
    %c0_9 = arith.constant 0 : index
    %c0_10 = arith.constant 0 : index
    %54 = vector.load %arg4[%c0_8, %c0_9, %c0_10] : memref<32x1x1xf32, #tpu.memory_space<vmem>>, vector<32x1x1xf32>
    %55 = vector.broadcast %54 : vector<32x1x1xf32> to vector<32x2x16xf32>
    %56 = arith.addf %53, %55 : vector<32x2x16xf32>
    %cst_11 = arith.constant dense<0.000000e+00> : vector<32x2xf32>
    %57 = vector.multi_reduction <add>, %56, %cst_11 [2] : vector<32x2x16xf32> to vector<32x2xf32>
    %58 = vector.shape_cast %57 : vector<32x2xf32> to vector<32x2x1xf32>
    %cst_12 = arith.constant dense<0.000000e+00> : vector<32x1xf32>
    %59 = vector.multi_reduction <add>, %58, %cst_12 [1] : vector<32x2x1xf32> to vector<32x1xf32>
    %60 = vector.shape_cast %59 : vector<32x1xf32> to vector<32x1x1xf32>
    %cst_13 = arith.constant 3.200000e+01 : f32
    %61 = vector.broadcast %cst_13 : f32 to vector<32x1x1xf32>
    %62 = arith.divf %60, %61 : vector<32x1x1xf32>
    %63 = vector.broadcast %62 : vector<32x1x1xf32> to vector<32x2x16xf32>
    %64 = arith.subf %56, %63 : vector<32x2x16xf32>
    %65 = arith.mulf %64, %64 : vector<32x2x16xf32>
    %cst_14 = arith.constant dense<0.000000e+00> : vector<32x2xf32>
    %66 = vector.multi_reduction <add>, %65, %cst_14 [2] : vector<32x2x16xf32> to vector<32x2xf32>
    %67 = vector.shape_cast %66 : vector<32x2xf32> to vector<32x2x1xf32>
    %cst_15 = arith.constant dense<0.000000e+00> : vector<32x1xf32>
    %68 = vector.multi_reduction <add>, %67, %cst_15 [1] : vector<32x2x1xf32> to vector<32x1xf32>
    %69 = vector.shape_cast %68 : vector<32x1xf32> to vector<32x1x1xf32>
    %cst_16 = arith.constant 3.200000e+01 : f32
    %70 = vector.broadcast %cst_16 : f32 to vector<32x1x1xf32>
    %71 = arith.divf %69, %70 : vector<32x1x1xf32>
    %cst_17 = arith.constant 9.99999974E-6 : f32
    %72 = vector.broadcast %cst_17 : f32 to vector<32x1x1xf32>
    %73 = arith.addf %71, %72 : vector<32x1x1xf32>
    %74 = math.rsqrt %73 : vector<32x1x1xf32>
    %75 = vector.broadcast %74 : vector<32x1x1xf32> to vector<32x2x16xf32>
    %76 = arith.mulf %64, %75 : vector<32x2x16xf32>
    %c0_18 = arith.constant 0 : index
    %c0_19 = arith.constant 0 : index
    %c0_20 = arith.constant 0 : index
    %77 = vector.load %arg5[%c0_18, %c0_19, %c0_20] : memref<32x1x1xf32, #tpu.memory_space<vmem>>, vector<32x1x1xf32>
    %78 = vector.broadcast %77 : vector<32x1x1xf32> to vector<32x2x16xf32>
    %79 = arith.mulf %76, %78 : vector<32x2x16xf32>
    %c0_21 = arith.constant 0 : index
    %c0_22 = arith.constant 0 : index
    %c0_23 = arith.constant 0 : index
    %80 = vector.load %arg6[%c0_21, %c0_22, %c0_23] : memref<32x1x1xf32, #tpu.memory_space<vmem>>, vector<32x1x1xf32>
    %81 = vector.broadcast %80 : vector<32x1x1xf32> to vector<32x2x16xf32>
    %82 = arith.addf %79, %81 : vector<32x2x16xf32>
    %c0_24 = arith.constant 0 : index
    %c0_25 = arith.constant 0 : index
    %c0_26 = arith.constant 0 : index
    %83 = vector.load %arg7[%c0_24, %c0_25, %c0_26] : memref<32x2x16xf32, #tpu.memory_space<vmem>>, vector<32x2x16xf32>
    tpu.vector_store %arg7[%c0_24, %c0_25, %c0_26], %82 {strides = array<i32>} : memref<32x2x16xf32, #tpu.memory_space<vmem>>, vector<32x2x16xf32>,
    return
  }
  func.func @transform_0(%arg0: i32) -> (i32, i32, i32) {
    %c0_i32 = arith.constant 0 : i32
    %c0_i32_0 = arith.constant 0 : i32
    %c0_i32_1 = arith.constant 0 : i32
    return %arg0, %c0_i32, %c0_i32_0 : i32, i32, i32
  }
  func.func @transform_1(%arg0: i32) -> (i32, i32, i32) {
    %c0_i32 = arith.constant 0 : i32
    %c0_i32_0 = arith.constant 0 : i32
    %c0_i32_1 = arith.constant 0 : i32
    return %arg0, %c0_i32, %c0_i32_0 : i32, i32, i32
  }
  func.func @transform_2(%arg0: i32) -> (i32, i32, i32) {
    %c0_i32 = arith.constant 0 : i32
    %c0_i32_0 = arith.constant 0 : i32
    %c0_i32_1 = arith.constant 0 : i32
    return %arg0, %c0_i32, %c0_i32_0 : i32, i32, i32
  }
  func.func @transform_3(%arg0: i32) -> (i32, i32, i32) {
    %c0_i32 = arith.constant 0 : i32
    %c0_i32_0 = arith.constant 0 : i32
    %c0_i32_1 = arith.constant 0 : i32
    return %arg0, %c0_i32, %c0_i32_0 : i32, i32, i32
  }
  func.func @transform_4(%arg0: i32) -> (i32, i32, i32) {
    %c0_i32 = arith.constant 0 : i32
    %c0_i32_0 = arith.constant 0 : i32
    %c0_i32_1 = arith.constant 0 : i32
    return %arg0, %c0_i32, %c0_i32_0 : i32, i32, i32
  }
  func.func @transform_5(%arg0: i32) -> (i32, i32, i32) {
    %c0_i32 = arith.constant 0 : i32
    %c0_i32_0 = arith.constant 0 : i32
    %c0_i32_1 = arith.constant 0 : i32
    return %arg0, %c0_i32, %c0_i32_0 : i32, i32, i32
  }
  func.func @transform_6(%arg0: i32) -> (i32, i32, i32) {
    %c0_i32 = arith.constant 0 : i32
    %c0_i32_0 = arith.constant 0 : i32
    %c0_i32_1 = arith.constant 0 : i32
    return %arg0, %c0_i32, %c0_i32_0 : i32, i32, i32
  }
}

</mosaic_0001>

<llo_original>
// kernel: tpu_custom_call.1
$region0: #{tpu_custom_call.1}
  #allocation0 [shape = 'u32[]', space=smem, size = 0x4, offset = 0x4, fixed_abs, tag = 'smem constant byte address 0x4 - core index']
  #allocation1 [shape = 'u32[144,128]{1,0:T(1,128)}', space=vmem, size = 0x12000, scoped, tag = 'internal scratch']
  %s0 = inlined_call_operand.vmem [shape: f32[32,2,22], index: 0, kind: input, shape index: {}]
  %s1 = inlined_call_operand.vmem [shape: f32[32,1,3], index: 1, kind: input, shape index: {}]
  %s2 = inlined_call_operand.vmem [shape: f32[32,1,7], index: 2, kind: input, shape index: {}]
  %s3 = inlined_call_operand.vmem [shape: f32[32,1,1], index: 3, kind: input, shape index: {}]
  %s4 = inlined_call_operand.vmem [shape: f32[32,1,1], index: 4, kind: input, shape index: {}]
  %s5 = inlined_call_operand.vmem [shape: f32[32,1,1], index: 5, kind: input, shape index: {}]
  %s6 = inlined_call_operand.vmem [shape: f32[32,2,16], index: 6, kind: output, shape index: {}]
  %s7 = sld [smem:[#allocation0]]
  $region34: #{tpu_custom_call.1} parent=0
    _
  %s9 = ssub.s32 1, %s7
  %s10 = scalar_select 0, %s9, %s7
  // Predicated region
  $region2: #{tpu_custom_call.1} parent=0 // pred_check
    _
  $region3: #{tpu_custom_call.1} parent=0 // pred_check_branch
    %12 = sbr.rel (0) target = $region5
  $region4: #{tpu_custom_call.1} parent=0 // pred_region
    _
  $region5: #{tpu_custom_call.1} parent=0 // pred_fallthru
    _
  // Predicated region
  $region6: #{tpu_custom_call.1} parent=0 // pred_check
    _
  $region7: #{tpu_custom_call.1} parent=0 // pred_check_branch
    %14 = sbr.rel (0) target = $region9
  $region8: #{tpu_custom_call.1} parent=0 // pred_region
    _
  $region9: #{tpu_custom_call.1} parent=0 // pred_fallthru
    _
  // Predicated region
  $region10: #{tpu_custom_call.1} parent=0 // pred_check
    _
  $region11: #{tpu_custom_call.1} parent=0 // pred_check_branch
    %16 = sbr.rel (0) target = $region13
  $region12: #{tpu_custom_call.1} parent=0 // pred_region
    _
  $region13: #{tpu_custom_call.1} parent=0 // pred_fallthru
    _
  // Predicated region
  $region14: #{tpu_custom_call.1} parent=0 // pred_check
    _
  $region15: #{tpu_custom_call.1} parent=0 // pred_check_branch
    %18 = sbr.rel (0) target = $region17
  $region16: #{tpu_custom_call.1} parent=0 // pred_region
    _
  $region17: #{tpu_custom_call.1} parent=0 // pred_fallthru
    _
  // Predicated region
  $region18: #{tpu_custom_call.1} parent=0 // pred_check
    _
  $region19: #{tpu_custom_call.1} parent=0 // pred_check_branch
    %20 = sbr.rel (0) target = $region21
  $region20: #{tpu_custom_call.1} parent=0 // pred_region
    _
  $region21: #{tpu_custom_call.1} parent=0 // pred_fallthru
    _
  // Predicated region
  $region22: #{tpu_custom_call.1} parent=0 // pred_check
    _
  $region23: #{tpu_custom_call.1} parent=0 // pred_check_branch
    %22 = sbr.rel (0) target = $region25
  $region24: #{tpu_custom_call.1} parent=0 // pred_region
    _
  $region25: #{tpu_custom_call.1} parent=0 // pred_fallthru
    _
  %v23 = vld [vmem:[%s0] sm:$0x3]
  %v24 = vld [vmem:[%s0 + $0x2] sm:$0x3]
  %v25 = vld [vmem:[%s0 + $0x4] sm:$0x3]
  %v26 = vld [vmem:[%s0 + $0x6] sm:$0x3]
  %v27 = vld [vmem:[%s0 + $0x8] sm:$0x3]
  %v28 = vld [vmem:[%s0 + $0xa] sm:$0x3]
  %v29 = vld [vmem:[%s0 + $0xc] sm:$0x3]
  %v30 = vld [vmem:[%s0 + $0xe] sm:$0x3]
  %v31 = vld [vmem:[%s0 + $0x10] sm:$0x3]
  %v32 = vld [vmem:[%s0 + $0x12] sm:$0x3]
  %v33 = vld [vmem:[%s0 + $0x14] sm:$0x3]
  %v34 = vld [vmem:[%s0 + $0x16] sm:$0x3]
  %v35 = vld [vmem:[%s0 + $0x18] sm:$0x3]
  %v36 = vld [vmem:[%s0 + $0x1a] sm:$0x3]
  %v37 = vld [vmem:[%s0 + $0x1c] sm:$0x3]
  %v38 = vld [vmem:[%s0 + $0x1e] sm:$0x3]
  %v39 = vld [vmem:[%s0 + $0x20] sm:$0x3]
  %v40 = vld [vmem:[%s0 + $0x22] sm:$0x3]
  %v41 = vld [vmem:[%s0 + $0x24] sm:$0x3]
  %v42 = vld [vmem:[%s0 + $0x26] sm:$0x3]
  %v43 = vld [vmem:[%s0 + $0x28] sm:$0x3]
  %v44 = vld [vmem:[%s0 + $0x2a] sm:$0x3]
  %v45 = vld [vmem:[%s0 + $0x2c] sm:$0x3]
  %v46 = vld [vmem:[%s0 + $0x2e] sm:$0x3]
  %v47 = vld [vmem:[%s0 + $0x30] sm:$0x3]
  %v48 = vld [vmem:[%s0 + $0x32] sm:$0x3]
  %v49 = vld [vmem:[%s0 + $0x34] sm:$0x3]
  %v50 = vld [vmem:[%s0 + $0x36] sm:$0x3]
  %v51 = vld [vmem:[%s0 + $0x38] sm:$0x3]
  %v52 = vld [vmem:[%s0 + $0x3a] sm:$0x3]
  %v53 = vld [vmem:[%s0 + $0x3c] sm:$0x3]
  %v54 = vld [vmem:[%s0 + $0x3e] sm:$0x3]
  %v55 = vld [vmem:[%s1] sm:$0x1]
  %v56 = vld [vmem:[%s1 + $0x1] sm:$0x1]
  %v57 = vld [vmem:[%s1 + $0x2] sm:$0x1]
  %v58 = vld [vmem:[%s1 + $0x3] sm:$0x1]
  %v59 = vld [vmem:[%s1 + $0x4] sm:$0x1]
  %v60 = vld [vmem:[%s1 + $0x5] sm:$0x1]
  %v61 = vld [vmem:[%s1 + $0x6] sm:$0x1]
  %v62 = vld [vmem:[%s1 + $0x7] sm:$0x1]
  %v63 = vld [vmem:[%s1 + $0x8] sm:$0x1]
  %v64 = vld [vmem:[%s1 + $0x9] sm:$0x1]
  %v65 = vld [vmem:[%s1 + $0xa] sm:$0x1]
  %v66 = vld [vmem:[%s1 + $0xb] sm:$0x1]
  %v67 = vld [vmem:[%s1 + $0xc] sm:$0x1]
  %v68 = vld [vmem:[%s1 + $0xd] sm:$0x1]
  %v69 = vld [vmem:[%s1 + $0xe] sm:$0x1]
  %v70 = vld [vmem:[%s1 + $0xf] sm:$0x1]
  %v71 = vld [vmem:[%s1 + $0x10] sm:$0x1]
  %v72 = vld [vmem:[%s1 + $0x11] sm:$0x1]
  %v73 = vld [vmem:[%s1 + $0x12] sm:$0x1]
  %v74 = vld [vmem:[%s1 + $0x13] sm:$0x1]
  %v75 = vld [vmem:[%s1 + $0x14] sm:$0x1]
  %v76 = vld [vmem:[%s1 + $0x15] sm:$0x1]
  %v77 = vld [vmem:[%s1 + $0x16] sm:$0x1]
  %v78 = vld [vmem:[%s1 + $0x17] sm:$0x1]
  %v79 = vld [vmem:[%s1 + $0x18] sm:$0x1]
  %v80 = vld [vmem:[%s1 + $0x19] sm:$0x1]
  %v81 = vld [vmem:[%s1 + $0x1a] sm:$0x1]
  %v82 = vld [vmem:[%s1 + $0x1b] sm:$0x1]
  %v83 = vld [vmem:[%s1 + $0x1c] sm:$0x1]
  %v84 = vld [vmem:[%s1 + $0x1d] sm:$0x1]
  %v85 = vld [vmem:[%s1 + $0x1e] sm:$0x1]
  %v86 = vld [vmem:[%s1 + $0x1f] sm:$0x1]
  %v87 = vld [vmem:[%s2] sm:$0x1]
  %v88 = vld [vmem:[%s2 + $0x1] sm:$0x1]
  %v89 = vld [vmem:[%s2 + $0x2] sm:$0x1]
  %v90 = vld [vmem:[%s2 + $0x3] sm:$0x1]
  %v91 = vld [vmem:[%s2 + $0x4] sm:$0x1]
  %v92 = vld [vmem:[%s2 + $0x5] sm:$0x1]
  %v93 = vld [vmem:[%s2 + $0x6] sm:$0x1]
  %v94 = vld [vmem:[%s2 + $0x7] sm:$0x1]
  %v95 = vld [vmem:[%s2 + $0x8] sm:$0x1]
  %v96 = vld [vmem:[%s2 + $0x9] sm:$0x1]
  %v97 = vld [vmem:[%s2 + $0xa] sm:$0x1]
  %v98 = vld [vmem:[%s2 + $0xb] sm:$0x1]
  %v99 = vld [vmem:[%s2 + $0xc] sm:$0x1]
  %v100 = vld [vmem:[%s2 + $0xd] sm:$0x1]
  %v101 = vld [vmem:[%s2 + $0xe] sm:$0x1]
  %v102 = vld [vmem:[%s2 + $0xf] sm:$0x1]
  %v103 = vld [vmem:[%s2 + $0x10] sm:$0x1]
  %v104 = vld [vmem:[%s2 + $0x11] sm:$0x1]
  %v105 = vld [vmem:[%s2 + $0x12] sm:$0x1]
  %v106 = vld [vmem:[%s2 + $0x13] sm:$0x1]
  %v107 = vld [vmem:[%s2 + $0x14] sm:$0x1]
  %v108 = vld [vmem:[%s2 + $0x15] sm:$0x1]
  %v109 = vld [vmem:[%s2 + $0x16] sm:$0x1]
  %v110 = vld [vmem:[%s2 + $0x17] sm:$0x1]
  %v111 = vld [vmem:[%s2 + $0x18] sm:$0x1]
  %v112 = vld [vmem:[%s2 + $0x19] sm:$0x1]
  %v113 = vld [vmem:[%s2 + $0x1a] sm:$0x1]
  %v114 = vld [vmem:[%s2 + $0x1b] sm:$0x1]
  %v115 = vld [vmem:[%s2 + $0x1c] sm:$0x1]
  %v116 = vld [vmem:[%s2 + $0x1d] sm:$0x1]
  %v117 = vld [vmem:[%s2 + $0x1e] sm:$0x1]
  %v118 = vld [vmem:[%s2 + $0x1f] sm:$0x1]
  %v151 = vlaneseq
  %v152 = vshrl.u32 %v151, 7
  %v153 = vsub.s32 0, %v152
  %v154 = vrot.slane %v55, %v153
  %v155 = vlaneseq
  %v156 = vshrl.u32 %v155, 7
  %v157 = vsub.s32 0, %v156
  %v158 = vrot.slane %v56, %v157
  %v159 = vlaneseq
  %v160 = vshrl.u32 %v159, 7
  %v161 = vsub.s32 0, %v160
  %v162 = vrot.slane %v57, %v161
  %v163 = vlaneseq
  %v164 = vshrl.u32 %v163, 7
  %v165 = vsub.s32 0, %v164
  %v166 = vrot.slane %v58, %v165
  %v167 = vlaneseq
  %v168 = vshrl.u32 %v167, 7
  %v169 = vsub.s32 0, %v168
  %v170 = vrot.slane %v59, %v169
  %v171 = vlaneseq
  %v172 = vshrl.u32 %v171, 7
  %v173 = vsub.s32 0, %v172
  %v174 = vrot.slane %v60, %v173
  %v175 = vlaneseq
  %v176 = vshrl.u32 %v175, 7
  %v177 = vsub.s32 0, %v176
  %v178 = vrot.slane %v61, %v177
  %v179 = vlaneseq
  %v180 = vshrl.u32 %v179, 7
  %v181 = vsub.s32 0, %v180
  %v182 = vrot.slane %v62, %v181
  %v183 = vlaneseq
  %v184 = vshrl.u32 %v183, 7
  %v185 = vsub.s32 0, %v184
  %v186 = vrot.slane %v63, %v185
  %v187 = vlaneseq
  %v188 = vshrl.u32 %v187, 7
  %v189 = vsub.s32 0, %v188
  %v190 = vrot.slane %v64, %v189
  %v191 = vlaneseq
  %v192 = vshrl.u32 %v191, 7
  %v193 = vsub.s32 0, %v192
  %v194 = vrot.slane %v65, %v193
  %v195 = vlaneseq
  %v196 = vshrl.u32 %v195, 7
  %v197 = vsub.s32 0, %v196
  %v198 = vrot.slane %v66, %v197
  %v199 = vlaneseq
  %v200 = vshrl.u32 %v199, 7
  %v201 = vsub.s32 0, %v200
  %v202 = vrot.slane %v67, %v201
  %v203 = vlaneseq
  %v204 = vshrl.u32 %v203, 7
  %v205 = vsub.s32 0, %v204
  %v206 = vrot.slane %v68, %v205
  %v207 = vlaneseq
  %v208 = vshrl.u32 %v207, 7
  %v209 = vsub.s32 0, %v208
  %v210 = vrot.slane %v69, %v209
  %v211 = vlaneseq
  %v212 = vshrl.u32 %v211, 7
  %v213 = vsub.s32 0, %v212
  %v214 = vrot.slane %v70, %v213
  %v215 = vlaneseq
  %v216 = vshrl.u32 %v215, 7
  %v217 = vsub.s32 0, %v216
  %v218 = vrot.slane %v71, %v217
  %v219 = vlaneseq
  %v220 = vshrl.u32 %v219, 7
  %v221 = vsub.s32 0, %v220
  %v222 = vrot.slane %v72, %v221
  %v223 = vlaneseq
  %v224 = vshrl.u32 %v223, 7
  %v225 = vsub.s32 0, %v224
  %v226 = vrot.slane %v73, %v225
  %v227 = vlaneseq
  %v228 = vshrl.u32 %v227, 7
  %v229 = vsub.s32 0, %v228
  %v230 = vrot.slane %v74, %v229
  %v231 = vlaneseq
  %v232 = vshrl.u32 %v231, 7
  %v233 = vsub.s32 0, %v232
  %v234 = vrot.slane %v75, %v233
  %v235 = vlaneseq
  %v236 = vshrl.u32 %v235, 7
  %v237 = vsub.s32 0, %v236
  %v238 = vrot.slane %v76, %v237
  %v239 = vlaneseq
  %v240 = vshrl.u32 %v239, 7
  %v241 = vsub.s32 0, %v240
  %v242 = vrot.slane %v77, %v241
  %v243 = vlaneseq
  %v244 = vshrl.u32 %v243, 7
  %v245 = vsub.s32 0, %v244
  %v246 = vrot.slane %v78, %v245
  %v247 = vlaneseq
  %v248 = vshrl.u32 %v247, 7
  %v249 = vsub.s32 0, %v248
  %v250 = vrot.slane %v79, %v249
  %v251 = vlaneseq
  %v252 = vshrl.u32 %v251, 7
  %v253 = vsub.s32 0, %v252
  %v254 = vrot.slane %v80, %v253
  %v255 = vlaneseq
  %v256 = vshrl.u32 %v255, 7
  %v257 = vsub.s32 0, %v256
  %v258 = vrot.slane %v81, %v257
  %v259 = vlaneseq
  %v260 = vshrl.u32 %v259, 7
  %v261 = vsub.s32 0, %v260
  %v262 = vrot.slane %v82, %v261
  %v263 = vlaneseq
  %v264 = vshrl.u32 %v263, 7
  %v265 = vsub.s32 0, %v264
  %v266 = vrot.slane %v83, %v265
  %v267 = vlaneseq
  %v268 = vshrl.u32 %v267, 7
  %v269 = vsub.s32 0, %v268
  %v270 = vrot.slane %v84, %v269
  %v271 = vlaneseq
  %v272 = vshrl.u32 %v271, 7
  %v273 = vsub.s32 0, %v272
  %v274 = vrot.slane %v85, %v273
  %v275 = vlaneseq
  %v276 = vshrl.u32 %v275, 7
  %v277 = vsub.s32 0, %v276
  %v278 = vrot.slane %v86, %v277
  %279 = vset.pattern.permute.xlu0 0
  %280 = vperm.xlu0 %279, %v154
  %v281 = vpop.permute.xlu0 %280
  %283 = vset.pattern.permute.xlu0 0
  %284 = vperm.xlu0 %283, %v158
  %v285 = vpop.permute.xlu0 %284
  %287 = vset.pattern.permute.xlu0 0
  %288 = vperm.xlu0 %287, %v162
  %v289 = vpop.permute.xlu0 %288
  %291 = vset.pattern.permute.xlu0 0
  %292 = vperm.xlu0 %291, %v166
  %v293 = vpop.permute.xlu0 %292
  %295 = vset.pattern.permute.xlu0 0
  %296 = vperm.xlu0 %295, %v170
  %v297 = vpop.permute.xlu0 %296
  %299 = vset.pattern.permute.xlu0 0
  %300 = vperm.xlu0 %299, %v174
  %v301 = vpop.permute.xlu0 %300
  %303 = vset.pattern.permute.xlu0 0
  %304 = vperm.xlu0 %303, %v178
  %v305 = vpop.permute.xlu0 %304
  %307 = vset.pattern.permute.xlu0 0
  %308 = vperm.xlu0 %307, %v182
  %v309 = vpop.permute.xlu0 %308
  %311 = vset.pattern.permute.xlu0 0
  %312 = vperm.xlu0 %311, %v186
  %v313 = vpop.permute.xlu0 %312
  %315 = vset.pattern.permute.xlu0 0
  %316 = vperm.xlu0 %315, %v190
  %v317 = vpop.permute.xlu0 %316
  %319 = vset.pattern.permute.xlu0 0
  %320 = vperm.xlu0 %319, %v194
  %v321 = vpop.permute.xlu0 %320
  %323 = vset.pattern.permute.xlu0 0
  %324 = vperm.xlu0 %323, %v198
  %v325 = vpop.permute.xlu0 %324
  %327 = vset.pattern.permute.xlu0 0
  %328 = vperm.xlu0 %327, %v202
  %v329 = vpop.permute.xlu0 %328
  %331 = vset.pattern.permute.xlu0 0
  %332 = vperm.xlu0 %331, %v206
  %v333 = vpop.permute.xlu0 %332
  %335 = vset.pattern.permute.xlu0 0
  %336 = vperm.xlu0 %335, %v210
  %v337 = vpop.permute.xlu0 %336
  %339 = vset.pattern.permute.xlu0 0
  %340 = vperm.xlu0 %339, %v214
  %v341 = vpop.permute.xlu0 %340
  %343 = vset.pattern.permute.xlu0 0
  %344 = vperm.xlu0 %343, %v218
  %v345 = vpop.permute.xlu0 %344
  %347 = vset.pattern.permute.xlu0 0
  %348 = vperm.xlu0 %347, %v222
  %v349 = vpop.permute.xlu0 %348
  %351 = vset.pattern.permute.xlu0 0
  %352 = vperm.xlu0 %351, %v226
  %v353 = vpop.permute.xlu0 %352
  %355 = vset.pattern.permute.xlu0 0
  %356 = vperm.xlu0 %355, %v230
  %v357 = vpop.permute.xlu0 %356
  %359 = vset.pattern.permute.xlu0 0
  %360 = vperm.xlu0 %359, %v234
  %v361 = vpop.permute.xlu0 %360
  %363 = vset.pattern.permute.xlu0 0
  %364 = vperm.xlu0 %363, %v238
  %v365 = vpop.permute.xlu0 %364
  %367 = vset.pattern.permute.xlu0 0
  %368 = vperm.xlu0 %367, %v242
  %v369 = vpop.permute.xlu0 %368
  %371 = vset.pattern.permute.xlu0 0
  %372 = vperm.xlu0 %371, %v246
  %v373 = vpop.permute.xlu0 %372
  %375 = vset.pattern.permute.xlu0 0
  %376 = vperm.xlu0 %375, %v250
  %v377 = vpop.permute.xlu0 %376
  %379 = vset.pattern.permute.xlu0 0
  %380 = vperm.xlu0 %379, %v254
  %v381 = vpop.permute.xlu0 %380
  %383 = vset.pattern.permute.xlu0 0
  %384 = vperm.xlu0 %383, %v258
  %v385 = vpop.permute.xlu0 %384
  %387 = vset.pattern.permute.xlu0 0
  %388 = vperm.xlu0 %387, %v262
  %v389 = vpop.permute.xlu0 %388
  %391 = vset.pattern.permute.xlu0 0
  %392 = vperm.xlu0 %391, %v266
  %v393 = vpop.permute.xlu0 %392
  %395 = vset.pattern.permute.xlu0 0
  %396 = vperm.xlu0 %395, %v270
  %v397 = vpop.permute.xlu0 %396
  %399 = vset.pattern.permute.xlu0 0
  %400 = vperm.xlu0 %399, %v274
  %v401 = vpop.permute.xlu0 %400
  %403 = vset.pattern.permute.xlu0 0
  %404 = vperm.xlu0 %403, %v278
  %v405 = vpop.permute.xlu0 %404
  %v407 = vmul.f32 %v23, %v281
  %v408 = vmul.f32 %v24, %v285
  %v409 = vmul.f32 %v25, %v289
  %v410 = vmul.f32 %v26, %v293
  %v411 = vmul.f32 %v27, %v297
  %v412 = vmul.f32 %v28, %v301
  %v413 = vmul.f32 %v29, %v305
  %v414 = vmul.f32 %v30, %v309
  %v415 = vmul.f32 %v31, %v313
  %v416 = vmul.f32 %v32, %v317
  %v417 = vmul.f32 %v33, %v321
  %v418 = vmul.f32 %v34, %v325
  %v419 = vmul.f32 %v35, %v329
  %v420 = vmul.f32 %v36, %v333
  %v421 = vmul.f32 %v37, %v337
  %v422 = vmul.f32 %v38, %v341
  %v423 = vmul.f32 %v39, %v345
  %v424 = vmul.f32 %v40, %v349
  %v425 = vmul.f32 %v41, %v353
  %v426 = vmul.f32 %v42, %v357
  %v427 = vmul.f32 %v43, %v361
  %v428 = vmul.f32 %v44, %v365
  %v429 = vmul.f32 %v45, %v369
  %v430 = vmul.f32 %v46, %v373
  %v431 = vmul.f32 %v47, %v377
  %v432 = vmul.f32 %v48, %v381
  %v433 = vmul.f32 %v49, %v385
  %v434 = vmul.f32 %v50, %v389
  %v435 = vmul.f32 %v51, %v393
  %v436 = vmul.f32 %v52, %v397
  %v437 = vmul.f32 %v53, %v401
  %v438 = vmul.f32 %v54, %v405
  %v439 = vadd.f32 %v407, 0.0
  %v440 = vadd.f32 %v408, 0.0
  %v441 = vadd.f32 %v409, 0.0
  %v442 = vadd.f32 %v410, 0.0
  %v443 = vadd.f32 %v411, 0.0
  %v444 = vadd.f32 %v412, 0.0
  %v445 = vadd.f32 %v413, 0.0
  %v446 = vadd.f32 %v414, 0.0
  %v447 = vadd.f32 %v415, 0.0
  %v448 = vadd.f32 %v416, 0.0
  %v449 = vadd.f32 %v417, 0.0
  %v450 = vadd.f32 %v418, 0.0
  %v451 = vadd.f32 %v419, 0.0
  %v452 = vadd.f32 %v420, 0.0
  %v453 = vadd.f32 %v421, 0.0
  %v454 = vadd.f32 %v422, 0.0
  %v455 = vadd.f32 %v423, 0.0
  %v456 = vadd.f32 %v424, 0.0
  %v457 = vadd.f32 %v425, 0.0
  %v458 = vadd.f32 %v426, 0.0
  %v459 = vadd.f32 %v427, 0.0
  %v460 = vadd.f32 %v428, 0.0
  %v461 = vadd.f32 %v429, 0.0
  %v462 = vadd.f32 %v430, 0.0
  %v463 = vadd.f32 %v431, 0.0
  %v464 = vadd.f32 %v432, 0.0
  %v465 = vadd.f32 %v433, 0.0
  %v466 = vadd.f32 %v434, 0.0
  %v467 = vadd.f32 %v435, 0.0
  %v468 = vadd.f32 %v436, 0.0
  %v469 = vadd.f32 %v437, 0.0
  %v470 = vadd.f32 %v438, 0.0
  %471 = vset.pattern.permute.xlu0 1
  %472 = vperm.xlu0 %471, %v154
  %v473 = vpop.permute.xlu0 %472
  %475 = vset.pattern.permute.xlu0 1
  %476 = vperm.xlu0 %475, %v158
  %v477 = vpop.permute.xlu0 %476
  %479 = vset.pattern.permute.xlu0 1
  %480 = vperm.xlu0 %479, %v162
  %v481 = vpop.permute.xlu0 %480
  %483 = vset.pattern.permute.xlu0 1
  %484 = vperm.xlu0 %483, %v166
  %v485 = vpop.permute.xlu0 %484
  %487 = vset.pattern.permute.xlu0 1
  %488 = vperm.xlu0 %487, %v170
  %v489 = vpop.permute.xlu0 %488
  %491 = vset.pattern.permute.xlu0 1
  %492 = vperm.xlu0 %491, %v174
  %v493 = vpop.permute.xlu0 %492
  %495 = vset.pattern.permute.xlu0 1
  %496 = vperm.xlu0 %495, %v178
  %v497 = vpop.permute.xlu0 %496
  %499 = vset.pattern.permute.xlu0 1
  %500 = vperm.xlu0 %499, %v182
  %v501 = vpop.permute.xlu0 %500
  %503 = vset.pattern.permute.xlu0 1
  %504 = vperm.xlu0 %503, %v186
  %v505 = vpop.permute.xlu0 %504
  %507 = vset.pattern.permute.xlu0 1
  %508 = vperm.xlu0 %507, %v190
  %v509 = vpop.permute.xlu0 %508
  %511 = vset.pattern.permute.xlu0 1
  %512 = vperm.xlu0 %511, %v194
  %v513 = vpop.permute.xlu0 %512
  %515 = vset.pattern.permute.xlu0 1
  %516 = vperm.xlu0 %515, %v198
  %v517 = vpop.permute.xlu0 %516
  %519 = vset.pattern.permute.xlu0 1
  %520 = vperm.xlu0 %519, %v202
  %v521 = vpop.permute.xlu0 %520
  %523 = vset.pattern.permute.xlu0 1
  %524 = vperm.xlu0 %523, %v206
  %v525 = vpop.permute.xlu0 %524
  %527 = vset.pattern.permute.xlu0 1
  %528 = vperm.xlu0 %527, %v210
  %v529 = vpop.permute.xlu0 %528
  %531 = vset.pattern.permute.xlu0 1
  %532 = vperm.xlu0 %531, %v214
  %v533 = vpop.permute.xlu0 %532
  %535 = vset.pattern.permute.xlu0 1
  %536 = vperm.xlu0 %535, %v218
  %v537 = vpop.permute.xlu0 %536
  %539 = vset.pattern.permute.xlu0 1
  %540 = vperm.xlu0 %539, %v222
  %v541 = vpop.permute.xlu0 %540
  %543 = vset.pattern.permute.xlu0 1
  %544 = vperm.xlu0 %543, %v226
  %v545 = vpop.permute.xlu0 %544
  %547 = vset.pattern.permute.xlu0 1
  %548 = vperm.xlu0 %547, %v230
  %v549 = vpop.permute.xlu0 %548
  %551 = vset.pattern.permute.xlu0 1
  %552 = vperm.xlu0 %551, %v234
  %v553 = vpop.permute.xlu0 %552
  %555 = vset.pattern.permute.xlu0 1
  %556 = vperm.xlu0 %555, %v238
  %v557 = vpop.permute.xlu0 %556
  %559 = vset.pattern.permute.xlu0 1
  %560 = vperm.xlu0 %559, %v242
  %v561 = vpop.permute.xlu0 %560
  %563 = vset.pattern.permute.xlu0 1
  %564 = vperm.xlu0 %563, %v246
  %v565 = vpop.permute.xlu0 %564
  %567 = vset.pattern.permute.xlu0 1
  %568 = vperm.xlu0 %567, %v250
  %v569 = vpop.permute.xlu0 %568
  %571 = vset.pattern.permute.xlu0 1
  %572 = vperm.xlu0 %571, %v254
  %v573 = vpop.permute.xlu0 %572
  %575 = vset.pattern.permute.xlu0 1
  %576 = vperm.xlu0 %575, %v258
  %v577 = vpop.permute.xlu0 %576
  %579 = vset.pattern.permute.xlu0 1
  %580 = vperm.xlu0 %579, %v262
  %v581 = vpop.permute.xlu0 %580
  %583 = vset.pattern.permute.xlu0 1
  %584 = vperm.xlu0 %583, %v266
  %v585 = vpop.permute.xlu0 %584
  %587 = vset.pattern.permute.xlu0 1
  %588 = vperm.xlu0 %587, %v270
  %v589 = vpop.permute.xlu0 %588
  %591 = vset.pattern.permute.xlu0 1
  %592 = vperm.xlu0 %591, %v274
  %v593 = vpop.permute.xlu0 %592
  %595 = vset.pattern.permute.xlu0 1
  %596 = vperm.xlu0 %595, %v278
  %v597 = vpop.permute.xlu0 %596
  %v599 = vmul.f32 %v23, %v473
  %v600 = vmul.f32 %v24, %v477
  %v601 = vmul.f32 %v25, %v481
  %v602 = vmul.f32 %v26, %v485
  %v603 = vmul.f32 %v27, %v489
  %v604 = vmul.f32 %v28, %v493
  %v605 = vmul.f32 %v29, %v497
  %v606 = vmul.f32 %v30, %v501
  %v607 = vmul.f32 %v31, %v505
  %v608 = vmul.f32 %v32, %v509
  %v609 = vmul.f32 %v33, %v513
  %v610 = vmul.f32 %v34, %v517
  %v611 = vmul.f32 %v35, %v521
  %v612 = vmul.f32 %v36, %v525
  %v613 = vmul.f32 %v37, %v529
  %v614 = vmul.f32 %v38, %v533
  %v615 = vmul.f32 %v39, %v537
  %v616 = vmul.f32 %v40, %v541
  %v617 = vmul.f32 %v41, %v545
  %v618 = vmul.f32 %v42, %v549
  %v619 = vmul.f32 %v43, %v553
  %v620 = vmul.f32 %v44, %v557
  %v621 = vmul.f32 %v45, %v561
  %v622 = vmul.f32 %v46, %v565
  %v623 = vmul.f32 %v47, %v569
  %v624 = vmul.f32 %v48, %v573
  %v625 = vmul.f32 %v49, %v577
  %v626 = vmul.f32 %v50, %v581
  %v627 = vmul.f32 %v51, %v585
  %v628 = vmul.f32 %v52, %v589
  %v629 = vmul.f32 %v53, %v593
  %v630 = vmul.f32 %v54, %v597
  %663 = vrot.lane.b32.xlu0 %v599, 127
  %v664 = vpop.permute.xlu0 %663
  %665 = vrot.lane.b32.xlu0 %v600, 127
  %v666 = vpop.permute.xlu0 %665
  %667 = vrot.lane.b32.xlu0 %v601, 127
  %v668 = vpop.permute.xlu0 %667
  %669 = vrot.lane.b32.xlu0 %v602, 127
  %v670 = vpop.permute.xlu0 %669
  %671 = vrot.lane.b32.xlu0 %v603, 127
  %v672 = vpop.permute.xlu0 %671
  %673 = vrot.lane.b32.xlu0 %v604, 127
  %v674 = vpop.permute.xlu0 %673
  %675 = vrot.lane.b32.xlu0 %v605, 127
  %v676 = vpop.permute.xlu0 %675
  %677 = vrot.lane.b32.xlu0 %v606, 127
  %v678 = vpop.permute.xlu0 %677
  %679 = vrot.lane.b32.xlu0 %v607, 127
  %v680 = vpop.permute.xlu0 %679
  %681 = vrot.lane.b32.xlu0 %v608, 127
  %v682 = vpop.permute.xlu0 %681
  %683 = vrot.lane.b32.xlu0 %v609, 127
  %v684 = vpop.permute.xlu0 %683
  %685 = vrot.lane.b32.xlu0 %v610, 127
  %v686 = vpop.permute.xlu0 %685
  %687 = vrot.lane.b32.xlu0 %v611, 127
  %v688 = vpop.permute.xlu0 %687
  %689 = vrot.lane.b32.xlu0 %v612, 127
  %v690 = vpop.permute.xlu0 %689
  %691 = vrot.lane.b32.xlu0 %v613, 127
  %v692 = vpop.permute.xlu0 %691
  %693 = vrot.lane.b32.xlu0 %v614, 127
  %v694 = vpop.permute.xlu0 %693
  %695 = vrot.lane.b32.xlu0 %v615, 127
  %v696 = vpop.permute.xlu0 %695
  %697 = vrot.lane.b32.xlu0 %v616, 127
  %v698 = vpop.permute.xlu0 %697
  %699 = vrot.lane.b32.xlu0 %v617, 127
  %v700 = vpop.permute.xlu0 %699
  %701 = vrot.lane.b32.xlu0 %v618, 127
  %v702 = vpop.permute.xlu0 %701
  %703 = vrot.lane.b32.xlu0 %v619, 127
  %v704 = vpop.permute.xlu0 %703
  %705 = vrot.lane.b32.xlu0 %v620, 127
  %v706 = vpop.permute.xlu0 %705
  %707 = vrot.lane.b32.xlu0 %v621, 127
  %v708 = vpop.permute.xlu0 %707
  %709 = vrot.lane.b32.xlu0 %v622, 127
  %v710 = vpop.permute.xlu0 %709
  %711 = vrot.lane.b32.xlu0 %v623, 127
  %v712 = vpop.permute.xlu0 %711
  %713 = vrot.lane.b32.xlu0 %v624, 127
  %v714 = vpop.permute.xlu0 %713
  %715 = vrot.lane.b32.xlu0 %v625, 127
  %v716 = vpop.permute.xlu0 %715
  %717 = vrot.lane.b32.xlu0 %v626, 127
  %v718 = vpop.permute.xlu0 %717
  %719 = vrot.lane.b32.xlu0 %v627, 127
  %v720 = vpop.permute.xlu0 %719
  %721 = vrot.lane.b32.xlu0 %v628, 127
  %v722 = vpop.permute.xlu0 %721
  %723 = vrot.lane.b32.xlu0 %v629, 127
  %v724 = vpop.permute.xlu0 %723
  %725 = vrot.lane.b32.xlu0 %v630, 127
  %v726 = vpop.permute.xlu0 %725
  %v759 = vadd.f32 %v439, %v664
  %v760 = vadd.f32 %v440, %v666
  %v761 = vadd.f32 %v441, %v668
  %v762 = vadd.f32 %v442, %v670
  %v763 = vadd.f32 %v443, %v672
  %v764 = vadd.f32 %v444, %v674
  %v765 = vadd.f32 %v445, %v676
  %v766 = vadd.f32 %v446, %v678
  %v767 = vadd.f32 %v447, %v680
  %v768 = vadd.f32 %v448, %v682
  %v769 = vadd.f32 %v449, %v684
  %v770 = vadd.f32 %v450, %v686
  %v771 = vadd.f32 %v451, %v688
  %v772 = vadd.f32 %v452, %v690
  %v773 = vadd.f32 %v453, %v692
  %v774 = vadd.f32 %v454, %v694
  %v775 = vadd.f32 %v455, %v696
  %v776 = vadd.f32 %v456, %v698
  %v777 = vadd.f32 %v457, %v700
  %v778 = vadd.f32 %v458, %v702
  %v779 = vadd.f32 %v459, %v704
  %v780 = vadd.f32 %v460, %v706
  %v781 = vadd.f32 %v461, %v708
  %v782 = vadd.f32 %v462, %v710
  %v783 = vadd.f32 %v463, %v712
  %v784 = vadd.f32 %v464, %v714
  %v785 = vadd.f32 %v465, %v716
  %v786 = vadd.f32 %v466, %v718
  %v787 = vadd.f32 %v467, %v720
  %v788 = vadd.f32 %v468, %v722
  %v789 = vadd.f32 %v469, %v724
  %v790 = vadd.f32 %v470, %v726
  %791 = vset.pattern.permute.xlu0 2
  %792 = vperm.xlu0 %791, %v154
  %v793 = vpop.permute.xlu0 %792
  %795 = vset.pattern.permute.xlu0 2
  %796 = vperm.xlu0 %795, %v158
  %v797 = vpop.permute.xlu0 %796
  %799 = vset.pattern.permute.xlu0 2
  %800 = vperm.xlu0 %799, %v162
  %v801 = vpop.permute.xlu0 %800
  %803 = vset.pattern.permute.xlu0 2
  %804 = vperm.xlu0 %803, %v166
  %v805 = vpop.permute.xlu0 %804
  %807 = vset.pattern.permute.xlu0 2
  %808 = vperm.xlu0 %807, %v170
  %v809 = vpop.permute.xlu0 %808
  %811 = vset.pattern.permute.xlu0 2
  %812 = vperm.xlu0 %811, %v174
  %v813 = vpop.permute.xlu0 %812
  %815 = vset.pattern.permute.xlu0 2
  %816 = vperm.xlu0 %815, %v178
  %v817 = vpop.permute.xlu0 %816
  %819 = vset.pattern.permute.xlu0 2
  %820 = vperm.xlu0 %819, %v182
  %v821 = vpop.permute.xlu0 %820
  %823 = vset.pattern.permute.xlu0 2
  %824 = vperm.xlu0 %823, %v186
  %v825 = vpop.permute.xlu0 %824
  %827 = vset.pattern.permute.xlu0 2
  %828 = vperm.xlu0 %827, %v190
  %v829 = vpop.permute.xlu0 %828
  %831 = vset.pattern.permute.xlu0 2
  %832 = vperm.xlu0 %831, %v194
  %v833 = vpop.permute.xlu0 %832
  %835 = vset.pattern.permute.xlu0 2
  %836 = vperm.xlu0 %835, %v198
  %v837 = vpop.permute.xlu0 %836
  %839 = vset.pattern.permute.xlu0 2
  %840 = vperm.xlu0 %839, %v202
  %v841 = vpop.permute.xlu0 %840
  %843 = vset.pattern.permute.xlu0 2
  %844 = vperm.xlu0 %843, %v206
  %v845 = vpop.permute.xlu0 %844
  %847 = vset.pattern.permute.xlu0 2
  %848 = vperm.xlu0 %847, %v210
  %v849 = vpop.permute.xlu0 %848
  %851 = vset.pattern.permute.xlu0 2
  %852 = vperm.xlu0 %851, %v214
  %v853 = vpop.permute.xlu0 %852
  %855 = vset.pattern.permute.xlu0 2
  %856 = vperm.xlu0 %855, %v218
  %v857 = vpop.permute.xlu0 %856
  %859 = vset.pattern.permute.xlu0 2
  %860 = vperm.xlu0 %859, %v222
  %v861 = vpop.permute.xlu0 %860
  %863 = vset.pattern.permute.xlu0 2
  %864 = vperm.xlu0 %863, %v226
  %v865 = vpop.permute.xlu0 %864
  %867 = vset.pattern.permute.xlu0 2
  %868 = vperm.xlu0 %867, %v230
  %v869 = vpop.permute.xlu0 %868
  %871 = vset.pattern.permute.xlu0 2
  %872 = vperm.xlu0 %871, %v234
  %v873 = vpop.permute.xlu0 %872
  %875 = vset.pattern.permute.xlu0 2
  %876 = vperm.xlu0 %875, %v238
  %v877 = vpop.permute.xlu0 %876
  %879 = vset.pattern.permute.xlu0 2
  %880 = vperm.xlu0 %879, %v242
  %v881 = vpop.permute.xlu0 %880
  %883 = vset.pattern.permute.xlu0 2
  %884 = vperm.xlu0 %883, %v246
  %v885 = vpop.permute.xlu0 %884
  %887 = vset.pattern.permute.xlu0 2
  %888 = vperm.xlu0 %887, %v250
  %v889 = vpop.permute.xlu0 %888
  %891 = vset.pattern.permute.xlu0 2
  %892 = vperm.xlu0 %891, %v254
  %v893 = vpop.permute.xlu0 %892
  %895 = vset.pattern.permute.xlu0 2
  %896 = vperm.xlu0 %895, %v258
  %v897 = vpop.permute.xlu0 %896
  %899 = vset.pattern.permute.xlu0 2
  %900 = vperm.xlu0 %899, %v262
  %v901 = vpop.permute.xlu0 %900
  %903 = vset.pattern.permute.xlu0 2
  %904 = vperm.xlu0 %903, %v266
  %v905 = vpop.permute.xlu0 %904
  %907 = vset.pattern.permute.xlu0 2
  %908 = vperm.xlu0 %907, %v270
  %v909 = vpop.permute.xlu0 %908
  %911 = vset.pattern.permute.xlu0 2
  %912 = vperm.xlu0 %911, %v274
  %v913 = vpop.permute.xlu0 %912
  %915 = vset.pattern.permute.xlu0 2
  %916 = vperm.xlu0 %915, %v278
  %v917 = vpop.permute.xlu0 %916
  %v919 = vmul.f32 %v23, %v793
  %v920 = vmul.f32 %v24, %v797
  %v921 = vmul.f32 %v25, %v801
  %v922 = vmul.f32 %v26, %v805
  %v923 = vmul.f32 %v27, %v809
  %v924 = vmul.f32 %v28, %v813
  %v925 = vmul.f32 %v29, %v817
  %v926 = vmul.f32 %v30, %v821
  %v927 = vmul.f32 %v31, %v825
  %v928 = vmul.f32 %v32, %v829
  %v929 = vmul.f32 %v33, %v833
  %v930 = vmul.f32 %v34, %v837
  %v931 = vmul.f32 %v35, %v841
  %v932 = vmul.f32 %v36, %v845
  %v933 = vmul.f32 %v37, %v849
  %v934 = vmul.f32 %v38, %v853
  %v935 = vmul.f32 %v39, %v857
  %v936 = vmul.f32 %v40, %v861
  %v937 = vmul.f32 %v41, %v865
  %v938 = vmul.f32 %v42, %v869
  %v939 = vmul.f32 %v43, %v873
  %v940 = vmul.f32 %v44, %v877
  %v941 = vmul.f32 %v45, %v881
  %v942 = vmul.f32 %v46, %v885
  %v943 = vmul.f32 %v47, %v889
  %v944 = vmul.f32 %v48, %v893
  %v945 = vmul.f32 %v49, %v897
  %v946 = vmul.f32 %v50, %v901
  %v947 = vmul.f32 %v51, %v905
  %v948 = vmul.f32 %v52, %v909
  %v949 = vmul.f32 %v53, %v913
  %v950 = vmul.f32 %v54, %v917
  %983 = vrot.lane.b32.xlu0 %v919, 126
  %v984 = vpop.permute.xlu0 %983
  %985 = vrot.lane.b32.xlu0 %v920, 126
  %v986 = vpop.permute.xlu0 %985
  %987 = vrot.lane.b32.xlu0 %v921, 126
  %v988 = vpop.permute.xlu0 %987
  %989 = vrot.lane.b32.xlu0 %v922, 126
  %v990 = vpop.permute.xlu0 %989
  %991 = vrot.lane.b32.xlu0 %v923, 126
  %v992 = vpop.permute.xlu0 %991
  %993 = vrot.lane.b32.xlu0 %v924, 126
  %v994 = vpop.permute.xlu0 %993
  %995 = vrot.lane.b32.xlu0 %v925, 126
  %v996 = vpop.permute.xlu0 %995
  %997 = vrot.lane.b32.xlu0 %v926, 126
  %v998 = vpop.permute.xlu0 %997
  %999 = vrot.lane.b32.xlu0 %v927, 126
  %v1000 = vpop.permute.xlu0 %999
  %1001 = vrot.lane.b32.xlu0 %v928, 126
  %v1002 = vpop.permute.xlu0 %1001
  %1003 = vrot.lane.b32.xlu0 %v929, 126
  %v1004 = vpop.permute.xlu0 %1003
  %1005 = vrot.lane.b32.xlu0 %v930, 126
  %v1006 = vpop.permute.xlu0 %1005
  %1007 = vrot.lane.b32.xlu0 %v931, 126
  %v1008 = vpop.permute.xlu0 %1007
  %1009 = vrot.lane.b32.xlu0 %v932, 126
  %v1010 = vpop.permute.xlu0 %1009
  %1011 = vrot.lane.b32.xlu0 %v933, 126
  %v1012 = vpop.permute.xlu0 %1011
  %1013 = vrot.lane.b32.xlu0 %v934, 126
  %v1014 = vpop.permute.xlu0 %1013
  %1015 = vrot.lane.b32.xlu0 %v935, 126
  %v1016 = vpop.permute.xlu0 %1015
  %1017 = vrot.lane.b32.xlu0 %v936, 126
  %v1018 = vpop.permute.xlu0 %1017
  %1019 = vrot.lane.b32.xlu0 %v937, 126
  %v1020 = vpop.permute.xlu0 %1019
  %1021 = vrot.lane.b32.xlu0 %v938, 126
  %v1022 = vpop.permute.xlu0 %1021
  %1023 = vrot.lane.b32.xlu0 %v939, 126
  %v1024 = vpop.permute.xlu0 %1023
  %1025 = vrot.lane.b32.xlu0 %v940, 126
  %v1026 = vpop.permute.xlu0 %1025
  %1027 = vrot.lane.b32.xlu0 %v941, 126
  %v1028 = vpop.permute.xlu0 %1027
  %1029 = vrot.lane.b32.xlu0 %v942, 126
  %v1030 = vpop.permute.xlu0 %1029
  %1031 = vrot.lane.b32.xlu0 %v943, 126
  %v1032 = vpop.permute.xlu0 %1031
  %1033 = vrot.lane.b32.xlu0 %v944, 126
  %v1034 = vpop.permute.xlu0 %1033
  %1035 = vrot.lane.b32.xlu0 %v945, 126
  %v1036 = vpop.permute.xlu0 %1035
  %1037 = vrot.lane.b32.xlu0 %v946, 126
  %v1038 = vpop.permute.xlu0 %1037
  %1039 = vrot.lane.b32.xlu0 %v947, 126
  %v1040 = vpop.permute.xlu0 %1039
  %1041 = vrot.lane.b32.xlu0 %v948, 126
  %v1042 = vpop.permute.xlu0 %1041
  %1043 = vrot.lane.b32.xlu0 %v949, 126
  %v1044 = vpop.permute.xlu0 %1043
  %1045 = vrot.lane.b32.xlu0 %v950, 126
  %v1046 = vpop.permute.xlu0 %1045
  %v1079 = vadd.f32 %v759, %v984
  %v1080 = vadd.f32 %v760, %v986
  %v1081 = vadd.f32 %v761, %v988
  %v1082 = vadd.f32 %v762, %v990
  %v1083 = vadd.f32 %v763, %v992
  %v1084 = vadd.f32 %v764, %v994
  %v1085 = vadd.f32 %v765, %v996
  %v1086 = vadd.f32 %v766, %v998
  %v1087 = vadd.f32 %v767, %v1000
  %v1088 = vadd.f32 %v768, %v1002
  %v1089 = vadd.f32 %v769, %v1004
  %v1090 = vadd.f32 %v770, %v1006
  %v1091 = vadd.f32 %v771, %v1008
  %v1092 = vadd.f32 %v772, %v1010
  %v1093 = vadd.f32 %v773, %v1012
  %v1094 = vadd.f32 %v774, %v1014
  %v1095 = vadd.f32 %v775, %v1016
  %v1096 = vadd.f32 %v776, %v1018
  %v1097 = vadd.f32 %v777, %v1020
  %v1098 = vadd.f32 %v778, %v1022
  %v1099 = vadd.f32 %v779, %v1024
  %v1100 = vadd.f32 %v780, %v1026
  %v1101 = vadd.f32 %v781, %v1028
  %v1102 = vadd.f32 %v782, %v1030
  %v1103 = vadd.f32 %v783, %v1032
  %v1104 = vadd.f32 %v784, %v1034
  %v1105 = vadd.f32 %v785, %v1036
  %v1106 = vadd.f32 %v786, %v1038
  %v1107 = vadd.f32 %v787, %v1040
  %v1108 = vadd.f32 %v788, %v1042
  %v1109 = vadd.f32 %v789, %v1044
  %v1110 = vadd.f32 %v790, %v1046
  %v1143 = vlaneseq
  %v1144 = vshrl.u32 %v1143, 7
  %v1145 = vsub.s32 0, %v1144
  %v1146 = vrot.slane %v87, %v1145
  %v1147 = vlaneseq
  %v1148 = vshrl.u32 %v1147, 7
  %v1149 = vsub.s32 0, %v1148
  %v1150 = vrot.slane %v88, %v1149
  %v1151 = vlaneseq
  %v1152 = vshrl.u32 %v1151, 7
  %v1153 = vsub.s32 0, %v1152
  %v1154 = vrot.slane %v89, %v1153
  %v1155 = vlaneseq
  %v1156 = vshrl.u32 %v1155, 7
  %v1157 = vsub.s32 0, %v1156
  %v1158 = vrot.slane %v90, %v1157
  %v1159 = vlaneseq
  %v1160 = vshrl.u32 %v1159, 7
  %v1161 = vsub.s32 0, %v1160
  %v1162 = vrot.slane %v91, %v1161
  %v1163 = vlaneseq
  %v1164 = vshrl.u32 %v1163, 7
  %v1165 = vsub.s32 0, %v1164
  %v1166 = vrot.slane %v92, %v1165
  %v1167 = vlaneseq
  %v1168 = vshrl.u32 %v1167, 7
  %v1169 = vsub.s32 0, %v1168
  %v1170 = vrot.slane %v93, %v1169
  %v1171 = vlaneseq
  %v1172 = vshrl.u32 %v1171, 7
  %v1173 = vsub.s32 0, %v1172
  %v1174 = vrot.slane %v94, %v1173
  %v1175 = vlaneseq
  %v1176 = vshrl.u32 %v1175, 7
  %v1177 = vsub.s32 0, %v1176
  %v1178 = vrot.slane %v95, %v1177
  %v1179 = vlaneseq
  %v1180 = vshrl.u32 %v1179, 7
  %v1181 = vsub.s32 0, %v1180
  %v1182 = vrot.slane %v96, %v1181
  %v1183 = vlaneseq
  %v1184 = vshrl.u32 %v1183, 7
  %v1185 = vsub.s32 0, %v1184
  %v1186 = vrot.slane %v97, %v1185
  %v1187 = vlaneseq
  %v1188 = vshrl.u32 %v1187, 7
  %v1189 = vsub.s32 0, %v1188
  %v1190 = vrot.slane %v98, %v1189
  %v1191 = vlaneseq
  %v1192 = vshrl.u32 %v1191, 7
  %v1193 = vsub.s32 0, %v1192
  %v1194 = vrot.slane %v99, %v1193
  %v1195 = vlaneseq
  %v1196 = vshrl.u32 %v1195, 7
  %v1197 = vsub.s32 0, %v1196
  %v1198 = vrot.slane %v100, %v1197
  %v1199 = vlaneseq
  %v1200 = vshrl.u32 %v1199, 7
  %v1201 = vsub.s32 0, %v1200
  %v1202 = vrot.slane %v101, %v1201
  %v1203 = vlaneseq
  %v1204 = vshrl.u32 %v1203, 7
  %v1205 = vsub.s32 0, %v1204
  %v1206 = vrot.slane %v102, %v1205
  %v1207 = vlaneseq
  %v1208 = vshrl.u32 %v1207, 7
  %v1209 = vsub.s32 0, %v1208
  %v1210 = vrot.slane %v103, %v1209
  %v1211 = vlaneseq
  %v1212 = vshrl.u32 %v1211, 7
  %v1213 = vsub.s32 0, %v1212
  %v1214 = vrot.slane %v104, %v1213
  %v1215 = vlaneseq
  %v1216 = vshrl.u32 %v1215, 7
  %v1217 = vsub.s32 0, %v1216
  %v1218 = vrot.slane %v105, %v1217
  %v1219 = vlaneseq
  %v1220 = vshrl.u32 %v1219, 7
  %v1221 = vsub.s32 0, %v1220
  %v1222 = vrot.slane %v106, %v1221
  %v1223 = vlaneseq
  %v1224 = vshrl.u32 %v1223, 7
  %v1225 = vsub.s32 0, %v1224
  %v1226 = vrot.slane %v107, %v1225
  %v1227 = vlaneseq
  %v1228 = vshrl.u32 %v1227, 7
  %v1229 = vsub.s32 0, %v1228
  %v1230 = vrot.slane %v108, %v1229
  %v1231 = vlaneseq
  %v1232 = vshrl.u32 %v1231, 7
  %v1233 = vsub.s32 0, %v1232
  %v1234 = vrot.slane %v109, %v1233
  %v1235 = vlaneseq
  %v1236 = vshrl.u32 %v1235, 7
  %v1237 = vsub.s32 0, %v1236
  %v1238 = vrot.slane %v110, %v1237
  %v1239 = vlaneseq
  %v1240 = vshrl.u32 %v1239, 7
  %v1241 = vsub.s32 0, %v1240
  %v1242 = vrot.slane %v111, %v1241
  %v1243 = vlaneseq
  %v1244 = vshrl.u32 %v1243, 7
  %v1245 = vsub.s32 0, %v1244
  %v1246 = vrot.slane %v112, %v1245
  %v1247 = vlaneseq
  %v1248 = vshrl.u32 %v1247, 7
  %v1249 = vsub.s32 0, %v1248
  %v1250 = vrot.slane %v113, %v1249
  %v1251 = vlaneseq
  %v1252 = vshrl.u32 %v1251, 7
  %v1253 = vsub.s32 0, %v1252
  %v1254 = vrot.slane %v114, %v1253
  %v1255 = vlaneseq
  %v1256 = vshrl.u32 %v1255, 7
  %v1257 = vsub.s32 0, %v1256
  %v1258 = vrot.slane %v115, %v1257
  %v1259 = vlaneseq
  %v1260 = vshrl.u32 %v1259, 7
  %v1261 = vsub.s32 0, %v1260
  %v1262 = vrot.slane %v116, %v1261
  %v1263 = vlaneseq
  %v1264 = vshrl.u32 %v1263, 7
  %v1265 = vsub.s32 0, %v1264
  %v1266 = vrot.slane %v117, %v1265
  %v1267 = vlaneseq
  %v1268 = vshrl.u32 %v1267, 7
  %v1269 = vsub.s32 0, %v1268
  %v1270 = vrot.slane %v118, %v1269
  %1271 = vset.pattern.permute.xlu0 0
  %1272 = vperm.xlu0 %1271, %v1146
  %v1273 = vpop.permute.xlu0 %1272
  %1275 = vset.pattern.permute.xlu0 0
  %1276 = vperm.xlu0 %1275, %v1150
  %v1277 = vpop.permute.xlu0 %1276
  %1279 = vset.pattern.permute.xlu0 0
  %1280 = vperm.xlu0 %1279, %v1154
  %v1281 = vpop.permute.xlu0 %1280
  %1283 = vset.pattern.permute.xlu0 0
  %1284 = vperm.xlu0 %1283, %v1158
  %v1285 = vpop.permute.xlu0 %1284
  %1287 = vset.pattern.permute.xlu0 0
  %1288 = vperm.xlu0 %1287, %v1162
  %v1289 = vpop.permute.xlu0 %1288
  %1291 = vset.pattern.permute.xlu0 0
  %1292 = vperm.xlu0 %1291, %v1166
  %v1293 = vpop.permute.xlu0 %1292
  %1295 = vset.pattern.permute.xlu0 0
  %1296 = vperm.xlu0 %1295, %v1170
  %v1297 = vpop.permute.xlu0 %1296
  %1299 = vset.pattern.permute.xlu0 0
  %1300 = vperm.xlu0 %1299, %v1174
  %v1301 = vpop.permute.xlu0 %1300
  %1303 = vset.pattern.permute.xlu0 0
  %1304 = vperm.xlu0 %1303, %v1178
  %v1305 = vpop.permute.xlu0 %1304
  %1307 = vset.pattern.permute.xlu0 0
  %1308 = vperm.xlu0 %1307, %v1182
  %v1309 = vpop.permute.xlu0 %1308
  %1311 = vset.pattern.permute.xlu0 0
  %1312 = vperm.xlu0 %1311, %v1186
  %v1313 = vpop.permute.xlu0 %1312
  %1315 = vset.pattern.permute.xlu0 0
  %1316 = vperm.xlu0 %1315, %v1190
  %v1317 = vpop.permute.xlu0 %1316
  %1319 = vset.pattern.permute.xlu0 0
  %1320 = vperm.xlu0 %1319, %v1194
  %v1321 = vpop.permute.xlu0 %1320
  %1323 = vset.pattern.permute.xlu0 0
  %1324 = vperm.xlu0 %1323, %v1198
  %v1325 = vpop.permute.xlu0 %1324
  %1327 = vset.pattern.permute.xlu0 0
  %1328 = vperm.xlu0 %1327, %v1202
  %v1329 = vpop.permute.xlu0 %1328
  %1331 = vset.pattern.permute.xlu0 0
  %1332 = vperm.xlu0 %1331, %v1206
  %v1333 = vpop.permute.xlu0 %1332
  %1335 = vset.pattern.permute.xlu0 0
  %1336 = vperm.xlu0 %1335, %v1210
  %v1337 = vpop.permute.xlu0 %1336
  %1339 = vset.pattern.permute.xlu0 0
  %1340 = vperm.xlu0 %1339, %v1214
  %v1341 = vpop.permute.xlu0 %1340
  %1343 = vset.pattern.permute.xlu0 0
  %1344 = vperm.xlu0 %1343, %v1218
  %v1345 = vpop.permute.xlu0 %1344
  %1347 = vset.pattern.permute.xlu0 0
  %1348 = vperm.xlu0 %1347, %v1222
  %v1349 = vpop.permute.xlu0 %1348
  %1351 = vset.pattern.permute.xlu0 0
  %1352 = vperm.xlu0 %1351, %v1226
  %v1353 = vpop.permute.xlu0 %1352
  %1355 = vset.pattern.permute.xlu0 0
  %1356 = vperm.xlu0 %1355, %v1230
  %v1357 = vpop.permute.xlu0 %1356
  %1359 = vset.pattern.permute.xlu0 0
  %1360 = vperm.xlu0 %1359, %v1234
  %v1361 = vpop.permute.xlu0 %1360
  %1363 = vset.pattern.permute.xlu0 0
  %1364 = vperm.xlu0 %1363, %v1238
  %v1365 = vpop.permute.xlu0 %1364
  %1367 = vset.pattern.permute.xlu0 0
  %1368 = vperm.xlu0 %1367, %v1242
  %v1369 = vpop.permute.xlu0 %1368
  %1371 = vset.pattern.permute.xlu0 0
  %1372 = vperm.xlu0 %1371, %v1246
  %v1373 = vpop.permute.xlu0 %1372
  %1375 = vset.pattern.permute.xlu0 0
  %1376 = vperm.xlu0 %1375, %v1250
  %v1377 = vpop.permute.xlu0 %1376
  %1379 = vset.pattern.permute.xlu0 0
  %1380 = vperm.xlu0 %1379, %v1254
  %v1381 = vpop.permute.xlu0 %1380
  %1383 = vset.pattern.permute.xlu0 0
  %1384 = vperm.xlu0 %1383, %v1258
  %v1385 = vpop.permute.xlu0 %1384
  %1387 = vset.pattern.permute.xlu0 0
  %1388 = vperm.xlu0 %1387, %v1262
  %v1389 = vpop.permute.xlu0 %1388
  %1391 = vset.pattern.permute.xlu0 0
  %1392 = vperm.xlu0 %1391, %v1266
  %v1393 = vpop.permute.xlu0 %1392
  %1395 = vset.pattern.permute.xlu0 0
  %1396 = vperm.xlu0 %1395, %v1270
  %v1397 = vpop.permute.xlu0 %1396
  %v1399 = vmul.f32 %v23, %v1273
  %v1400 = vmul.f32 %v24, %v1277
  %v1401 = vmul.f32 %v25, %v1281
  %v1402 = vmul.f32 %v26, %v1285
  %v1403 = vmul.f32 %v27, %v1289
  %v1404 = vmul.f32 %v28, %v1293
  %v1405 = vmul.f32 %v29, %v1297
  %v1406 = vmul.f32 %v30, %v1301
  %v1407 = vmul.f32 %v31, %v1305
  %v1408 = vmul.f32 %v32, %v1309
  %v1409 = vmul.f32 %v33, %v1313
  %v1410 = vmul.f32 %v34, %v1317
  %v1411 = vmul.f32 %v35, %v1321
  %v1412 = vmul.f32 %v36, %v1325
  %v1413 = vmul.f32 %v37, %v1329
  %v1414 = vmul.f32 %v38, %v1333
  %v1415 = vmul.f32 %v39, %v1337
  %v1416 = vmul.f32 %v40, %v1341
  %v1417 = vmul.f32 %v41, %v1345
  %v1418 = vmul.f32 %v42, %v1349
  %v1419 = vmul.f32 %v43, %v1353
  %v1420 = vmul.f32 %v44, %v1357
  %v1421 = vmul.f32 %v45, %v1361
  %v1422 = vmul.f32 %v46, %v1365
  %v1423 = vmul.f32 %v47, %v1369
  %v1424 = vmul.f32 %v48, %v1373
  %v1425 = vmul.f32 %v49, %v1377
  %v1426 = vmul.f32 %v50, %v1381
  %v1427 = vmul.f32 %v51, %v1385
  %v1428 = vmul.f32 %v52, %v1389
  %v1429 = vmul.f32 %v53, %v1393
  %v1430 = vmul.f32 %v54, %v1397
  %1463 = vrot.lane.b32.xlu0 %v1399, 2
  %v1464 = vpop.permute.xlu0 %1463
  %1465 = vrot.lane.b32.xlu0 %v1400, 2
  %v1466 = vpop.permute.xlu0 %1465
  %1467 = vrot.lane.b32.xlu0 %v1401, 2
  %v1468 = vpop.permute.xlu0 %1467
  %1469 = vrot.lane.b32.xlu0 %v1402, 2
  %v1470 = vpop.permute.xlu0 %1469
  %1471 = vrot.lane.b32.xlu0 %v1403, 2
  %v1472 = vpop.permute.xlu0 %1471
  %1473 = vrot.lane.b32.xlu0 %v1404, 2
  %v1474 = vpop.permute.xlu0 %1473
  %1475 = vrot.lane.b32.xlu0 %v1405, 2
  %v1476 = vpop.permute.xlu0 %1475
  %1477 = vrot.lane.b32.xlu0 %v1406, 2
  %v1478 = vpop.permute.xlu0 %1477
  %1479 = vrot.lane.b32.xlu0 %v1407, 2
  %v1480 = vpop.permute.xlu0 %1479
  %1481 = vrot.lane.b32.xlu0 %v1408, 2
  %v1482 = vpop.permute.xlu0 %1481
  %1483 = vrot.lane.b32.xlu0 %v1409, 2
  %v1484 = vpop.permute.xlu0 %1483
  %1485 = vrot.lane.b32.xlu0 %v1410, 2
  %v1486 = vpop.permute.xlu0 %1485
  %1487 = vrot.lane.b32.xlu0 %v1411, 2
  %v1488 = vpop.permute.xlu0 %1487
  %1489 = vrot.lane.b32.xlu0 %v1412, 2
  %v1490 = vpop.permute.xlu0 %1489
  %1491 = vrot.lane.b32.xlu0 %v1413, 2
  %v1492 = vpop.permute.xlu0 %1491
  %1493 = vrot.lane.b32.xlu0 %v1414, 2
  %v1494 = vpop.permute.xlu0 %1493
  %1495 = vrot.lane.b32.xlu0 %v1415, 2
  %v1496 = vpop.permute.xlu0 %1495
  %1497 = vrot.lane.b32.xlu0 %v1416, 2
  %v1498 = vpop.permute.xlu0 %1497
  %1499 = vrot.lane.b32.xlu0 %v1417, 2
  %v1500 = vpop.permute.xlu0 %1499
  %1501 = vrot.lane.b32.xlu0 %v1418, 2
  %v1502 = vpop.permute.xlu0 %1501
  %1503 = vrot.lane.b32.xlu0 %v1419, 2
  %v1504 = vpop.permute.xlu0 %1503
  %1505 = vrot.lane.b32.xlu0 %v1420, 2
  %v1506 = vpop.permute.xlu0 %1505
  %1507 = vrot.lane.b32.xlu0 %v1421, 2
  %v1508 = vpop.permute.xlu0 %1507
  %1509 = vrot.lane.b32.xlu0 %v1422, 2
  %v1510 = vpop.permute.xlu0 %1509
  %1511 = vrot.lane.b32.xlu0 %v1423, 2
  %v1512 = vpop.permute.xlu0 %1511
  %1513 = vrot.lane.b32.xlu0 %v1424, 2
  %v1514 = vpop.permute.xlu0 %1513
  %1515 = vrot.lane.b32.xlu0 %v1425, 2
  %v1516 = vpop.permute.xlu0 %1515
  %1517 = vrot.lane.b32.xlu0 %v1426, 2
  %v1518 = vpop.permute.xlu0 %1517
  %1519 = vrot.lane.b32.xlu0 %v1427, 2
  %v1520 = vpop.permute.xlu0 %1519
  %1521 = vrot.lane.b32.xlu0 %v1428, 2
  %v1522 = vpop.permute.xlu0 %1521
  %1523 = vrot.lane.b32.xlu0 %v1429, 2
  %v1524 = vpop.permute.xlu0 %1523
  %1525 = vrot.lane.b32.xlu0 %v1430, 2
  %v1526 = vpop.permute.xlu0 %1525
  %v1559 = vadd.f32 %v1079, %v1464
  %v1560 = vadd.f32 %v1080, %v1466
  %v1561 = vadd.f32 %v1081, %v1468
  %v1562 = vadd.f32 %v1082, %v1470
  %v1563 = vadd.f32 %v1083, %v1472
  %v1564 = vadd.f32 %v1084, %v1474
  %v1565 = vadd.f32 %v1085, %v1476
  %v1566 = vadd.f32 %v1086, %v1478
  %v1567 = vadd.f32 %v1087, %v1480
  %v1568 = vadd.f32 %v1088, %v1482
  %v1569 = vadd.f32 %v1089, %v1484
  %v1570 = vadd.f32 %v1090, %v1486
  %v1571 = vadd.f32 %v1091, %v1488
  %v1572 = vadd.f32 %v1092, %v1490
  %v1573 = vadd.f32 %v1093, %v1492
  %v1574 = vadd.f32 %v1094, %v1494
  %v1575 = vadd.f32 %v1095, %v1496
  %v1576 = vadd.f32 %v1096, %v1498
  %v1577 = vadd.f32 %v1097, %v1500
  %v1578 = vadd.f32 %v1098, %v1502
  %v1579 = vadd.f32 %v1099, %v1504
  %v1580 = vadd.f32 %v1100, %v1506
  %v1581 = vadd.f32 %v1101, %v1508
  %v1582 = vadd.f32 %v1102, %v1510
  %v1583 = vadd.f32 %v1103, %v1512
  %v1584 = vadd.f32 %v1104, %v1514
  %v1585 = vadd.f32 %v1105, %v1516
  %v1586 = vadd.f32 %v1106, %v1518
  %v1587 = vadd.f32 %v1107, %v1520
  %v1588 = vadd.f32 %v1108, %v1522
  %v1589 = vadd.f32 %v1109, %v1524
  %v1590 = vadd.f32 %v1110, %v1526
  %1591 = vset.pattern.permute.xlu0 1
  %1592 = vperm.xlu0 %1591, %v1146
  %v1593 = vpop.permute.xlu0 %1592
  %1595 = vset.pattern.permute.xlu0 1
  %1596 = vperm.xlu0 %1595, %v1150
  %v1597 = vpop.permute.xlu0 %1596
  %1599 = vset.pattern.permute.xlu0 1
  %1600 = vperm.xlu0 %1599, %v1154
  %v1601 = vpop.permute.xlu0 %1600
  %1603 = vset.pattern.permute.xlu0 1
  %1604 = vperm.xlu0 %1603, %v1158
  %v1605 = vpop.permute.xlu0 %1604
  %1607 = vset.pattern.permute.xlu0 1
  %1608 = vperm.xlu0 %1607, %v1162
  %v1609 = vpop.permute.xlu0 %1608
  %1611 = vset.pattern.permute.xlu0 1
  %1612 = vperm.xlu0 %1611, %v1166
  %v1613 = vpop.permute.xlu0 %1612
  %1615 = vset.pattern.permute.xlu0 1
  %1616 = vperm.xlu0 %1615, %v1170
  %v1617 = vpop.permute.xlu0 %1616
  %1619 = vset.pattern.permute.xlu0 1
  %1620 = vperm.xlu0 %1619, %v1174
  %v1621 = vpop.permute.xlu0 %1620
  %1623 = vset.pattern.permute.xlu0 1
  %1624 = vperm.xlu0 %1623, %v1178
  %v1625 = vpop.permute.xlu0 %1624
  %1627 = vset.pattern.permute.xlu0 1
  %1628 = vperm.xlu0 %1627, %v1182
  %v1629 = vpop.permute.xlu0 %1628
  %1631 = vset.pattern.permute.xlu0 1
  %1632 = vperm.xlu0 %1631, %v1186
  %v1633 = vpop.permute.xlu0 %1632
  %1635 = vset.pattern.permute.xlu0 1
  %1636 = vperm.xlu0 %1635, %v1190
  %v1637 = vpop.permute.xlu0 %1636
  %1639 = vset.pattern.permute.xlu0 1
  %1640 = vperm.xlu0 %1639, %v1194
  %v1641 = vpop.permute.xlu0 %1640
  %1643 = vset.pattern.permute.xlu0 1
  %1644 = vperm.xlu0 %1643, %v1198
  %v1645 = vpop.permute.xlu0 %1644
  %1647 = vset.pattern.permute.xlu0 1
  %1648 = vperm.xlu0 %1647, %v1202
  %v1649 = vpop.permute.xlu0 %1648
  %1651 = vset.pattern.permute.xlu0 1
  %1652 = vperm.xlu0 %1651, %v1206
  %v1653 = vpop.permute.xlu0 %1652
  %1655 = vset.pattern.permute.xlu0 1
  %1656 = vperm.xlu0 %1655, %v1210
  %v1657 = vpop.permute.xlu0 %1656
  %1659 = vset.pattern.permute.xlu0 1
  %1660 = vperm.xlu0 %1659, %v1214
  %v1661 = vpop.permute.xlu0 %1660
  %1663 = vset.pattern.permute.xlu0 1
  %1664 = vperm.xlu0 %1663, %v1218
  %v1665 = vpop.permute.xlu0 %1664
  %1667 = vset.pattern.permute.xlu0 1
  %1668 = vperm.xlu0 %1667, %v1222
  %v1669 = vpop.permute.xlu0 %1668
  %1671 = vset.pattern.permute.xlu0 1
  %1672 = vperm.xlu0 %1671, %v1226
  %v1673 = vpop.permute.xlu0 %1672
  %1675 = vset.pattern.permute.xlu0 1
  %1676 = vperm.xlu0 %1675, %v1230
  %v1677 = vpop.permute.xlu0 %1676
  %1679 = vset.pattern.permute.xlu0 1
  %1680 = vperm.xlu0 %1679, %v1234
  %v1681 = vpop.permute.xlu0 %1680
  %1683 = vset.pattern.permute.xlu0 1
  %1684 = vperm.xlu0 %1683, %v1238
  %v1685 = vpop.permute.xlu0 %1684
  %1687 = vset.pattern.permute.xlu0 1
  %1688 = vperm.xlu0 %1687, %v1242
  %v1689 = vpop.permute.xlu0 %1688
  %1691 = vset.pattern.permute.xlu0 1
  %1692 = vperm.xlu0 %1691, %v1246
  %v1693 = vpop.permute.xlu0 %1692
  %1695 = vset.pattern.permute.xlu0 1
  %1696 = vperm.xlu0 %1695, %v1250
  %v1697 = vpop.permute.xlu0 %1696
  %1699 = vset.pattern.permute.xlu0 1
  %1700 = vperm.xlu0 %1699, %v1254
  %v1701 = vpop.permute.xlu0 %1700
  %1703 = vset.pattern.permute.xlu0 1
  %1704 = vperm.xlu0 %1703, %v1258
  %v1705 = vpop.permute.xlu0 %1704
  %1707 = vset.pattern.permute.xlu0 1
  %1708 = vperm.xlu0 %1707, %v1262
  %v1709 = vpop.permute.xlu0 %1708
  %1711 = vset.pattern.permute.xlu0 1
  %1712 = vperm.xlu0 %1711, %v1266
  %v1713 = vpop.permute.xlu0 %1712
  %1715 = vset.pattern.permute.xlu0 1
  %1716 = vperm.xlu0 %1715, %v1270
  %v1717 = vpop.permute.xlu0 %1716
  %v1719 = vmul.f32 %v23, %v1593
  %v1720 = vmul.f32 %v24, %v1597
  %v1721 = vmul.f32 %v25, %v1601
  %v1722 = vmul.f32 %v26, %v1605
  %v1723 = vmul.f32 %v27, %v1609
  %v1724 = vmul.f32 %v28, %v1613
  %v1725 = vmul.f32 %v29, %v1617
  %v1726 = vmul.f32 %v30, %v1621
  %v1727 = vmul.f32 %v31, %v1625
  %v1728 = vmul.f32 %v32, %v1629
  %v1729 = vmul.f32 %v33, %v1633
  %v1730 = vmul.f32 %v34, %v1637
  %v1731 = vmul.f32 %v35, %v1641
  %v1732 = vmul.f32 %v36, %v1645
  %v1733 = vmul.f32 %v37, %v1649
  %v1734 = vmul.f32 %v38, %v1653
  %v1735 = vmul.f32 %v39, %v1657
  %v1736 = vmul.f32 %v40, %v1661
  %v1737 = vmul.f32 %v41, %v1665
  %v1738 = vmul.f32 %v42, %v1669
  %v1739 = vmul.f32 %v43, %v1673
  %v1740 = vmul.f32 %v44, %v1677
  %v1741 = vmul.f32 %v45, %v1681
  %v1742 = vmul.f32 %v46, %v1685
  %v1743 = vmul.f32 %v47, %v1689
  %v1744 = vmul.f32 %v48, %v1693
  %v1745 = vmul.f32 %v49, %v1697
  %v1746 = vmul.f32 %v50, %v1701
  %v1747 = vmul.f32 %v51, %v1705
  %v1748 = vmul.f32 %v52, %v1709
  %v1749 = vmul.f32 %v53, %v1713
  %v1750 = vmul.f32 %v54, %v1717
  %1783 = vrot.lane.b32.xlu0 %v1719, 1
  %v1784 = vpop.permute.xlu0 %1783
  %1785 = vrot.lane.b32.xlu0 %v1720, 1
  %v1786 = vpop.permute.xlu0 %1785
  %1787 = vrot.lane.b32.xlu0 %v1721, 1
  %v1788 = vpop.permute.xlu0 %1787
  %1789 = vrot.lane.b32.xlu0 %v1722, 1
  %v1790 = vpop.permute.xlu0 %1789
  %1791 = vrot.lane.b32.xlu0 %v1723, 1
  %v1792 = vpop.permute.xlu0 %1791
  %1793 = vrot.lane.b32.xlu0 %v1724, 1
  %v1794 = vpop.permute.xlu0 %1793
  %1795 = vrot.lane.b32.xlu0 %v1725, 1
  %v1796 = vpop.permute.xlu0 %1795
  %1797 = vrot.lane.b32.xlu0 %v1726, 1
  %v1798 = vpop.permute.xlu0 %1797
  %1799 = vrot.lane.b32.xlu0 %v1727, 1
  %v1800 = vpop.permute.xlu0 %1799
  %1801 = vrot.lane.b32.xlu0 %v1728, 1
  %v1802 = vpop.permute.xlu0 %1801
  %1803 = vrot.lane.b32.xlu0 %v1729, 1
  %v1804 = vpop.permute.xlu0 %1803
  %1805 = vrot.lane.b32.xlu0 %v1730, 1
  %v1806 = vpop.permute.xlu0 %1805
  %1807 = vrot.lane.b32.xlu0 %v1731, 1
  %v1808 = vpop.permute.xlu0 %1807
  %1809 = vrot.lane.b32.xlu0 %v1732, 1
  %v1810 = vpop.permute.xlu0 %1809
  %1811 = vrot.lane.b32.xlu0 %v1733, 1
  %v1812 = vpop.permute.xlu0 %1811
  %1813 = vrot.lane.b32.xlu0 %v1734, 1
  %v1814 = vpop.permute.xlu0 %1813
  %1815 = vrot.lane.b32.xlu0 %v1735, 1
  %v1816 = vpop.permute.xlu0 %1815
  %1817 = vrot.lane.b32.xlu0 %v1736, 1
  %v1818 = vpop.permute.xlu0 %1817
  %1819 = vrot.lane.b32.xlu0 %v1737, 1
  %v1820 = vpop.permute.xlu0 %1819
  %1821 = vrot.lane.b32.xlu0 %v1738, 1
  %v1822 = vpop.permute.xlu0 %1821
  %1823 = vrot.lane.b32.xlu0 %v1739, 1
  %v1824 = vpop.permute.xlu0 %1823
  %1825 = vrot.lane.b32.xlu0 %v1740, 1
  %v1826 = vpop.permute.xlu0 %1825
  %1827 = vrot.lane.b32.xlu0 %v1741, 1
  %v1828 = vpop.permute.xlu0 %1827
  %1829 = vrot.lane.b32.xlu0 %v1742, 1
  %v1830 = vpop.permute.xlu0 %1829
  %1831 = vrot.lane.b32.xlu0 %v1743, 1
  %v1832 = vpop.permute.xlu0 %1831
  %1833 = vrot.lane.b32.xlu0 %v1744, 1
  %v1834 = vpop.permute.xlu0 %1833
  %1835 = vrot.lane.b32.xlu0 %v1745, 1
  %v1836 = vpop.permute.xlu0 %1835
  %1837 = vrot.lane.b32.xlu0 %v1746, 1
  %v1838 = vpop.permute.xlu0 %1837
  %1839 = vrot.lane.b32.xlu0 %v1747, 1
  %v1840 = vpop.permute.xlu0 %1839
  %1841 = vrot.lane.b32.xlu0 %v1748, 1
  %v1842 = vpop.permute.xlu0 %1841
  %1843 = vrot.lane.b32.xlu0 %v1749, 1
  %v1844 = vpop.permute.xlu0 %1843
  %1845 = vrot.lane.b32.xlu0 %v1750, 1
  %v1846 = vpop.permute.xlu0 %1845
  %v1879 = vadd.f32 %v1559, %v1784
  %v1880 = vadd.f32 %v1560, %v1786
  %v1881 = vadd.f32 %v1561, %v1788
  %v1882 = vadd.f32 %v1562, %v1790
  %v1883 = vadd.f32 %v1563, %v1792
  %v1884 = vadd.f32 %v1564, %v1794
  %v1885 = vadd.f32 %v1565, %v1796
  %v1886 = vadd.f32 %v1566, %v1798
  %v1887 = vadd.f32 %v1567, %v1800
  %v1888 = vadd.f32 %v1568, %v1802
  %v1889 = vadd.f32 %v1569, %v1804
  %v1890 = vadd.f32 %v1570, %v1806
  %v1891 = vadd.f32 %v1571, %v1808
  %v1892 = vadd.f32 %v1572, %v1810
  %v1893 = vadd.f32 %v1573, %v1812
  %v1894 = vadd.f32 %v1574, %v1814
  %v1895 = vadd.f32 %v1575, %v1816
  %v1896 = vadd.f32 %v1576, %v1818
  %v1897 = vadd.f32 %v1577, %v1820
  %v1898 = vadd.f32 %v1578, %v1822
  %v1899 = vadd.f32 %v1579, %v1824
  %v1900 = vadd.f32 %v1580, %v1826
  %v1901 = vadd.f32 %v1581, %v1828
  %v1902 = vadd.f32 %v1582, %v1830
  %v1903 = vadd.f32 %v1583, %v1832
  %v1904 = vadd.f32 %v1584, %v1834
  %v1905 = vadd.f32 %v1585, %v1836
  %v1906 = vadd.f32 %v1586, %v1838
  %v1907 = vadd.f32 %v1587, %v1840
  %v1908 = vadd.f32 %v1588, %v1842
  %v1909 = vadd.f32 %v1589, %v1844
  %v1910 = vadd.f32 %v1590, %v1846
  %1911 = vset.pattern.permute.xlu0 2
  %1912 = vperm.xlu0 %1911, %v1146
  %v1913 = vpop.permute.xlu0 %1912
  %1915 = vset.pattern.permute.xlu0 2
  %1916 = vperm.xlu0 %1915, %v1150
  %v1917 = vpop.permute.xlu0 %1916
  %1919 = vset.pattern.permute.xlu0 2
  %1920 = vperm.xlu0 %1919, %v1154
  %v1921 = vpop.permute.xlu0 %1920
  %1923 = vset.pattern.permute.xlu0 2
  %1924 = vperm.xlu0 %1923, %v1158
  %v1925 = vpop.permute.xlu0 %1924
  %1927 = vset.pattern.permute.xlu0 2
  %1928 = vperm.xlu0 %1927, %v1162
  %v1929 = vpop.permute.xlu0 %1928
  %1931 = vset.pattern.permute.xlu0 2
  %1932 = vperm.xlu0 %1931, %v1166
  %v1933 = vpop.permute.xlu0 %1932
  %1935 = vset.pattern.permute.xlu0 2
  %1936 = vperm.xlu0 %1935, %v1170
  %v1937 = vpop.permute.xlu0 %1936
  %1939 = vset.pattern.permute.xlu0 2
  %1940 = vperm.xlu0 %1939, %v1174
  %v1941 = vpop.permute.xlu0 %1940
  %1943 = vset.pattern.permute.xlu0 2
  %1944 = vperm.xlu0 %1943, %v1178
  %v1945 = vpop.permute.xlu0 %1944
  %1947 = vset.pattern.permute.xlu0 2
  %1948 = vperm.xlu0 %1947, %v1182
  %v1949 = vpop.permute.xlu0 %1948
  %1951 = vset.pattern.permute.xlu0 2
  %1952 = vperm.xlu0 %1951, %v1186
  %v1953 = vpop.permute.xlu0 %1952
  %1955 = vset.pattern.permute.xlu0 2
  %1956 = vperm.xlu0 %1955, %v1190
  %v1957 = vpop.permute.xlu0 %1956
  %1959 = vset.pattern.permute.xlu0 2
  %1960 = vperm.xlu0 %1959, %v1194
  %v1961 = vpop.permute.xlu0 %1960
  %1963 = vset.pattern.permute.xlu0 2
  %1964 = vperm.xlu0 %1963, %v1198
  %v1965 = vpop.permute.xlu0 %1964
  %1967 = vset.pattern.permute.xlu0 2
  %1968 = vperm.xlu0 %1967, %v1202
  %v1969 = vpop.permute.xlu0 %1968
  %1971 = vset.pattern.permute.xlu0 2
  %1972 = vperm.xlu0 %1971, %v1206
  %v1973 = vpop.permute.xlu0 %1972
  %1975 = vset.pattern.permute.xlu0 2
  %1976 = vperm.xlu0 %1975, %v1210
  %v1977 = vpop.permute.xlu0 %1976
  %1979 = vset.pattern.permute.xlu0 2
  %1980 = vperm.xlu0 %1979, %v1214
  %v1981 = vpop.permute.xlu0 %1980
  %1983 = vset.pattern.permute.xlu0 2
  %1984 = vperm.xlu0 %1983, %v1218
  %v1985 = vpop.permute.xlu0 %1984
  %1987 = vset.pattern.permute.xlu0 2
  %1988 = vperm.xlu0 %1987, %v1222
  %v1989 = vpop.permute.xlu0 %1988
  %1991 = vset.pattern.permute.xlu0 2
  %1992 = vperm.xlu0 %1991, %v1226
  %v1993 = vpop.permute.xlu0 %1992
  %1995 = vset.pattern.permute.xlu0 2
  %1996 = vperm.xlu0 %1995, %v1230
  %v1997 = vpop.permute.xlu0 %1996
  %1999 = vset.pattern.permute.xlu0 2
  %2000 = vperm.xlu0 %1999, %v1234
  %v2001 = vpop.permute.xlu0 %2000
  %2003 = vset.pattern.permute.xlu0 2
  %2004 = vperm.xlu0 %2003, %v1238
  %v2005 = vpop.permute.xlu0 %2004
  %2007 = vset.pattern.permute.xlu0 2
  %2008 = vperm.xlu0 %2007, %v1242
  %v2009 = vpop.permute.xlu0 %2008
  %2011 = vset.pattern.permute.xlu0 2
  %2012 = vperm.xlu0 %2011, %v1246
  %v2013 = vpop.permute.xlu0 %2012
  %2015 = vset.pattern.permute.xlu0 2
  %2016 = vperm.xlu0 %2015, %v1250
  %v2017 = vpop.permute.xlu0 %2016
  %2019 = vset.pattern.permute.xlu0 2
  %2020 = vperm.xlu0 %2019, %v1254
  %v2021 = vpop.permute.xlu0 %2020
  %2023 = vset.pattern.permute.xlu0 2
  %2024 = vperm.xlu0 %2023, %v1258
  %v2025 = vpop.permute.xlu0 %2024
  %2027 = vset.pattern.permute.xlu0 2
  %2028 = vperm.xlu0 %2027, %v1262
  %v2029 = vpop.permute.xlu0 %2028
  %2031 = vset.pattern.permute.xlu0 2
  %2032 = vperm.xlu0 %2031, %v1266
  %v2033 = vpop.permute.xlu0 %2032
  %2035 = vset.pattern.permute.xlu0 2
  %2036 = vperm.xlu0 %2035, %v1270
  %v2037 = vpop.permute.xlu0 %2036
  %v2039 = vmul.f32 %v23, %v1913
  %v2040 = vmul.f32 %v24, %v1917
  %v2041 = vmul.f32 %v25, %v1921
  %v2042 = vmul.f32 %v26, %v1925
  %v2043 = vmul.f32 %v27, %v1929
  %v2044 = vmul.f32 %v28, %v1933
  %v2045 = vmul.f32 %v29, %v1937
  %v2046 = vmul.f32 %v30, %v1941
  %v2047 = vmul.f32 %v31, %v1945
  %v2048 = vmul.f32 %v32, %v1949
  %v2049 = vmul.f32 %v33, %v1953
  %v2050 = vmul.f32 %v34, %v1957
  %v2051 = vmul.f32 %v35, %v1961
  %v2052 = vmul.f32 %v36, %v1965
  %v2053 = vmul.f32 %v37, %v1969
  %v2054 = vmul.f32 %v38, %v1973
  %v2055 = vmul.f32 %v39, %v1977
  %v2056 = vmul.f32 %v40, %v1981
  %v2057 = vmul.f32 %v41, %v1985
  %v2058 = vmul.f32 %v42, %v1989
  %v2059 = vmul.f32 %v43, %v1993
  %v2060 = vmul.f32 %v44, %v1997
  %v2061 = vmul.f32 %v45, %v2001
  %v2062 = vmul.f32 %v46, %v2005
  %v2063 = vmul.f32 %v47, %v2009
  %v2064 = vmul.f32 %v48, %v2013
  %v2065 = vmul.f32 %v49, %v2017
  %v2066 = vmul.f32 %v50, %v2021
  %v2067 = vmul.f32 %v51, %v2025
  %v2068 = vmul.f32 %v52, %v2029
  %v2069 = vmul.f32 %v53, %v2033
  %v2070 = vmul.f32 %v54, %v2037
  %v2071 = vadd.f32 %v1879, %v2039
  %v2072 = vadd.f32 %v1880, %v2040
  %v2073 = vadd.f32 %v1881, %v2041
  %v2074 = vadd.f32 %v1882, %v2042
  %v2075 = vadd.f32 %v1883, %v2043
  %v2076 = vadd.f32 %v1884, %v2044
  %v2077 = vadd.f32 %v1885, %v2045
  %v2078 = vadd.f32 %v1886, %v2046
  %v2079 = vadd.f32 %v1887, %v2047
  %v2080 = vadd.f32 %v1888, %v2048
  %v2081 = vadd.f32 %v1889, %v2049
  %v2082 = vadd.f32 %v1890, %v2050
  %v2083 = vadd.f32 %v1891, %v2051
  %v2084 = vadd.f32 %v1892, %v2052
  %v2085 = vadd.f32 %v1893, %v2053
  %v2086 = vadd.f32 %v1894, %v2054
  %v2087 = vadd.f32 %v1895, %v2055
  %v2088 = vadd.f32 %v1896, %v2056
  %v2089 = vadd.f32 %v1897, %v2057
  %v2090 = vadd.f32 %v1898, %v2058
  %v2091 = vadd.f32 %v1899, %v2059
  %v2092 = vadd.f32 %v1900, %v2060
  %v2093 = vadd.f32 %v1901, %v2061
  %v2094 = vadd.f32 %v1902, %v2062
  %v2095 = vadd.f32 %v1903, %v2063
  %v2096 = vadd.f32 %v1904, %v2064
  %v2097 = vadd.f32 %v1905, %v2065
  %v2098 = vadd.f32 %v1906, %v2066
  %v2099 = vadd.f32 %v1907, %v2067
  %v2100 = vadd.f32 %v1908, %v2068
  %v2101 = vadd.f32 %v1909, %v2069
  %v2102 = vadd.f32 %v1910, %v2070
  %2103 = vset.pattern.permute.xlu0 3
  %2104 = vperm.xlu0 %2103, %v1146
  %v2105 = vpop.permute.xlu0 %2104
  %2107 = vset.pattern.permute.xlu0 3
  %2108 = vperm.xlu0 %2107, %v1150
  %v2109 = vpop.permute.xlu0 %2108
  %2111 = vset.pattern.permute.xlu0 3
  %2112 = vperm.xlu0 %2111, %v1154
  %v2113 = vpop.permute.xlu0 %2112
  %2115 = vset.pattern.permute.xlu0 3
  %2116 = vperm.xlu0 %2115, %v1158
  %v2117 = vpop.permute.xlu0 %2116
  %2119 = vset.pattern.permute.xlu0 3
  %2120 = vperm.xlu0 %2119, %v1162
  %v2121 = vpop.permute.xlu0 %2120
  %2123 = vset.pattern.permute.xlu0 3
  %2124 = vperm.xlu0 %2123, %v1166
  %v2125 = vpop.permute.xlu0 %2124
  %2127 = vset.pattern.permute.xlu0 3
  %2128 = vperm.xlu0 %2127, %v1170
  %v2129 = vpop.permute.xlu0 %2128
  %2131 = vset.pattern.permute.xlu0 3
  %2132 = vperm.xlu0 %2131, %v1174
  %v2133 = vpop.permute.xlu0 %2132
  %2135 = vset.pattern.permute.xlu0 3
  %2136 = vperm.xlu0 %2135, %v1178
  %v2137 = vpop.permute.xlu0 %2136
  %2139 = vset.pattern.permute.xlu0 3
  %2140 = vperm.xlu0 %2139, %v1182
  %v2141 = vpop.permute.xlu0 %2140
  %2143 = vset.pattern.permute.xlu0 3
  %2144 = vperm.xlu0 %2143, %v1186
  %v2145 = vpop.permute.xlu0 %2144
  %2147 = vset.pattern.permute.xlu0 3
  %2148 = vperm.xlu0 %2147, %v1190
  %v2149 = vpop.permute.xlu0 %2148
  %2151 = vset.pattern.permute.xlu0 3
  %2152 = vperm.xlu0 %2151, %v1194
  %v2153 = vpop.permute.xlu0 %2152
  %2155 = vset.pattern.permute.xlu0 3
  %2156 = vperm.xlu0 %2155, %v1198
  %v2157 = vpop.permute.xlu0 %2156
  %2159 = vset.pattern.permute.xlu0 3
  %2160 = vperm.xlu0 %2159, %v1202
  %v2161 = vpop.permute.xlu0 %2160
  %2163 = vset.pattern.permute.xlu0 3
  %2164 = vperm.xlu0 %2163, %v1206
  %v2165 = vpop.permute.xlu0 %2164
  %2167 = vset.pattern.permute.xlu0 3
  %2168 = vperm.xlu0 %2167, %v1210
  %v2169 = vpop.permute.xlu0 %2168
  %2171 = vset.pattern.permute.xlu0 3
  %2172 = vperm.xlu0 %2171, %v1214
  %v2173 = vpop.permute.xlu0 %2172
  %2175 = vset.pattern.permute.xlu0 3
  %2176 = vperm.xlu0 %2175, %v1218
  %v2177 = vpop.permute.xlu0 %2176
  %2179 = vset.pattern.permute.xlu0 3
  %2180 = vperm.xlu0 %2179, %v1222
  %v2181 = vpop.permute.xlu0 %2180
  %2183 = vset.pattern.permute.xlu0 3
  %2184 = vperm.xlu0 %2183, %v1226
  %v2185 = vpop.permute.xlu0 %2184
  %2187 = vset.pattern.permute.xlu0 3
  %2188 = vperm.xlu0 %2187, %v1230
  %v2189 = vpop.permute.xlu0 %2188
  %2191 = vset.pattern.permute.xlu0 3
  %2192 = vperm.xlu0 %2191, %v1234
  %v2193 = vpop.permute.xlu0 %2192
  %2195 = vset.pattern.permute.xlu0 3
  %2196 = vperm.xlu0 %2195, %v1238
  %v2197 = vpop.permute.xlu0 %2196
  %2199 = vset.pattern.permute.xlu0 3
  %2200 = vperm.xlu0 %2199, %v1242
  %v2201 = vpop.permute.xlu0 %2200
  %2203 = vset.pattern.permute.xlu0 3
  %2204 = vperm.xlu0 %2203, %v1246
  %v2205 = vpop.permute.xlu0 %2204
  %2207 = vset.pattern.permute.xlu0 3
  %2208 = vperm.xlu0 %2207, %v1250
  %v2209 = vpop.permute.xlu0 %2208
  %2211 = vset.pattern.permute.xlu0 3
  %2212 = vperm.xlu0 %2211, %v1254
  %v2213 = vpop.permute.xlu0 %2212
  %2215 = vset.pattern.permute.xlu0 3
  %2216 = vperm.xlu0 %2215, %v1258
  %v2217 = vpop.permute.xlu0 %2216
  %2219 = vset.pattern.permute.xlu0 3
  %2220 = vperm.xlu0 %2219, %v1262
  %v2221 = vpop.permute.xlu0 %2220
  %2223 = vset.pattern.permute.xlu0 3
  %2224 = vperm.xlu0 %2223, %v1266
  %v2225 = vpop.permute.xlu0 %2224
  %2227 = vset.pattern.permute.xlu0 3
  %2228 = vperm.xlu0 %2227, %v1270
  %v2229 = vpop.permute.xlu0 %2228
  %v2231 = vmul.f32 %v23, %v2105
  %v2232 = vmul.f32 %v24, %v2109
  %v2233 = vmul.f32 %v25, %v2113
  %v2234 = vmul.f32 %v26, %v2117
  %v2235 = vmul.f32 %v27, %v2121
  %v2236 = vmul.f32 %v28, %v2125
  %v2237 = vmul.f32 %v29, %v2129
  %v2238 = vmul.f32 %v30, %v2133
  %v2239 = vmul.f32 %v31, %v2137
  %v2240 = vmul.f32 %v32, %v2141
  %v2241 = vmul.f32 %v33, %v2145
  %v2242 = vmul.f32 %v34, %v2149
  %v2243 = vmul.f32 %v35, %v2153
  %v2244 = vmul.f32 %v36, %v2157
  %v2245 = vmul.f32 %v37, %v2161
  %v2246 = vmul.f32 %v38, %v2165
  %v2247 = vmul.f32 %v39, %v2169
  %v2248 = vmul.f32 %v40, %v2173
  %v2249 = vmul.f32 %v41, %v2177
  %v2250 = vmul.f32 %v42, %v2181
  %v2251 = vmul.f32 %v43, %v2185
  %v2252 = vmul.f32 %v44, %v2189
  %v2253 = vmul.f32 %v45, %v2193
  %v2254 = vmul.f32 %v46, %v2197
  %v2255 = vmul.f32 %v47, %v2201
  %v2256 = vmul.f32 %v48, %v2205
  %v2257 = vmul.f32 %v49, %v2209
  %v2258 = vmul.f32 %v50, %v2213
  %v2259 = vmul.f32 %v51, %v2217
  %v2260 = vmul.f32 %v52, %v2221
  %v2261 = vmul.f32 %v53, %v2225
  %v2262 = vmul.f32 %v54, %v2229
  %2295 = vrot.lane.b32.xlu0 %v2231, 127
  %v2296 = vpop.permute.xlu0 %2295
  %2297 = vrot.lane.b32.xlu0 %v2232, 127
  %v2298 = vpop.permute.xlu0 %2297
  %2299 = vrot.lane.b32.xlu0 %v2233, 127
  %v2300 = vpop.permute.xlu0 %2299
  %2301 = vrot.lane.b32.xlu0 %v2234, 127
  %v2302 = vpop.permute.xlu0 %2301
  %2303 = vrot.lane.b32.xlu0 %v2235, 127
  %v2304 = vpop.permute.xlu0 %2303
  %2305 = vrot.lane.b32.xlu0 %v2236, 127
  %v2306 = vpop.permute.xlu0 %2305
  %2307 = vrot.lane.b32.xlu0 %v2237, 127
  %v2308 = vpop.permute.xlu0 %2307
  %2309 = vrot.lane.b32.xlu0 %v2238, 127
  %v2310 = vpop.permute.xlu0 %2309
  %2311 = vrot.lane.b32.xlu0 %v2239, 127
  %v2312 = vpop.permute.xlu0 %2311
  %2313 = vrot.lane.b32.xlu0 %v2240, 127
  %v2314 = vpop.permute.xlu0 %2313
  %2315 = vrot.lane.b32.xlu0 %v2241, 127
  %v2316 = vpop.permute.xlu0 %2315
  %2317 = vrot.lane.b32.xlu0 %v2242, 127
  %v2318 = vpop.permute.xlu0 %2317
  %2319 = vrot.lane.b32.xlu0 %v2243, 127
  %v2320 = vpop.permute.xlu0 %2319
  %2321 = vrot.lane.b32.xlu0 %v2244, 127
  %v2322 = vpop.permute.xlu0 %2321
  %2323 = vrot.lane.b32.xlu0 %v2245, 127
  %v2324 = vpop.permute.xlu0 %2323
  %2325 = vrot.lane.b32.xlu0 %v2246, 127
  %v2326 = vpop.permute.xlu0 %2325
  %2327 = vrot.lane.b32.xlu0 %v2247, 127
  %v2328 = vpop.permute.xlu0 %2327
  %2329 = vrot.lane.b32.xlu0 %v2248, 127
  %v2330 = vpop.permute.xlu0 %2329
  %2331 = vrot.lane.b32.xlu0 %v2249, 127
  %v2332 = vpop.permute.xlu0 %2331
  %2333 = vrot.lane.b32.xlu0 %v2250, 127
  %v2334 = vpop.permute.xlu0 %2333
  %2335 = vrot.lane.b32.xlu0 %v2251, 127
  %v2336 = vpop.permute.xlu0 %2335
  %2337 = vrot.lane.b32.xlu0 %v2252, 127
  %v2338 = vpop.permute.xlu0 %2337
  %2339 = vrot.lane.b32.xlu0 %v2253, 127
  %v2340 = vpop.permute.xlu0 %2339
  %2341 = vrot.lane.b32.xlu0 %v2254, 127
  %v2342 = vpop.permute.xlu0 %2341
  %2343 = vrot.lane.b32.xlu0 %v2255, 127
  %v2344 = vpop.permute.xlu0 %2343
  %2345 = vrot.lane.b32.xlu0 %v2256, 127
  %v2346 = vpop.permute.xlu0 %2345
  %2347 = vrot.lane.b32.xlu0 %v2257, 127
  %v2348 = vpop.permute.xlu0 %2347
  %2349 = vrot.lane.b32.xlu0 %v2258, 127
  %v2350 = vpop.permute.xlu0 %2349
  %2351 = vrot.lane.b32.xlu0 %v2259, 127
  %v2352 = vpop.permute.xlu0 %2351
  %2353 = vrot.lane.b32.xlu0 %v2260, 127
  %v2354 = vpop.permute.xlu0 %2353
  %2355 = vrot.lane.b32.xlu0 %v2261, 127
  %v2356 = vpop.permute.xlu0 %2355
  %2357 = vrot.lane.b32.xlu0 %v2262, 127
  %v2358 = vpop.permute.xlu0 %2357
  %v2391 = vadd.f32 %v2071, %v2296
  %v2392 = vadd.f32 %v2072, %v2298
  %v2393 = vadd.f32 %v2073, %v2300
  %v2394 = vadd.f32 %v2074, %v2302
  %v2395 = vadd.f32 %v2075, %v2304
  %v2396 = vadd.f32 %v2076, %v2306
  %v2397 = vadd.f32 %v2077, %v2308
  %v2398 = vadd.f32 %v2078, %v2310
  %v2399 = vadd.f32 %v2079, %v2312
  %v2400 = vadd.f32 %v2080, %v2314
  %v2401 = vadd.f32 %v2081, %v2316
  %v2402 = vadd.f32 %v2082, %v2318
  %v2403 = vadd.f32 %v2083, %v2320
  %v2404 = vadd.f32 %v2084, %v2322
  %v2405 = vadd.f32 %v2085, %v2324
  %v2406 = vadd.f32 %v2086, %v2326
  %v2407 = vadd.f32 %v2087, %v2328
  %v2408 = vadd.f32 %v2088, %v2330
  %v2409 = vadd.f32 %v2089, %v2332
  %v2410 = vadd.f32 %v2090, %v2334
  %v2411 = vadd.f32 %v2091, %v2336
  %v2412 = vadd.f32 %v2092, %v2338
  %v2413 = vadd.f32 %v2093, %v2340
  %v2414 = vadd.f32 %v2094, %v2342
  %v2415 = vadd.f32 %v2095, %v2344
  %v2416 = vadd.f32 %v2096, %v2346
  %v2417 = vadd.f32 %v2097, %v2348
  %v2418 = vadd.f32 %v2098, %v2350
  %v2419 = vadd.f32 %v2099, %v2352
  %v2420 = vadd.f32 %v2100, %v2354
  %v2421 = vadd.f32 %v2101, %v2356
  %v2422 = vadd.f32 %v2102, %v2358
  %2423 = vset.pattern.permute.xlu0 4
  %2424 = vperm.xlu0 %2423, %v1146
  %v2425 = vpop.permute.xlu0 %2424
  %2427 = vset.pattern.permute.xlu0 4
  %2428 = vperm.xlu0 %2427, %v1150
  %v2429 = vpop.permute.xlu0 %2428
  %2431 = vset.pattern.permute.xlu0 4
  %2432 = vperm.xlu0 %2431, %v1154
  %v2433 = vpop.permute.xlu0 %2432
  %2435 = vset.pattern.permute.xlu0 4
  %2436 = vperm.xlu0 %2435, %v1158
  %v2437 = vpop.permute.xlu0 %2436
  %2439 = vset.pattern.permute.xlu0 4
  %2440 = vperm.xlu0 %2439, %v1162
  %v2441 = vpop.permute.xlu0 %2440
  %2443 = vset.pattern.permute.xlu0 4
  %2444 = vperm.xlu0 %2443, %v1166
  %v2445 = vpop.permute.xlu0 %2444
  %2447 = vset.pattern.permute.xlu0 4
  %2448 = vperm.xlu0 %2447, %v1170
  %v2449 = vpop.permute.xlu0 %2448
  %2451 = vset.pattern.permute.xlu0 4
  %2452 = vperm.xlu0 %2451, %v1174
  %v2453 = vpop.permute.xlu0 %2452
  %2455 = vset.pattern.permute.xlu0 4
  %2456 = vperm.xlu0 %2455, %v1178
  %v2457 = vpop.permute.xlu0 %2456
  %2459 = vset.pattern.permute.xlu0 4
  %2460 = vperm.xlu0 %2459, %v1182
  %v2461 = vpop.permute.xlu0 %2460
  %2463 = vset.pattern.permute.xlu0 4
  %2464 = vperm.xlu0 %2463, %v1186
  %v2465 = vpop.permute.xlu0 %2464
  %2467 = vset.pattern.permute.xlu0 4
  %2468 = vperm.xlu0 %2467, %v1190
  %v2469 = vpop.permute.xlu0 %2468
  %2471 = vset.pattern.permute.xlu0 4
  %2472 = vperm.xlu0 %2471, %v1194
  %v2473 = vpop.permute.xlu0 %2472
  %2475 = vset.pattern.permute.xlu0 4
  %2476 = vperm.xlu0 %2475, %v1198
  %v2477 = vpop.permute.xlu0 %2476
  %2479 = vset.pattern.permute.xlu0 4
  %2480 = vperm.xlu0 %2479, %v1202
  %v2481 = vpop.permute.xlu0 %2480
  %2483 = vset.pattern.permute.xlu0 4
  %2484 = vperm.xlu0 %2483, %v1206
  %v2485 = vpop.permute.xlu0 %2484
  %2487 = vset.pattern.permute.xlu0 4
  %2488 = vperm.xlu0 %2487, %v1210
  %v2489 = vpop.permute.xlu0 %2488
  %2491 = vset.pattern.permute.xlu0 4
  %2492 = vperm.xlu0 %2491, %v1214
  %v2493 = vpop.permute.xlu0 %2492
  %2495 = vset.pattern.permute.xlu0 4
  %2496 = vperm.xlu0 %2495, %v1218
  %v2497 = vpop.permute.xlu0 %2496
  %2499 = vset.pattern.permute.xlu0 4
  %2500 = vperm.xlu0 %2499, %v1222
  %v2501 = vpop.permute.xlu0 %2500
  %2503 = vset.pattern.permute.xlu0 4
  %2504 = vperm.xlu0 %2503, %v1226
  %v2505 = vpop.permute.xlu0 %2504
  %2507 = vset.pattern.permute.xlu0 4
  %2508 = vperm.xlu0 %2507, %v1230
  %v2509 = vpop.permute.xlu0 %2508
  %2511 = vset.pattern.permute.xlu0 4
  %2512 = vperm.xlu0 %2511, %v1234
  %v2513 = vpop.permute.xlu0 %2512
  %2515 = vset.pattern.permute.xlu0 4
  %2516 = vperm.xlu0 %2515, %v1238
  %v2517 = vpop.permute.xlu0 %2516
  %2519 = vset.pattern.permute.xlu0 4
  %2520 = vperm.xlu0 %2519, %v1242
  %v2521 = vpop.permute.xlu0 %2520
  %2523 = vset.pattern.permute.xlu0 4
  %2524 = vperm.xlu0 %2523, %v1246
  %v2525 = vpop.permute.xlu0 %2524
  %2527 = vset.pattern.permute.xlu0 4
  %2528 = vperm.xlu0 %2527, %v1250
  %v2529 = vpop.permute.xlu0 %2528
  %2531 = vset.pattern.permute.xlu0 4
  %2532 = vperm.xlu0 %2531, %v1254
  %v2533 = vpop.permute.xlu0 %2532
  %2535 = vset.pattern.permute.xlu0 4
  %2536 = vperm.xlu0 %2535, %v1258
  %v2537 = vpop.permute.xlu0 %2536
  %2539 = vset.pattern.permute.xlu0 4
  %2540 = vperm.xlu0 %2539, %v1262
  %v2541 = vpop.permute.xlu0 %2540
  %2543 = vset.pattern.permute.xlu0 4
  %2544 = vperm.xlu0 %2543, %v1266
  %v2545 = vpop.permute.xlu0 %2544
  %2547 = vset.pattern.permute.xlu0 4
  %2548 = vperm.xlu0 %2547, %v1270
  %v2549 = vpop.permute.xlu0 %2548
  %v2551 = vmul.f32 %v23, %v2425
  %v2552 = vmul.f32 %v24, %v2429
  %v2553 = vmul.f32 %v25, %v2433
  %v2554 = vmul.f32 %v26, %v2437
  %v2555 = vmul.f32 %v27, %v2441
  %v2556 = vmul.f32 %v28, %v2445
  %v2557 = vmul.f32 %v29, %v2449
  %v2558 = vmul.f32 %v30, %v2453
  %v2559 = vmul.f32 %v31, %v2457
  %v2560 = vmul.f32 %v32, %v2461
  %v2561 = vmul.f32 %v33, %v2465
  %v2562 = vmul.f32 %v34, %v2469
  %v2563 = vmul.f32 %v35, %v2473
  %v2564 = vmul.f32 %v36, %v2477
  %v2565 = vmul.f32 %v37, %v2481
  %v2566 = vmul.f32 %v38, %v2485
  %v2567 = vmul.f32 %v39, %v2489
  %v2568 = vmul.f32 %v40, %v2493
  %v2569 = vmul.f32 %v41, %v2497
  %v2570 = vmul.f32 %v42, %v2501
  %v2571 = vmul.f32 %v43, %v2505
  %v2572 = vmul.f32 %v44, %v2509
  %v2573 = vmul.f32 %v45, %v2513
  %v2574 = vmul.f32 %v46, %v2517
  %v2575 = vmul.f32 %v47, %v2521
  %v2576 = vmul.f32 %v48, %v2525
  %v2577 = vmul.f32 %v49, %v2529
  %v2578 = vmul.f32 %v50, %v2533
  %v2579 = vmul.f32 %v51, %v2537
  %v2580 = vmul.f32 %v52, %v2541
  %v2581 = vmul.f32 %v53, %v2545
  %v2582 = vmul.f32 %v54, %v2549
  %2615 = vrot.lane.b32.xlu0 %v2551, 126
  %v2616 = vpop.permute.xlu0 %2615
  %2617 = vrot.lane.b32.xlu0 %v2552, 126
  %v2618 = vpop.permute.xlu0 %2617
  %2619 = vrot.lane.b32.xlu0 %v2553, 126
  %v2620 = vpop.permute.xlu0 %2619
  %2621 = vrot.lane.b32.xlu0 %v2554, 126
  %v2622 = vpop.permute.xlu0 %2621
  %2623 = vrot.lane.b32.xlu0 %v2555, 126
  %v2624 = vpop.permute.xlu0 %2623
  %2625 = vrot.lane.b32.xlu0 %v2556, 126
  %v2626 = vpop.permute.xlu0 %2625
  %2627 = vrot.lane.b32.xlu0 %v2557, 126
  %v2628 = vpop.permute.xlu0 %2627
  %2629 = vrot.lane.b32.xlu0 %v2558, 126
  %v2630 = vpop.permute.xlu0 %2629
  %2631 = vrot.lane.b32.xlu0 %v2559, 126
  %v2632 = vpop.permute.xlu0 %2631
  %2633 = vrot.lane.b32.xlu0 %v2560, 126
  %v2634 = vpop.permute.xlu0 %2633
  %2635 = vrot.lane.b32.xlu0 %v2561, 126
  %v2636 = vpop.permute.xlu0 %2635
  %2637 = vrot.lane.b32.xlu0 %v2562, 126
  %v2638 = vpop.permute.xlu0 %2637
  %2639 = vrot.lane.b32.xlu0 %v2563, 126
  %v2640 = vpop.permute.xlu0 %2639
  %2641 = vrot.lane.b32.xlu0 %v2564, 126
  %v2642 = vpop.permute.xlu0 %2641
  %2643 = vrot.lane.b32.xlu0 %v2565, 126
  %v2644 = vpop.permute.xlu0 %2643
  %2645 = vrot.lane.b32.xlu0 %v2566, 126
  %v2646 = vpop.permute.xlu0 %2645
  %2647 = vrot.lane.b32.xlu0 %v2567, 126
  %v2648 = vpop.permute.xlu0 %2647
  %2649 = vrot.lane.b32.xlu0 %v2568, 126
  %v2650 = vpop.permute.xlu0 %2649
  %2651 = vrot.lane.b32.xlu0 %v2569, 126
  %v2652 = vpop.permute.xlu0 %2651
  %2653 = vrot.lane.b32.xlu0 %v2570, 126
  %v2654 = vpop.permute.xlu0 %2653
  %2655 = vrot.lane.b32.xlu0 %v2571, 126
  %v2656 = vpop.permute.xlu0 %2655
  %2657 = vrot.lane.b32.xlu0 %v2572, 126
  %v2658 = vpop.permute.xlu0 %2657
  %2659 = vrot.lane.b32.xlu0 %v2573, 126
  %v2660 = vpop.permute.xlu0 %2659
  %2661 = vrot.lane.b32.xlu0 %v2574, 126
  %v2662 = vpop.permute.xlu0 %2661
  %2663 = vrot.lane.b32.xlu0 %v2575, 126
  %v2664 = vpop.permute.xlu0 %2663
  %2665 = vrot.lane.b32.xlu0 %v2576, 126
  %v2666 = vpop.permute.xlu0 %2665
  %2667 = vrot.lane.b32.xlu0 %v2577, 126
  %v2668 = vpop.permute.xlu0 %2667
  %2669 = vrot.lane.b32.xlu0 %v2578, 126
  %v2670 = vpop.permute.xlu0 %2669
  %2671 = vrot.lane.b32.xlu0 %v2579, 126
  %v2672 = vpop.permute.xlu0 %2671
  %2673 = vrot.lane.b32.xlu0 %v2580, 126
  %v2674 = vpop.permute.xlu0 %2673
  %2675 = vrot.lane.b32.xlu0 %v2581, 126
  %v2676 = vpop.permute.xlu0 %2675
  %2677 = vrot.lane.b32.xlu0 %v2582, 126
  %v2678 = vpop.permute.xlu0 %2677
  %v2711 = vadd.f32 %v2391, %v2616
  %v2712 = vadd.f32 %v2392, %v2618
  %v2713 = vadd.f32 %v2393, %v2620
  %v2714 = vadd.f32 %v2394, %v2622
  %v2715 = vadd.f32 %v2395, %v2624
  %v2716 = vadd.f32 %v2396, %v2626
  %v2717 = vadd.f32 %v2397, %v2628
  %v2718 = vadd.f32 %v2398, %v2630
  %v2719 = vadd.f32 %v2399, %v2632
  %v2720 = vadd.f32 %v2400, %v2634
  %v2721 = vadd.f32 %v2401, %v2636
  %v2722 = vadd.f32 %v2402, %v2638
  %v2723 = vadd.f32 %v2403, %v2640
  %v2724 = vadd.f32 %v2404, %v2642
  %v2725 = vadd.f32 %v2405, %v2644
  %v2726 = vadd.f32 %v2406, %v2646
  %v2727 = vadd.f32 %v2407, %v2648
  %v2728 = vadd.f32 %v2408, %v2650
  %v2729 = vadd.f32 %v2409, %v2652
  %v2730 = vadd.f32 %v2410, %v2654
  %v2731 = vadd.f32 %v2411, %v2656
  %v2732 = vadd.f32 %v2412, %v2658
  %v2733 = vadd.f32 %v2413, %v2660
  %v2734 = vadd.f32 %v2414, %v2662
  %v2735 = vadd.f32 %v2415, %v2664
  %v2736 = vadd.f32 %v2416, %v2666
  %v2737 = vadd.f32 %v2417, %v2668
  %v2738 = vadd.f32 %v2418, %v2670
  %v2739 = vadd.f32 %v2419, %v2672
  %v2740 = vadd.f32 %v2420, %v2674
  %v2741 = vadd.f32 %v2421, %v2676
  %v2742 = vadd.f32 %v2422, %v2678
  %2743 = vset.pattern.permute.xlu0 5
  %2744 = vperm.xlu0 %2743, %v1146
  %v2745 = vpop.permute.xlu0 %2744
  %2747 = vset.pattern.permute.xlu0 5
  %2748 = vperm.xlu0 %2747, %v1150
  %v2749 = vpop.permute.xlu0 %2748
  %2751 = vset.pattern.permute.xlu0 5
  %2752 = vperm.xlu0 %2751, %v1154
  %v2753 = vpop.permute.xlu0 %2752
  %2755 = vset.pattern.permute.xlu0 5
  %2756 = vperm.xlu0 %2755, %v1158
  %v2757 = vpop.permute.xlu0 %2756
  %2759 = vset.pattern.permute.xlu0 5
  %2760 = vperm.xlu0 %2759, %v1162
  %v2761 = vpop.permute.xlu0 %2760
  %2763 = vset.pattern.permute.xlu0 5
  %2764 = vperm.xlu0 %2763, %v1166
  %v2765 = vpop.permute.xlu0 %2764
  %2767 = vset.pattern.permute.xlu0 5
  %2768 = vperm.xlu0 %2767, %v1170
  %v2769 = vpop.permute.xlu0 %2768
  %2771 = vset.pattern.permute.xlu0 5
  %2772 = vperm.xlu0 %2771, %v1174
  %v2773 = vpop.permute.xlu0 %2772
  %2775 = vset.pattern.permute.xlu0 5
  %2776 = vperm.xlu0 %2775, %v1178
  %v2777 = vpop.permute.xlu0 %2776
  %2779 = vset.pattern.permute.xlu0 5
  %2780 = vperm.xlu0 %2779, %v1182
  %v2781 = vpop.permute.xlu0 %2780
  %2783 = vset.pattern.permute.xlu0 5
  %2784 = vperm.xlu0 %2783, %v1186
  %v2785 = vpop.permute.xlu0 %2784
  %2787 = vset.pattern.permute.xlu0 5
  %2788 = vperm.xlu0 %2787, %v1190
  %v2789 = vpop.permute.xlu0 %2788
  %2791 = vset.pattern.permute.xlu0 5
  %2792 = vperm.xlu0 %2791, %v1194
  %v2793 = vpop.permute.xlu0 %2792
  %2795 = vset.pattern.permute.xlu0 5
  %2796 = vperm.xlu0 %2795, %v1198
  %v2797 = vpop.permute.xlu0 %2796
  %2799 = vset.pattern.permute.xlu0 5
  %2800 = vperm.xlu0 %2799, %v1202
  %v2801 = vpop.permute.xlu0 %2800
  %2803 = vset.pattern.permute.xlu0 5
  %2804 = vperm.xlu0 %2803, %v1206
  %v2805 = vpop.permute.xlu0 %2804
  %2807 = vset.pattern.permute.xlu0 5
  %2808 = vperm.xlu0 %2807, %v1210
  %v2809 = vpop.permute.xlu0 %2808
  %2811 = vset.pattern.permute.xlu0 5
  %2812 = vperm.xlu0 %2811, %v1214
  %v2813 = vpop.permute.xlu0 %2812
  %2815 = vset.pattern.permute.xlu0 5
  %2816 = vperm.xlu0 %2815, %v1218
  %v2817 = vpop.permute.xlu0 %2816
  %2819 = vset.pattern.permute.xlu0 5
  %2820 = vperm.xlu0 %2819, %v1222
  %v2821 = vpop.permute.xlu0 %2820
  %2823 = vset.pattern.permute.xlu0 5
  %2824 = vperm.xlu0 %2823, %v1226
  %v2825 = vpop.permute.xlu0 %2824
  %2827 = vset.pattern.permute.xlu0 5
  %2828 = vperm.xlu0 %2827, %v1230
  %v2829 = vpop.permute.xlu0 %2828
  %2831 = vset.pattern.permute.xlu0 5
  %2832 = vperm.xlu0 %2831, %v1234
  %v2833 = vpop.permute.xlu0 %2832
  %2835 = vset.pattern.permute.xlu0 5
  %2836 = vperm.xlu0 %2835, %v1238
  %v2837 = vpop.permute.xlu0 %2836
  %2839 = vset.pattern.permute.xlu0 5
  %2840 = vperm.xlu0 %2839, %v1242
  %v2841 = vpop.permute.xlu0 %2840
  %2843 = vset.pattern.permute.xlu0 5
  %2844 = vperm.xlu0 %2843, %v1246
  %v2845 = vpop.permute.xlu0 %2844
  %2847 = vset.pattern.permute.xlu0 5
  %2848 = vperm.xlu0 %2847, %v1250
  %v2849 = vpop.permute.xlu0 %2848
  %2851 = vset.pattern.permute.xlu0 5
  %2852 = vperm.xlu0 %2851, %v1254
  %v2853 = vpop.permute.xlu0 %2852
  %2855 = vset.pattern.permute.xlu0 5
  %2856 = vperm.xlu0 %2855, %v1258
  %v2857 = vpop.permute.xlu0 %2856
  %2859 = vset.pattern.permute.xlu0 5
  %2860 = vperm.xlu0 %2859, %v1262
  %v2861 = vpop.permute.xlu0 %2860
  %2863 = vset.pattern.permute.xlu0 5
  %2864 = vperm.xlu0 %2863, %v1266
  %v2865 = vpop.permute.xlu0 %2864
  %2867 = vset.pattern.permute.xlu0 5
  %2868 = vperm.xlu0 %2867, %v1270
  %v2869 = vpop.permute.xlu0 %2868
  %v2871 = vmul.f32 %v23, %v2745
  %v2872 = vmul.f32 %v24, %v2749
  %v2873 = vmul.f32 %v25, %v2753
  %v2874 = vmul.f32 %v26, %v2757
  %v2875 = vmul.f32 %v27, %v2761
  %v2876 = vmul.f32 %v28, %v2765
  %v2877 = vmul.f32 %v29, %v2769
  %v2878 = vmul.f32 %v30, %v2773
  %v2879 = vmul.f32 %v31, %v2777
  %v2880 = vmul.f32 %v32, %v2781
  %v2881 = vmul.f32 %v33, %v2785
  %v2882 = vmul.f32 %v34, %v2789
  %v2883 = vmul.f32 %v35, %v2793
  %v2884 = vmul.f32 %v36, %v2797
  %v2885 = vmul.f32 %v37, %v2801
  %v2886 = vmul.f32 %v38, %v2805
  %v2887 = vmul.f32 %v39, %v2809
  %v2888 = vmul.f32 %v40, %v2813
  %v2889 = vmul.f32 %v41, %v2817
  %v2890 = vmul.f32 %v42, %v2821
  %v2891 = vmul.f32 %v43, %v2825
  %v2892 = vmul.f32 %v44, %v2829
  %v2893 = vmul.f32 %v45, %v2833
  %v2894 = vmul.f32 %v46, %v2837
  %v2895 = vmul.f32 %v47, %v2841
  %v2896 = vmul.f32 %v48, %v2845
  %v2897 = vmul.f32 %v49, %v2849
  %v2898 = vmul.f32 %v50, %v2853
  %v2899 = vmul.f32 %v51, %v2857
  %v2900 = vmul.f32 %v52, %v2861
  %v2901 = vmul.f32 %v53, %v2865
  %v2902 = vmul.f32 %v54, %v2869
  %2935 = vrot.lane.b32.xlu0 %v2871, 125
  %v2936 = vpop.permute.xlu0 %2935
  %2937 = vrot.lane.b32.xlu0 %v2872, 125
  %v2938 = vpop.permute.xlu0 %2937
  %2939 = vrot.lane.b32.xlu0 %v2873, 125
  %v2940 = vpop.permute.xlu0 %2939
  %2941 = vrot.lane.b32.xlu0 %v2874, 125
  %v2942 = vpop.permute.xlu0 %2941
  %2943 = vrot.lane.b32.xlu0 %v2875, 125
  %v2944 = vpop.permute.xlu0 %2943
  %2945 = vrot.lane.b32.xlu0 %v2876, 125
  %v2946 = vpop.permute.xlu0 %2945
  %2947 = vrot.lane.b32.xlu0 %v2877, 125
  %v2948 = vpop.permute.xlu0 %2947
  %2949 = vrot.lane.b32.xlu0 %v2878, 125
  %v2950 = vpop.permute.xlu0 %2949
  %2951 = vrot.lane.b32.xlu0 %v2879, 125
  %v2952 = vpop.permute.xlu0 %2951
  %2953 = vrot.lane.b32.xlu0 %v2880, 125
  %v2954 = vpop.permute.xlu0 %2953
  %2955 = vrot.lane.b32.xlu0 %v2881, 125
  %v2956 = vpop.permute.xlu0 %2955
  %2957 = vrot.lane.b32.xlu0 %v2882, 125
  %v2958 = vpop.permute.xlu0 %2957
  %2959 = vrot.lane.b32.xlu0 %v2883, 125
  %v2960 = vpop.permute.xlu0 %2959
  %2961 = vrot.lane.b32.xlu0 %v2884, 125
  %v2962 = vpop.permute.xlu0 %2961
  %2963 = vrot.lane.b32.xlu0 %v2885, 125
  %v2964 = vpop.permute.xlu0 %2963
  %2965 = vrot.lane.b32.xlu0 %v2886, 125
  %v2966 = vpop.permute.xlu0 %2965
  %2967 = vrot.lane.b32.xlu0 %v2887, 125
  %v2968 = vpop.permute.xlu0 %2967
  %2969 = vrot.lane.b32.xlu0 %v2888, 125
  %v2970 = vpop.permute.xlu0 %2969
  %2971 = vrot.lane.b32.xlu0 %v2889, 125
  %v2972 = vpop.permute.xlu0 %2971
  %2973 = vrot.lane.b32.xlu0 %v2890, 125
  %v2974 = vpop.permute.xlu0 %2973
  %2975 = vrot.lane.b32.xlu0 %v2891, 125
  %v2976 = vpop.permute.xlu0 %2975
  %2977 = vrot.lane.b32.xlu0 %v2892, 125
  %v2978 = vpop.permute.xlu0 %2977
  %2979 = vrot.lane.b32.xlu0 %v2893, 125
  %v2980 = vpop.permute.xlu0 %2979
  %2981 = vrot.lane.b32.xlu0 %v2894, 125
  %v2982 = vpop.permute.xlu0 %2981
  %2983 = vrot.lane.b32.xlu0 %v2895, 125
  %v2984 = vpop.permute.xlu0 %2983
  %2985 = vrot.lane.b32.xlu0 %v2896, 125
  %v2986 = vpop.permute.xlu0 %2985
  %2987 = vrot.lane.b32.xlu0 %v2897, 125
  %v2988 = vpop.permute.xlu0 %2987
  %2989 = vrot.lane.b32.xlu0 %v2898, 125
  %v2990 = vpop.permute.xlu0 %2989
  %2991 = vrot.lane.b32.xlu0 %v2899, 125
  %v2992 = vpop.permute.xlu0 %2991
  %2993 = vrot.lane.b32.xlu0 %v2900, 125
  %v2994 = vpop.permute.xlu0 %2993
  %2995 = vrot.lane.b32.xlu0 %v2901, 125
  %v2996 = vpop.permute.xlu0 %2995
  %2997 = vrot.lane.b32.xlu0 %v2902, 125
  %v2998 = vpop.permute.xlu0 %2997
  %v3031 = vadd.f32 %v2711, %v2936
  %v3032 = vadd.f32 %v2712, %v2938
  %v3033 = vadd.f32 %v2713, %v2940
  %v3034 = vadd.f32 %v2714, %v2942
  %v3035 = vadd.f32 %v2715, %v2944
  %v3036 = vadd.f32 %v2716, %v2946
  %v3037 = vadd.f32 %v2717, %v2948
  %v3038 = vadd.f32 %v2718, %v2950
  %v3039 = vadd.f32 %v2719, %v2952
  %v3040 = vadd.f32 %v2720, %v2954
  %v3041 = vadd.f32 %v2721, %v2956
  %v3042 = vadd.f32 %v2722, %v2958
  %v3043 = vadd.f32 %v2723, %v2960
  %v3044 = vadd.f32 %v2724, %v2962
  %v3045 = vadd.f32 %v2725, %v2964
  %v3046 = vadd.f32 %v2726, %v2966
  %v3047 = vadd.f32 %v2727, %v2968
  %v3048 = vadd.f32 %v2728, %v2970
  %v3049 = vadd.f32 %v2729, %v2972
  %v3050 = vadd.f32 %v2730, %v2974
  %v3051 = vadd.f32 %v2731, %v2976
  %v3052 = vadd.f32 %v2732, %v2978
  %v3053 = vadd.f32 %v2733, %v2980
  %v3054 = vadd.f32 %v2734, %v2982
  %v3055 = vadd.f32 %v2735, %v2984
  %v3056 = vadd.f32 %v2736, %v2986
  %v3057 = vadd.f32 %v2737, %v2988
  %v3058 = vadd.f32 %v2738, %v2990
  %v3059 = vadd.f32 %v2739, %v2992
  %v3060 = vadd.f32 %v2740, %v2994
  %v3061 = vadd.f32 %v2741, %v2996
  %v3062 = vadd.f32 %v2742, %v2998
  %3063 = vset.pattern.permute.xlu0 6
  %3064 = vperm.xlu0 %3063, %v1146
  %v3065 = vpop.permute.xlu0 %3064
  %3067 = vset.pattern.permute.xlu0 6
  %3068 = vperm.xlu0 %3067, %v1150
  %v3069 = vpop.permute.xlu0 %3068
  %3071 = vset.pattern.permute.xlu0 6
  %3072 = vperm.xlu0 %3071, %v1154
  %v3073 = vpop.permute.xlu0 %3072
  %3075 = vset.pattern.permute.xlu0 6
  %3076 = vperm.xlu0 %3075, %v1158
  %v3077 = vpop.permute.xlu0 %3076
  %3079 = vset.pattern.permute.xlu0 6
  %3080 = vperm.xlu0 %3079, %v1162
  %v3081 = vpop.permute.xlu0 %3080
  %3083 = vset.pattern.permute.xlu0 6
  %3084 = vperm.xlu0 %3083, %v1166
  %v3085 = vpop.permute.xlu0 %3084
  %3087 = vset.pattern.permute.xlu0 6
  %3088 = vperm.xlu0 %3087, %v1170
  %v3089 = vpop.permute.xlu0 %3088
  %3091 = vset.pattern.permute.xlu0 6
  %3092 = vperm.xlu0 %3091, %v1174
  %v3093 = vpop.permute.xlu0 %3092
  %3095 = vset.pattern.permute.xlu0 6
  %3096 = vperm.xlu0 %3095, %v1178
  %v3097 = vpop.permute.xlu0 %3096
  %3099 = vset.pattern.permute.xlu0 6
  %3100 = vperm.xlu0 %3099, %v1182
  %v3101 = vpop.permute.xlu0 %3100
  %3103 = vset.pattern.permute.xlu0 6
  %3104 = vperm.xlu0 %3103, %v1186
  %v3105 = vpop.permute.xlu0 %3104
  %3107 = vset.pattern.permute.xlu0 6
  %3108 = vperm.xlu0 %3107, %v1190
  %v3109 = vpop.permute.xlu0 %3108
  %3111 = vset.pattern.permute.xlu0 6
  %3112 = vperm.xlu0 %3111, %v1194
  %v3113 = vpop.permute.xlu0 %3112
  %3115 = vset.pattern.permute.xlu0 6
  %3116 = vperm.xlu0 %3115, %v1198
  %v3117 = vpop.permute.xlu0 %3116
  %3119 = vset.pattern.permute.xlu0 6
  %3120 = vperm.xlu0 %3119, %v1202
  %v3121 = vpop.permute.xlu0 %3120
  %3123 = vset.pattern.permute.xlu0 6
  %3124 = vperm.xlu0 %3123, %v1206
  %v3125 = vpop.permute.xlu0 %3124
  %3127 = vset.pattern.permute.xlu0 6
  %3128 = vperm.xlu0 %3127, %v1210
  %v3129 = vpop.permute.xlu0 %3128
  %3131 = vset.pattern.permute.xlu0 6
  %3132 = vperm.xlu0 %3131, %v1214
  %v3133 = vpop.permute.xlu0 %3132
  %3135 = vset.pattern.permute.xlu0 6
  %3136 = vperm.xlu0 %3135, %v1218
  %v3137 = vpop.permute.xlu0 %3136
  %3139 = vset.pattern.permute.xlu0 6
  %3140 = vperm.xlu0 %3139, %v1222
  %v3141 = vpop.permute.xlu0 %3140
  %3143 = vset.pattern.permute.xlu0 6
  %3144 = vperm.xlu0 %3143, %v1226
  %v3145 = vpop.permute.xlu0 %3144
  %3147 = vset.pattern.permute.xlu0 6
  %3148 = vperm.xlu0 %3147, %v1230
  %v3149 = vpop.permute.xlu0 %3148
  %3151 = vset.pattern.permute.xlu0 6
  %3152 = vperm.xlu0 %3151, %v1234
  %v3153 = vpop.permute.xlu0 %3152
  %3155 = vset.pattern.permute.xlu0 6
  %3156 = vperm.xlu0 %3155, %v1238
  %v3157 = vpop.permute.xlu0 %3156
  %3159 = vset.pattern.permute.xlu0 6
  %3160 = vperm.xlu0 %3159, %v1242
  %v3161 = vpop.permute.xlu0 %3160
  %3163 = vset.pattern.permute.xlu0 6
  %3164 = vperm.xlu0 %3163, %v1246
  %v3165 = vpop.permute.xlu0 %3164
  %3167 = vset.pattern.permute.xlu0 6
  %3168 = vperm.xlu0 %3167, %v1250
  %v3169 = vpop.permute.xlu0 %3168
  %3171 = vset.pattern.permute.xlu0 6
  %3172 = vperm.xlu0 %3171, %v1254
  %v3173 = vpop.permute.xlu0 %3172
  %3175 = vset.pattern.permute.xlu0 6
  %3176 = vperm.xlu0 %3175, %v1258
  %v3177 = vpop.permute.xlu0 %3176
  %3179 = vset.pattern.permute.xlu0 6
  %3180 = vperm.xlu0 %3179, %v1262
  %v3181 = vpop.permute.xlu0 %3180
  %3183 = vset.pattern.permute.xlu0 6
  %3184 = vperm.xlu0 %3183, %v1266
  %v3185 = vpop.permute.xlu0 %3184
  %3187 = vset.pattern.permute.xlu0 6
  %3188 = vperm.xlu0 %3187, %v1270
  %v3189 = vpop.permute.xlu0 %3188
  %v3191 = vmul.f32 %v23, %v3065
  %v3192 = vmul.f32 %v24, %v3069
  %v3193 = vmul.f32 %v25, %v3073
  %v3194 = vmul.f32 %v26, %v3077
  %v3195 = vmul.f32 %v27, %v3081
  %v3196 = vmul.f32 %v28, %v3085
  %v3197 = vmul.f32 %v29, %v3089
  %v3198 = vmul.f32 %v30, %v3093
  %v3199 = vmul.f32 %v31, %v3097
  %v3200 = vmul.f32 %v32, %v3101
  %v3201 = vmul.f32 %v33, %v3105
  %v3202 = vmul.f32 %v34, %v3109
  %v3203 = vmul.f32 %v35, %v3113
  %v3204 = vmul.f32 %v36, %v3117
  %v3205 = vmul.f32 %v37, %v3121
  %v3206 = vmul.f32 %v38, %v3125
  %v3207 = vmul.f32 %v39, %v3129
  %v3208 = vmul.f32 %v40, %v3133
  %v3209 = vmul.f32 %v41, %v3137
  %v3210 = vmul.f32 %v42, %v3141
  %v3211 = vmul.f32 %v43, %v3145
  %v3212 = vmul.f32 %v44, %v3149
  %v3213 = vmul.f32 %v45, %v3153
  %v3214 = vmul.f32 %v46, %v3157
  %v3215 = vmul.f32 %v47, %v3161
  %v3216 = vmul.f32 %v48, %v3165
  %v3217 = vmul.f32 %v49, %v3169
  %v3218 = vmul.f32 %v50, %v3173
  %v3219 = vmul.f32 %v51, %v3177
  %v3220 = vmul.f32 %v52, %v3181
  %v3221 = vmul.f32 %v53, %v3185
  %v3222 = vmul.f32 %v54, %v3189
  %3255 = vrot.lane.b32.xlu0 %v3191, 124
  %v3256 = vpop.permute.xlu0 %3255
  %3257 = vrot.lane.b32.xlu0 %v3192, 124
  %v3258 = vpop.permute.xlu0 %3257
  %3259 = vrot.lane.b32.xlu0 %v3193, 124
  %v3260 = vpop.permute.xlu0 %3259
  %3261 = vrot.lane.b32.xlu0 %v3194, 124
  %v3262 = vpop.permute.xlu0 %3261
  %3263 = vrot.lane.b32.xlu0 %v3195, 124
  %v3264 = vpop.permute.xlu0 %3263
  %3265 = vrot.lane.b32.xlu0 %v3196, 124
  %v3266 = vpop.permute.xlu0 %3265
  %3267 = vrot.lane.b32.xlu0 %v3197, 124
  %v3268 = vpop.permute.xlu0 %3267
  %3269 = vrot.lane.b32.xlu0 %v3198, 124
  %v3270 = vpop.permute.xlu0 %3269
  %3271 = vrot.lane.b32.xlu0 %v3199, 124
  %v3272 = vpop.permute.xlu0 %3271
  %3273 = vrot.lane.b32.xlu0 %v3200, 124
  %v3274 = vpop.permute.xlu0 %3273
  %3275 = vrot.lane.b32.xlu0 %v3201, 124
  %v3276 = vpop.permute.xlu0 %3275
  %3277 = vrot.lane.b32.xlu0 %v3202, 124
  %v3278 = vpop.permute.xlu0 %3277
  %3279 = vrot.lane.b32.xlu0 %v3203, 124
  %v3280 = vpop.permute.xlu0 %3279
  %3281 = vrot.lane.b32.xlu0 %v3204, 124
  %v3282 = vpop.permute.xlu0 %3281
  %3283 = vrot.lane.b32.xlu0 %v3205, 124
  %v3284 = vpop.permute.xlu0 %3283
  %3285 = vrot.lane.b32.xlu0 %v3206, 124
  %v3286 = vpop.permute.xlu0 %3285
  %3287 = vrot.lane.b32.xlu0 %v3207, 124
  %v3288 = vpop.permute.xlu0 %3287
  %3289 = vrot.lane.b32.xlu0 %v3208, 124
  %v3290 = vpop.permute.xlu0 %3289
  %3291 = vrot.lane.b32.xlu0 %v3209, 124
  %v3292 = vpop.permute.xlu0 %3291
  %3293 = vrot.lane.b32.xlu0 %v3210, 124
  %v3294 = vpop.permute.xlu0 %3293
  %3295 = vrot.lane.b32.xlu0 %v3211, 124
  %v3296 = vpop.permute.xlu0 %3295
  %3297 = vrot.lane.b32.xlu0 %v3212, 124
  %v3298 = vpop.permute.xlu0 %3297
  %3299 = vrot.lane.b32.xlu0 %v3213, 124
  %v3300 = vpop.permute.xlu0 %3299
  %3301 = vrot.lane.b32.xlu0 %v3214, 124
  %v3302 = vpop.permute.xlu0 %3301
  %3303 = vrot.lane.b32.xlu0 %v3215, 124
  %v3304 = vpop.permute.xlu0 %3303
  %3305 = vrot.lane.b32.xlu0 %v3216, 124
  %v3306 = vpop.permute.xlu0 %3305
  %3307 = vrot.lane.b32.xlu0 %v3217, 124
  %v3308 = vpop.permute.xlu0 %3307
  %3309 = vrot.lane.b32.xlu0 %v3218, 124
  %v3310 = vpop.permute.xlu0 %3309
  %3311 = vrot.lane.b32.xlu0 %v3219, 124
  %v3312 = vpop.permute.xlu0 %3311
  %3313 = vrot.lane.b32.xlu0 %v3220, 124
  %v3314 = vpop.permute.xlu0 %3313
  %3315 = vrot.lane.b32.xlu0 %v3221, 124
  %v3316 = vpop.permute.xlu0 %3315
  %3317 = vrot.lane.b32.xlu0 %v3222, 124
  %v3318 = vpop.permute.xlu0 %3317
  %v3351 = vadd.f32 %v3031, %v3256
  %v3352 = vadd.f32 %v3032, %v3258
  %v3353 = vadd.f32 %v3033, %v3260
  %v3354 = vadd.f32 %v3034, %v3262
  %v3355 = vadd.f32 %v3035, %v3264
  %v3356 = vadd.f32 %v3036, %v3266
  %v3357 = vadd.f32 %v3037, %v3268
  %v3358 = vadd.f32 %v3038, %v3270
  %v3359 = vadd.f32 %v3039, %v3272
  %v3360 = vadd.f32 %v3040, %v3274
  %v3361 = vadd.f32 %v3041, %v3276
  %v3362 = vadd.f32 %v3042, %v3278
  %v3363 = vadd.f32 %v3043, %v3280
  %v3364 = vadd.f32 %v3044, %v3282
  %v3365 = vadd.f32 %v3045, %v3284
  %v3366 = vadd.f32 %v3046, %v3286
  %v3367 = vadd.f32 %v3047, %v3288
  %v3368 = vadd.f32 %v3048, %v3290
  %v3369 = vadd.f32 %v3049, %v3292
  %v3370 = vadd.f32 %v3050, %v3294
  %v3371 = vadd.f32 %v3051, %v3296
  %v3372 = vadd.f32 %v3052, %v3298
  %v3373 = vadd.f32 %v3053, %v3300
  %v3374 = vadd.f32 %v3054, %v3302
  %v3375 = vadd.f32 %v3055, %v3304
  %v3376 = vadd.f32 %v3056, %v3306
  %v3377 = vadd.f32 %v3057, %v3308
  %v3378 = vadd.f32 %v3058, %v3310
  %v3379 = vadd.f32 %v3059, %v3312
  %v3380 = vadd.f32 %v3060, %v3314
  %v3381 = vadd.f32 %v3061, %v3316
  %v3382 = vadd.f32 %v3062, %v3318
  %v3383 = vld [vmem:[%s3] sm:$0x1]
  %v3384 = vld [vmem:[%s3 + $0x1] sm:$0x1]
  %v3385 = vld [vmem:[%s3 + $0x2] sm:$0x1]
  %v3386 = vld [vmem:[%s3 + $0x3] sm:$0x1]
  %v3387 = vld [vmem:[%s3 + $0x4] sm:$0x1]
  %v3388 = vld [vmem:[%s3 + $0x5] sm:$0x1]
  %v3389 = vld [vmem:[%s3 + $0x6] sm:$0x1]
  %v3390 = vld [vmem:[%s3 + $0x7] sm:$0x1]
  %v3391 = vld [vmem:[%s3 + $0x8] sm:$0x1]
  %v3392 = vld [vmem:[%s3 + $0x9] sm:$0x1]
  %v3393 = vld [vmem:[%s3 + $0xa] sm:$0x1]
  %v3394 = vld [vmem:[%s3 + $0xb] sm:$0x1]
  %v3395 = vld [vmem:[%s3 + $0xc] sm:$0x1]
  %v3396 = vld [vmem:[%s3 + $0xd] sm:$0x1]
  %v3397 = vld [vmem:[%s3 + $0xe] sm:$0x1]
  %v3398 = vld [vmem:[%s3 + $0xf] sm:$0x1]
  %v3399 = vld [vmem:[%s3 + $0x10] sm:$0x1]
  %v3400 = vld [vmem:[%s3 + $0x11] sm:$0x1]
  %v3401 = vld [vmem:[%s3 + $0x12] sm:$0x1]
  %v3402 = vld [vmem:[%s3 + $0x13] sm:$0x1]
  %v3403 = vld [vmem:[%s3 + $0x14] sm:$0x1]
  %v3404 = vld [vmem:[%s3 + $0x15] sm:$0x1]
  %v3405 = vld [vmem:[%s3 + $0x16] sm:$0x1]
  %v3406 = vld [vmem:[%s3 + $0x17] sm:$0x1]
  %v3407 = vld [vmem:[%s3 + $0x18] sm:$0x1]
  %v3408 = vld [vmem:[%s3 + $0x19] sm:$0x1]
  %v3409 = vld [vmem:[%s3 + $0x1a] sm:$0x1]
  %v3410 = vld [vmem:[%s3 + $0x1b] sm:$0x1]
  %v3411 = vld [vmem:[%s3 + $0x1c] sm:$0x1]
  %v3412 = vld [vmem:[%s3 + $0x1d] sm:$0x1]
  %v3413 = vld [vmem:[%s3 + $0x1e] sm:$0x1]
  %v3414 = vld [vmem:[%s3 + $0x1f] sm:$0x1]
  %v3447 = vlaneseq
  %v3448 = vshrl.u32 %v3447, 7
  %v3449 = vsub.s32 0, %v3448
  %v3450 = vrot.slane %v3383, %v3449
  %v3451 = vlaneseq
  %v3452 = vshrl.u32 %v3451, 7
  %v3453 = vsub.s32 0, %v3452
  %v3454 = vrot.slane %v3384, %v3453
  %v3455 = vlaneseq
  %v3456 = vshrl.u32 %v3455, 7
  %v3457 = vsub.s32 0, %v3456
  %v3458 = vrot.slane %v3385, %v3457
  %v3459 = vlaneseq
  %v3460 = vshrl.u32 %v3459, 7
  %v3461 = vsub.s32 0, %v3460
  %v3462 = vrot.slane %v3386, %v3461
  %v3463 = vlaneseq
  %v3464 = vshrl.u32 %v3463, 7
  %v3465 = vsub.s32 0, %v3464
  %v3466 = vrot.slane %v3387, %v3465
  %v3467 = vlaneseq
  %v3468 = vshrl.u32 %v3467, 7
  %v3469 = vsub.s32 0, %v3468
  %v3470 = vrot.slane %v3388, %v3469
  %v3471 = vlaneseq
  %v3472 = vshrl.u32 %v3471, 7
  %v3473 = vsub.s32 0, %v3472
  %v3474 = vrot.slane %v3389, %v3473
  %v3475 = vlaneseq
  %v3476 = vshrl.u32 %v3475, 7
  %v3477 = vsub.s32 0, %v3476
  %v3478 = vrot.slane %v3390, %v3477
  %v3479 = vlaneseq
  %v3480 = vshrl.u32 %v3479, 7
  %v3481 = vsub.s32 0, %v3480
  %v3482 = vrot.slane %v3391, %v3481
  %v3483 = vlaneseq
  %v3484 = vshrl.u32 %v3483, 7
  %v3485 = vsub.s32 0, %v3484
  %v3486 = vrot.slane %v3392, %v3485
  %v3487 = vlaneseq
  %v3488 = vshrl.u32 %v3487, 7
  %v3489 = vsub.s32 0, %v3488
  %v3490 = vrot.slane %v3393, %v3489
  %v3491 = vlaneseq
  %v3492 = vshrl.u32 %v3491, 7
  %v3493 = vsub.s32 0, %v3492
  %v3494 = vrot.slane %v3394, %v3493
  %v3495 = vlaneseq
  %v3496 = vshrl.u32 %v3495, 7
  %v3497 = vsub.s32 0, %v3496
  %v3498 = vrot.slane %v3395, %v3497
  %v3499 = vlaneseq
  %v3500 = vshrl.u32 %v3499, 7
  %v3501 = vsub.s32 0, %v3500
  %v3502 = vrot.slane %v3396, %v3501
  %v3503 = vlaneseq
  %v3504 = vshrl.u32 %v3503, 7
  %v3505 = vsub.s32 0, %v3504
  %v3506 = vrot.slane %v3397, %v3505
  %v3507 = vlaneseq
  %v3508 = vshrl.u32 %v3507, 7
  %v3509 = vsub.s32 0, %v3508
  %v3510 = vrot.slane %v3398, %v3509
  %v3511 = vlaneseq
  %v3512 = vshrl.u32 %v3511, 7
  %v3513 = vsub.s32 0, %v3512
  %v3514 = vrot.slane %v3399, %v3513
  %v3515 = vlaneseq
  %v3516 = vshrl.u32 %v3515, 7
  %v3517 = vsub.s32 0, %v3516
  %v3518 = vrot.slane %v3400, %v3517
  %v3519 = vlaneseq
  %v3520 = vshrl.u32 %v3519, 7
  %v3521 = vsub.s32 0, %v3520
  %v3522 = vrot.slane %v3401, %v3521
  %v3523 = vlaneseq
  %v3524 = vshrl.u32 %v3523, 7
  %v3525 = vsub.s32 0, %v3524
  %v3526 = vrot.slane %v3402, %v3525
  %v3527 = vlaneseq
  %v3528 = vshrl.u32 %v3527, 7
  %v3529 = vsub.s32 0, %v3528
  %v3530 = vrot.slane %v3403, %v3529
  %v3531 = vlaneseq
  %v3532 = vshrl.u32 %v3531, 7
  %v3533 = vsub.s32 0, %v3532
  %v3534 = vrot.slane %v3404, %v3533
  %v3535 = vlaneseq
  %v3536 = vshrl.u32 %v3535, 7
  %v3537 = vsub.s32 0, %v3536
  %v3538 = vrot.slane %v3405, %v3537
  %v3539 = vlaneseq
  %v3540 = vshrl.u32 %v3539, 7
  %v3541 = vsub.s32 0, %v3540
  %v3542 = vrot.slane %v3406, %v3541
  %v3543 = vlaneseq
  %v3544 = vshrl.u32 %v3543, 7
  %v3545 = vsub.s32 0, %v3544
  %v3546 = vrot.slane %v3407, %v3545
  %v3547 = vlaneseq
  %v3548 = vshrl.u32 %v3547, 7
  %v3549 = vsub.s32 0, %v3548
  %v3550 = vrot.slane %v3408, %v3549
  %v3551 = vlaneseq
  %v3552 = vshrl.u32 %v3551, 7
  %v3553 = vsub.s32 0, %v3552
  %v3554 = vrot.slane %v3409, %v3553
  %v3555 = vlaneseq
  %v3556 = vshrl.u32 %v3555, 7
  %v3557 = vsub.s32 0, %v3556
  %v3558 = vrot.slane %v3410, %v3557
  %v3559 = vlaneseq
  %v3560 = vshrl.u32 %v3559, 7
  %v3561 = vsub.s32 0, %v3560
  %v3562 = vrot.slane %v3411, %v3561
  %v3563 = vlaneseq
  %v3564 = vshrl.u32 %v3563, 7
  %v3565 = vsub.s32 0, %v3564
  %v3566 = vrot.slane %v3412, %v3565
  %v3567 = vlaneseq
  %v3568 = vshrl.u32 %v3567, 7
  %v3569 = vsub.s32 0, %v3568
  %v3570 = vrot.slane %v3413, %v3569
  %v3571 = vlaneseq
  %v3572 = vshrl.u32 %v3571, 7
  %v3573 = vsub.s32 0, %v3572
  %v3574 = vrot.slane %v3414, %v3573
  %3575 = vset.pattern.permute.xlu0 0
  %3576 = vperm.xlu0 %3575, %v3450
  %v3577 = vpop.permute.xlu0 %3576
  %3579 = vset.pattern.permute.xlu0 0
  %3580 = vperm.xlu0 %3579, %v3454
  %v3581 = vpop.permute.xlu0 %3580
  %3583 = vset.pattern.permute.xlu0 0
  %3584 = vperm.xlu0 %3583, %v3458
  %v3585 = vpop.permute.xlu0 %3584
  %3587 = vset.pattern.permute.xlu0 0
  %3588 = vperm.xlu0 %3587, %v3462
  %v3589 = vpop.permute.xlu0 %3588
  %3591 = vset.pattern.permute.xlu0 0
  %3592 = vperm.xlu0 %3591, %v3466
  %v3593 = vpop.permute.xlu0 %3592
  %3595 = vset.pattern.permute.xlu0 0
  %3596 = vperm.xlu0 %3595, %v3470
  %v3597 = vpop.permute.xlu0 %3596
  %3599 = vset.pattern.permute.xlu0 0
  %3600 = vperm.xlu0 %3599, %v3474
  %v3601 = vpop.permute.xlu0 %3600
  %3603 = vset.pattern.permute.xlu0 0
  %3604 = vperm.xlu0 %3603, %v3478
  %v3605 = vpop.permute.xlu0 %3604
  %3607 = vset.pattern.permute.xlu0 0
  %3608 = vperm.xlu0 %3607, %v3482
  %v3609 = vpop.permute.xlu0 %3608
  %3611 = vset.pattern.permute.xlu0 0
  %3612 = vperm.xlu0 %3611, %v3486
  %v3613 = vpop.permute.xlu0 %3612
  %3615 = vset.pattern.permute.xlu0 0
  %3616 = vperm.xlu0 %3615, %v3490
  %v3617 = vpop.permute.xlu0 %3616
  %3619 = vset.pattern.permute.xlu0 0
  %3620 = vperm.xlu0 %3619, %v3494
  %v3621 = vpop.permute.xlu0 %3620
  %3623 = vset.pattern.permute.xlu0 0
  %3624 = vperm.xlu0 %3623, %v3498
  %v3625 = vpop.permute.xlu0 %3624
  %3627 = vset.pattern.permute.xlu0 0
  %3628 = vperm.xlu0 %3627, %v3502
  %v3629 = vpop.permute.xlu0 %3628
  %3631 = vset.pattern.permute.xlu0 0
  %3632 = vperm.xlu0 %3631, %v3506
  %v3633 = vpop.permute.xlu0 %3632
  %3635 = vset.pattern.permute.xlu0 0
  %3636 = vperm.xlu0 %3635, %v3510
  %v3637 = vpop.permute.xlu0 %3636
  %3639 = vset.pattern.permute.xlu0 0
  %3640 = vperm.xlu0 %3639, %v3514
  %v3641 = vpop.permute.xlu0 %3640
  %3643 = vset.pattern.permute.xlu0 0
  %3644 = vperm.xlu0 %3643, %v3518
  %v3645 = vpop.permute.xlu0 %3644
  %3647 = vset.pattern.permute.xlu0 0
  %3648 = vperm.xlu0 %3647, %v3522
  %v3649 = vpop.permute.xlu0 %3648
  %3651 = vset.pattern.permute.xlu0 0
  %3652 = vperm.xlu0 %3651, %v3526
  %v3653 = vpop.permute.xlu0 %3652
  %3655 = vset.pattern.permute.xlu0 0
  %3656 = vperm.xlu0 %3655, %v3530
  %v3657 = vpop.permute.xlu0 %3656
  %3659 = vset.pattern.permute.xlu0 0
  %3660 = vperm.xlu0 %3659, %v3534
  %v3661 = vpop.permute.xlu0 %3660
  %3663 = vset.pattern.permute.xlu0 0
  %3664 = vperm.xlu0 %3663, %v3538
  %v3665 = vpop.permute.xlu0 %3664
  %3667 = vset.pattern.permute.xlu0 0
  %3668 = vperm.xlu0 %3667, %v3542
  %v3669 = vpop.permute.xlu0 %3668
  %3671 = vset.pattern.permute.xlu0 0
  %3672 = vperm.xlu0 %3671, %v3546
  %v3673 = vpop.permute.xlu0 %3672
  %3675 = vset.pattern.permute.xlu0 0
  %3676 = vperm.xlu0 %3675, %v3550
  %v3677 = vpop.permute.xlu0 %3676
  %3679 = vset.pattern.permute.xlu0 0
  %3680 = vperm.xlu0 %3679, %v3554
  %v3681 = vpop.permute.xlu0 %3680
  %3683 = vset.pattern.permute.xlu0 0
  %3684 = vperm.xlu0 %3683, %v3558
  %v3685 = vpop.permute.xlu0 %3684
  %3687 = vset.pattern.permute.xlu0 0
  %3688 = vperm.xlu0 %3687, %v3562
  %v3689 = vpop.permute.xlu0 %3688
  %3691 = vset.pattern.permute.xlu0 0
  %3692 = vperm.xlu0 %3691, %v3566
  %v3693 = vpop.permute.xlu0 %3692
  %3695 = vset.pattern.permute.xlu0 0
  %3696 = vperm.xlu0 %3695, %v3570
  %v3697 = vpop.permute.xlu0 %3696
  %3699 = vset.pattern.permute.xlu0 0
  %3700 = vperm.xlu0 %3699, %v3574
  %v3701 = vpop.permute.xlu0 %3700
  %v3703 = vadd.f32 %v3351, %v3577
  %v3704 = vadd.f32 %v3352, %v3581
  %v3705 = vadd.f32 %v3353, %v3585
  %v3706 = vadd.f32 %v3354, %v3589
  %v3707 = vadd.f32 %v3355, %v3593
  %v3708 = vadd.f32 %v3356, %v3597
  %v3709 = vadd.f32 %v3357, %v3601
  %v3710 = vadd.f32 %v3358, %v3605
  %v3711 = vadd.f32 %v3359, %v3609
  %v3712 = vadd.f32 %v3360, %v3613
  %v3713 = vadd.f32 %v3361, %v3617
  %v3714 = vadd.f32 %v3362, %v3621
  %v3715 = vadd.f32 %v3363, %v3625
  %v3716 = vadd.f32 %v3364, %v3629
  %v3717 = vadd.f32 %v3365, %v3633
  %v3718 = vadd.f32 %v3366, %v3637
  %v3719 = vadd.f32 %v3367, %v3641
  %v3720 = vadd.f32 %v3368, %v3645
  %v3721 = vadd.f32 %v3369, %v3649
  %v3722 = vadd.f32 %v3370, %v3653
  %v3723 = vadd.f32 %v3371, %v3657
  %v3724 = vadd.f32 %v3372, %v3661
  %v3725 = vadd.f32 %v3373, %v3665
  %v3726 = vadd.f32 %v3374, %v3669
  %v3727 = vadd.f32 %v3375, %v3673
  %v3728 = vadd.f32 %v3376, %v3677
  %v3729 = vadd.f32 %v3377, %v3681
  %v3730 = vadd.f32 %v3378, %v3685
  %v3731 = vadd.f32 %v3379, %v3689
  %v3732 = vadd.f32 %v3380, %v3693
  %v3733 = vadd.f32 %v3381, %v3697
  %v3734 = vadd.f32 %v3382, %v3701
  %3767 = vrot.lane.b32.xlu0 %v3703, 126
  %v3768 = vpop.permute.xlu0 %3767
  %3769 = vrot.lane.b32.xlu0 %v3704, 126
  %v3770 = vpop.permute.xlu0 %3769
  %3771 = vrot.lane.b32.xlu0 %v3705, 126
  %v3772 = vpop.permute.xlu0 %3771
  %3773 = vrot.lane.b32.xlu0 %v3706, 126
  %v3774 = vpop.permute.xlu0 %3773
  %3775 = vrot.lane.b32.xlu0 %v3707, 126
  %v3776 = vpop.permute.xlu0 %3775
  %3777 = vrot.lane.b32.xlu0 %v3708, 126
  %v3778 = vpop.permute.xlu0 %3777
  %3779 = vrot.lane.b32.xlu0 %v3709, 126
  %v3780 = vpop.permute.xlu0 %3779
  %3781 = vrot.lane.b32.xlu0 %v3710, 126
  %v3782 = vpop.permute.xlu0 %3781
  %3783 = vrot.lane.b32.xlu0 %v3711, 126
  %v3784 = vpop.permute.xlu0 %3783
  %3785 = vrot.lane.b32.xlu0 %v3712, 126
  %v3786 = vpop.permute.xlu0 %3785
  %3787 = vrot.lane.b32.xlu0 %v3713, 126
  %v3788 = vpop.permute.xlu0 %3787
  %3789 = vrot.lane.b32.xlu0 %v3714, 126
  %v3790 = vpop.permute.xlu0 %3789
  %3791 = vrot.lane.b32.xlu0 %v3715, 126
  %v3792 = vpop.permute.xlu0 %3791
  %3793 = vrot.lane.b32.xlu0 %v3716, 126
  %v3794 = vpop.permute.xlu0 %3793
  %3795 = vrot.lane.b32.xlu0 %v3717, 126
  %v3796 = vpop.permute.xlu0 %3795
  %3797 = vrot.lane.b32.xlu0 %v3718, 126
  %v3798 = vpop.permute.xlu0 %3797
  %3799 = vrot.lane.b32.xlu0 %v3719, 126
  %v3800 = vpop.permute.xlu0 %3799
  %3801 = vrot.lane.b32.xlu0 %v3720, 126
  %v3802 = vpop.permute.xlu0 %3801
  %3803 = vrot.lane.b32.xlu0 %v3721, 126
  %v3804 = vpop.permute.xlu0 %3803
  %3805 = vrot.lane.b32.xlu0 %v3722, 126
  %v3806 = vpop.permute.xlu0 %3805
  %3807 = vrot.lane.b32.xlu0 %v3723, 126
  %v3808 = vpop.permute.xlu0 %3807
  %3809 = vrot.lane.b32.xlu0 %v3724, 126
  %v3810 = vpop.permute.xlu0 %3809
  %3811 = vrot.lane.b32.xlu0 %v3725, 126
  %v3812 = vpop.permute.xlu0 %3811
  %3813 = vrot.lane.b32.xlu0 %v3726, 126
  %v3814 = vpop.permute.xlu0 %3813
  %3815 = vrot.lane.b32.xlu0 %v3727, 126
  %v3816 = vpop.permute.xlu0 %3815
  %3817 = vrot.lane.b32.xlu0 %v3728, 126
  %v3818 = vpop.permute.xlu0 %3817
  %3819 = vrot.lane.b32.xlu0 %v3729, 126
  %v3820 = vpop.permute.xlu0 %3819
  %3821 = vrot.lane.b32.xlu0 %v3730, 126
  %v3822 = vpop.permute.xlu0 %3821
  %3823 = vrot.lane.b32.xlu0 %v3731, 126
  %v3824 = vpop.permute.xlu0 %3823
  %3825 = vrot.lane.b32.xlu0 %v3732, 126
  %v3826 = vpop.permute.xlu0 %3825
  %3827 = vrot.lane.b32.xlu0 %v3733, 126
  %v3828 = vpop.permute.xlu0 %3827
  %3829 = vrot.lane.b32.xlu0 %v3734, 126
  %v3830 = vpop.permute.xlu0 %3829
  %vm3863 = vcmask 123904
  %v3864 = vsel %vm3863, %v3768, 0.0
  %3865 = vadd.xlane.f32.xlu0 %v3864
  %v3866 = vpop.xlane.xlu0 %3865
  %v3867 = vsel %vm3863, %v3770, 0.0
  %3868 = vadd.xlane.f32.xlu0 %v3867
  %v3869 = vpop.xlane.xlu0 %3868
  %v3870 = vsel %vm3863, %v3772, 0.0
  %3871 = vadd.xlane.f32.xlu0 %v3870
  %v3872 = vpop.xlane.xlu0 %3871
  %v3873 = vsel %vm3863, %v3774, 0.0
  %3874 = vadd.xlane.f32.xlu0 %v3873
  %v3875 = vpop.xlane.xlu0 %3874
  %v3876 = vsel %vm3863, %v3776, 0.0
  %3877 = vadd.xlane.f32.xlu0 %v3876
  %v3878 = vpop.xlane.xlu0 %3877
  %v3879 = vsel %vm3863, %v3778, 0.0
  %3880 = vadd.xlane.f32.xlu0 %v3879
  %v3881 = vpop.xlane.xlu0 %3880
  %v3882 = vsel %vm3863, %v3780, 0.0
  %3883 = vadd.xlane.f32.xlu0 %v3882
  %v3884 = vpop.xlane.xlu0 %3883
  %v3885 = vsel %vm3863, %v3782, 0.0
  %3886 = vadd.xlane.f32.xlu0 %v3885
  %v3887 = vpop.xlane.xlu0 %3886
  %v3888 = vsel %vm3863, %v3784, 0.0
  %3889 = vadd.xlane.f32.xlu0 %v3888
  %v3890 = vpop.xlane.xlu0 %3889
  %v3891 = vsel %vm3863, %v3786, 0.0
  %3892 = vadd.xlane.f32.xlu0 %v3891
  %v3893 = vpop.xlane.xlu0 %3892
  %v3894 = vsel %vm3863, %v3788, 0.0
  %3895 = vadd.xlane.f32.xlu0 %v3894
  %v3896 = vpop.xlane.xlu0 %3895
  %v3897 = vsel %vm3863, %v3790, 0.0
  %3898 = vadd.xlane.f32.xlu0 %v3897
  %v3899 = vpop.xlane.xlu0 %3898
  %v3900 = vsel %vm3863, %v3792, 0.0
  %3901 = vadd.xlane.f32.xlu0 %v3900
  %v3902 = vpop.xlane.xlu0 %3901
  %v3903 = vsel %vm3863, %v3794, 0.0
  %3904 = vadd.xlane.f32.xlu0 %v3903
  %v3905 = vpop.xlane.xlu0 %3904
  %v3906 = vsel %vm3863, %v3796, 0.0
  %3907 = vadd.xlane.f32.xlu0 %v3906
  %v3908 = vpop.xlane.xlu0 %3907
  %v3909 = vsel %vm3863, %v3798, 0.0
  %3910 = vadd.xlane.f32.xlu0 %v3909
  %v3911 = vpop.xlane.xlu0 %3910
  %v3912 = vsel %vm3863, %v3800, 0.0
  %3913 = vadd.xlane.f32.xlu0 %v3912
  %v3914 = vpop.xlane.xlu0 %3913
  %v3915 = vsel %vm3863, %v3802, 0.0
  %3916 = vadd.xlane.f32.xlu0 %v3915
  %v3917 = vpop.xlane.xlu0 %3916
  %v3918 = vsel %vm3863, %v3804, 0.0
  %3919 = vadd.xlane.f32.xlu0 %v3918
  %v3920 = vpop.xlane.xlu0 %3919
  %v3921 = vsel %vm3863, %v3806, 0.0
  %3922 = vadd.xlane.f32.xlu0 %v3921
  %v3923 = vpop.xlane.xlu0 %3922
  %v3924 = vsel %vm3863, %v3808, 0.0
  %3925 = vadd.xlane.f32.xlu0 %v3924
  %v3926 = vpop.xlane.xlu0 %3925
  %v3927 = vsel %vm3863, %v3810, 0.0
  %3928 = vadd.xlane.f32.xlu0 %v3927
  %v3929 = vpop.xlane.xlu0 %3928
  %v3930 = vsel %vm3863, %v3812, 0.0
  %3931 = vadd.xlane.f32.xlu0 %v3930
  %v3932 = vpop.xlane.xlu0 %3931
  %v3933 = vsel %vm3863, %v3814, 0.0
  %3934 = vadd.xlane.f32.xlu0 %v3933
  %v3935 = vpop.xlane.xlu0 %3934
  %v3936 = vsel %vm3863, %v3816, 0.0
  %3937 = vadd.xlane.f32.xlu0 %v3936
  %v3938 = vpop.xlane.xlu0 %3937
  %v3939 = vsel %vm3863, %v3818, 0.0
  %3940 = vadd.xlane.f32.xlu0 %v3939
  %v3941 = vpop.xlane.xlu0 %3940
  %v3942 = vsel %vm3863, %v3820, 0.0
  %3943 = vadd.xlane.f32.xlu0 %v3942
  %v3944 = vpop.xlane.xlu0 %3943
  %v3945 = vsel %vm3863, %v3822, 0.0
  %3946 = vadd.xlane.f32.xlu0 %v3945
  %v3947 = vpop.xlane.xlu0 %3946
  %v3948 = vsel %vm3863, %v3824, 0.0
  %3949 = vadd.xlane.f32.xlu0 %v3948
  %v3950 = vpop.xlane.xlu0 %3949
  %v3951 = vsel %vm3863, %v3826, 0.0
  %3952 = vadd.xlane.f32.xlu0 %v3951
  %v3953 = vpop.xlane.xlu0 %3952
  %v3954 = vsel %vm3863, %v3828, 0.0
  %3955 = vadd.xlane.f32.xlu0 %v3954
  %v3956 = vpop.xlane.xlu0 %3955
  %v3957 = vsel %vm3863, %v3830, 0.0
  %3958 = vadd.xlane.f32.xlu0 %v3957
  %v3959 = vpop.xlane.xlu0 %3958
  %vm3960 = vcmask 1041408
  %v3961 = vsel %vm3960, %v3866, 0.0
  %v3962 = vrot.slane %v3961, 4
  %v3963 = vadd.f32 %v3961, %v3962
  %v3964 = vrot.slane %v3963, 2
  %v3965 = vadd.f32 %v3963, %v3964
  %v3966 = vrot.slane %v3965, 1
  %v3967 = vadd.f32 %v3965, %v3966
  %v3968 = vsel %vm3960, %v3869, 0.0
  %v3969 = vrot.slane %v3968, 4
  %v3970 = vadd.f32 %v3968, %v3969
  %v3971 = vrot.slane %v3970, 2
  %v3972 = vadd.f32 %v3970, %v3971
  %v3973 = vrot.slane %v3972, 1
  %v3974 = vadd.f32 %v3972, %v3973
  %v3975 = vsel %vm3960, %v3872, 0.0
  %v3976 = vrot.slane %v3975, 4
  %v3977 = vadd.f32 %v3975, %v3976
  %v3978 = vrot.slane %v3977, 2
  %v3979 = vadd.f32 %v3977, %v3978
  %v3980 = vrot.slane %v3979, 1
  %v3981 = vadd.f32 %v3979, %v3980
  %v3982 = vsel %vm3960, %v3875, 0.0
  %v3983 = vrot.slane %v3982, 4
  %v3984 = vadd.f32 %v3982, %v3983
  %v3985 = vrot.slane %v3984, 2
  %v3986 = vadd.f32 %v3984, %v3985
  %v3987 = vrot.slane %v3986, 1
  %v3988 = vadd.f32 %v3986, %v3987
  %v3989 = vsel %vm3960, %v3878, 0.0
  %v3990 = vrot.slane %v3989, 4
  %v3991 = vadd.f32 %v3989, %v3990
  %v3992 = vrot.slane %v3991, 2
  %v3993 = vadd.f32 %v3991, %v3992
  %v3994 = vrot.slane %v3993, 1
  %v3995 = vadd.f32 %v3993, %v3994
  %v3996 = vsel %vm3960, %v3881, 0.0
  %v3997 = vrot.slane %v3996, 4
  %v3998 = vadd.f32 %v3996, %v3997
  %v3999 = vrot.slane %v3998, 2
  %v4000 = vadd.f32 %v3998, %v3999
  %v4001 = vrot.slane %v4000, 1
  %v4002 = vadd.f32 %v4000, %v4001
  %v4003 = vsel %vm3960, %v3884, 0.0
  %v4004 = vrot.slane %v4003, 4
  %v4005 = vadd.f32 %v4003, %v4004
  %v4006 = vrot.slane %v4005, 2
  %v4007 = vadd.f32 %v4005, %v4006
  %v4008 = vrot.slane %v4007, 1
  %v4009 = vadd.f32 %v4007, %v4008
  %v4010 = vsel %vm3960, %v3887, 0.0
  %v4011 = vrot.slane %v4010, 4
  %v4012 = vadd.f32 %v4010, %v4011
  %v4013 = vrot.slane %v4012, 2
  %v4014 = vadd.f32 %v4012, %v4013
  %v4015 = vrot.slane %v4014, 1
  %v4016 = vadd.f32 %v4014, %v4015
  %v4017 = vsel %vm3960, %v3890, 0.0
  %v4018 = vrot.slane %v4017, 4
  %v4019 = vadd.f32 %v4017, %v4018
  %v4020 = vrot.slane %v4019, 2
  %v4021 = vadd.f32 %v4019, %v4020
  %v4022 = vrot.slane %v4021, 1
  %v4023 = vadd.f32 %v4021, %v4022
  %v4024 = vsel %vm3960, %v3893, 0.0
  %v4025 = vrot.slane %v4024, 4
  %v4026 = vadd.f32 %v4024, %v4025
  %v4027 = vrot.slane %v4026, 2
  %v4028 = vadd.f32 %v4026, %v4027
  %v4029 = vrot.slane %v4028, 1
  %v4030 = vadd.f32 %v4028, %v4029
  %v4031 = vsel %vm3960, %v3896, 0.0
  %v4032 = vrot.slane %v4031, 4
  %v4033 = vadd.f32 %v4031, %v4032
  %v4034 = vrot.slane %v4033, 2
  %v4035 = vadd.f32 %v4033, %v4034
  %v4036 = vrot.slane %v4035, 1
  %v4037 = vadd.f32 %v4035, %v4036
  %v4038 = vsel %vm3960, %v3899, 0.0
  %v4039 = vrot.slane %v4038, 4
  %v4040 = vadd.f32 %v4038, %v4039
  %v4041 = vrot.slane %v4040, 2
  %v4042 = vadd.f32 %v4040, %v4041
  %v4043 = vrot.slane %v4042, 1
  %v4044 = vadd.f32 %v4042, %v4043
  %v4045 = vsel %vm3960, %v3902, 0.0
  %v4046 = vrot.slane %v4045, 4
  %v4047 = vadd.f32 %v4045, %v4046
  %v4048 = vrot.slane %v4047, 2
  %v4049 = vadd.f32 %v4047, %v4048
  %v4050 = vrot.slane %v4049, 1
  %v4051 = vadd.f32 %v4049, %v4050
  %v4052 = vsel %vm3960, %v3905, 0.0
  %v4053 = vrot.slane %v4052, 4
  %v4054 = vadd.f32 %v4052, %v4053
  %v4055 = vrot.slane %v4054, 2
  %v4056 = vadd.f32 %v4054, %v4055
  %v4057 = vrot.slane %v4056, 1
  %v4058 = vadd.f32 %v4056, %v4057
  %v4059 = vsel %vm3960, %v3908, 0.0
  %v4060 = vrot.slane %v4059, 4
  %v4061 = vadd.f32 %v4059, %v4060
  %v4062 = vrot.slane %v4061, 2
  %v4063 = vadd.f32 %v4061, %v4062
  %v4064 = vrot.slane %v4063, 1
  %v4065 = vadd.f32 %v4063, %v4064
  %v4066 = vsel %vm3960, %v3911, 0.0
  %v4067 = vrot.slane %v4066, 4
  %v4068 = vadd.f32 %v4066, %v4067
  %v4069 = vrot.slane %v4068, 2
  %v4070 = vadd.f32 %v4068, %v4069
  %v4071 = vrot.slane %v4070, 1
  %v4072 = vadd.f32 %v4070, %v4071
  %v4073 = vsel %vm3960, %v3914, 0.0
  %v4074 = vrot.slane %v4073, 4
  %v4075 = vadd.f32 %v4073, %v4074
  %v4076 = vrot.slane %v4075, 2
  %v4077 = vadd.f32 %v4075, %v4076
  %v4078 = vrot.slane %v4077, 1
  %v4079 = vadd.f32 %v4077, %v4078
  %v4080 = vsel %vm3960, %v3917, 0.0
  %v4081 = vrot.slane %v4080, 4
  %v4082 = vadd.f32 %v4080, %v4081
  %v4083 = vrot.slane %v4082, 2
  %v4084 = vadd.f32 %v4082, %v4083
  %v4085 = vrot.slane %v4084, 1
  %v4086 = vadd.f32 %v4084, %v4085
  %v4087 = vsel %vm3960, %v3920, 0.0
  %v4088 = vrot.slane %v4087, 4
  %v4089 = vadd.f32 %v4087, %v4088
  %v4090 = vrot.slane %v4089, 2
  %v4091 = vadd.f32 %v4089, %v4090
  %v4092 = vrot.slane %v4091, 1
  %v4093 = vadd.f32 %v4091, %v4092
  %v4094 = vsel %vm3960, %v3923, 0.0
  %v4095 = vrot.slane %v4094, 4
  %v4096 = vadd.f32 %v4094, %v4095
  %v4097 = vrot.slane %v4096, 2
  %v4098 = vadd.f32 %v4096, %v4097
  %v4099 = vrot.slane %v4098, 1
  %v4100 = vadd.f32 %v4098, %v4099
  %v4101 = vsel %vm3960, %v3926, 0.0
  %v4102 = vrot.slane %v4101, 4
  %v4103 = vadd.f32 %v4101, %v4102
  %v4104 = vrot.slane %v4103, 2
  %v4105 = vadd.f32 %v4103, %v4104
  %v4106 = vrot.slane %v4105, 1
  %v4107 = vadd.f32 %v4105, %v4106
  %v4108 = vsel %vm3960, %v3929, 0.0
  %v4109 = vrot.slane %v4108, 4
  %v4110 = vadd.f32 %v4108, %v4109
  %v4111 = vrot.slane %v4110, 2
  %v4112 = vadd.f32 %v4110, %v4111
  %v4113 = vrot.slane %v4112, 1
  %v4114 = vadd.f32 %v4112, %v4113
  %v4115 = vsel %vm3960, %v3932, 0.0
  %v4116 = vrot.slane %v4115, 4
  %v4117 = vadd.f32 %v4115, %v4116
  %v4118 = vrot.slane %v4117, 2
  %v4119 = vadd.f32 %v4117, %v4118
  %v4120 = vrot.slane %v4119, 1
  %v4121 = vadd.f32 %v4119, %v4120
  %v4122 = vsel %vm3960, %v3935, 0.0
  %v4123 = vrot.slane %v4122, 4
  %v4124 = vadd.f32 %v4122, %v4123
  %v4125 = vrot.slane %v4124, 2
  %v4126 = vadd.f32 %v4124, %v4125
  %v4127 = vrot.slane %v4126, 1
  %v4128 = vadd.f32 %v4126, %v4127
  %v4129 = vsel %vm3960, %v3938, 0.0
  %v4130 = vrot.slane %v4129, 4
  %v4131 = vadd.f32 %v4129, %v4130
  %v4132 = vrot.slane %v4131, 2
  %v4133 = vadd.f32 %v4131, %v4132
  %v4134 = vrot.slane %v4133, 1
  %v4135 = vadd.f32 %v4133, %v4134
  %v4136 = vsel %vm3960, %v3941, 0.0
  %v4137 = vrot.slane %v4136, 4
  %v4138 = vadd.f32 %v4136, %v4137
  %v4139 = vrot.slane %v4138, 2
  %v4140 = vadd.f32 %v4138, %v4139
  %v4141 = vrot.slane %v4140, 1
  %v4142 = vadd.f32 %v4140, %v4141
  %v4143 = vsel %vm3960, %v3944, 0.0
  %v4144 = vrot.slane %v4143, 4
  %v4145 = vadd.f32 %v4143, %v4144
  %v4146 = vrot.slane %v4145, 2
  %v4147 = vadd.f32 %v4145, %v4146
  %v4148 = vrot.slane %v4147, 1
  %v4149 = vadd.f32 %v4147, %v4148
  %v4150 = vsel %vm3960, %v3947, 0.0
  %v4151 = vrot.slane %v4150, 4
  %v4152 = vadd.f32 %v4150, %v4151
  %v4153 = vrot.slane %v4152, 2
  %v4154 = vadd.f32 %v4152, %v4153
  %v4155 = vrot.slane %v4154, 1
  %v4156 = vadd.f32 %v4154, %v4155
  %v4157 = vsel %vm3960, %v3950, 0.0
  %v4158 = vrot.slane %v4157, 4
  %v4159 = vadd.f32 %v4157, %v4158
  %v4160 = vrot.slane %v4159, 2
  %v4161 = vadd.f32 %v4159, %v4160
  %v4162 = vrot.slane %v4161, 1
  %v4163 = vadd.f32 %v4161, %v4162
  %v4164 = vsel %vm3960, %v3953, 0.0
  %v4165 = vrot.slane %v4164, 4
  %v4166 = vadd.f32 %v4164, %v4165
  %v4167 = vrot.slane %v4166, 2
  %v4168 = vadd.f32 %v4166, %v4167
  %v4169 = vrot.slane %v4168, 1
  %v4170 = vadd.f32 %v4168, %v4169
  %v4171 = vsel %vm3960, %v3956, 0.0
  %v4172 = vrot.slane %v4171, 4
  %v4173 = vadd.f32 %v4171, %v4172
  %v4174 = vrot.slane %v4173, 2
  %v4175 = vadd.f32 %v4173, %v4174
  %v4176 = vrot.slane %v4175, 1
  %v4177 = vadd.f32 %v4175, %v4176
  %v4178 = vsel %vm3960, %v3959, 0.0
  %v4179 = vrot.slane %v4178, 4
  %v4180 = vadd.f32 %v4178, %v4179
  %v4181 = vrot.slane %v4180, 2
  %v4182 = vadd.f32 %v4180, %v4181
  %v4183 = vrot.slane %v4182, 1
  %v4184 = vadd.f32 %v4182, %v4183
  %v4185 = vrcp.pop 32.0
  %v4186 = vmul.f32 %v3967, %v4185
  %v4187 = vmul.f32 %v3974, %v4185
  %v4188 = vmul.f32 %v3981, %v4185
  %v4189 = vmul.f32 %v3988, %v4185
  %v4190 = vmul.f32 %v3995, %v4185
  %v4191 = vmul.f32 %v4002, %v4185
  %v4192 = vmul.f32 %v4009, %v4185
  %v4193 = vmul.f32 %v4016, %v4185
  %v4194 = vmul.f32 %v4023, %v4185
  %v4195 = vmul.f32 %v4030, %v4185
  %v4196 = vmul.f32 %v4037, %v4185
  %v4197 = vmul.f32 %v4044, %v4185
  %v4198 = vmul.f32 %v4051, %v4185
  %v4199 = vmul.f32 %v4058, %v4185
  %v4200 = vmul.f32 %v4065, %v4185
  %v4201 = vmul.f32 %v4072, %v4185
  %v4202 = vmul.f32 %v4079, %v4185
  %v4203 = vmul.f32 %v4086, %v4185
  %v4204 = vmul.f32 %v4093, %v4185
  %v4205 = vmul.f32 %v4100, %v4185
  %v4206 = vmul.f32 %v4107, %v4185
  %v4207 = vmul.f32 %v4114, %v4185
  %v4208 = vmul.f32 %v4121, %v4185
  %v4209 = vmul.f32 %v4128, %v4185
  %v4210 = vmul.f32 %v4135, %v4185
  %v4211 = vmul.f32 %v4142, %v4185
  %v4212 = vmul.f32 %v4149, %v4185
  %v4213 = vmul.f32 %v4156, %v4185
  %v4214 = vmul.f32 %v4163, %v4185
  %v4215 = vmul.f32 %v4170, %v4185
  %v4216 = vmul.f32 %v4177, %v4185
  %v4217 = vmul.f32 %v4184, %v4185
  %v4218 = vsub.f32 %v3703, %v4186
  %v4219 = vsub.f32 %v3704, %v4187
  %v4220 = vsub.f32 %v3705, %v4188
  %v4221 = vsub.f32 %v3706, %v4189
  %v4222 = vsub.f32 %v3707, %v4190
  %v4223 = vsub.f32 %v3708, %v4191
  %v4224 = vsub.f32 %v3709, %v4192
  %v4225 = vsub.f32 %v3710, %v4193
  %v4226 = vsub.f32 %v3711, %v4194
  %v4227 = vsub.f32 %v3712, %v4195
  %v4228 = vsub.f32 %v3713, %v4196
  %v4229 = vsub.f32 %v3714, %v4197
  %v4230 = vsub.f32 %v3715, %v4198
  %v4231 = vsub.f32 %v3716, %v4199
  %v4232 = vsub.f32 %v3717, %v4200
  %v4233 = vsub.f32 %v3718, %v4201
  %v4234 = vsub.f32 %v3719, %v4202
  %v4235 = vsub.f32 %v3720, %v4203
  %v4236 = vsub.f32 %v3721, %v4204
  %v4237 = vsub.f32 %v3722, %v4205
  %v4238 = vsub.f32 %v3723, %v4206
  %v4239 = vsub.f32 %v3724, %v4207
  %v4240 = vsub.f32 %v3725, %v4208
  %v4241 = vsub.f32 %v3726, %v4209
  %v4242 = vsub.f32 %v3727, %v4210
  %v4243 = vsub.f32 %v3728, %v4211
  %v4244 = vsub.f32 %v3729, %v4212
  %v4245 = vsub.f32 %v3730, %v4213
  %v4246 = vsub.f32 %v3731, %v4214
  %v4247 = vsub.f32 %v3732, %v4215
  %v4248 = vsub.f32 %v3733, %v4216
  %v4249 = vsub.f32 %v3734, %v4217
  %v4250 = vmul.f32 %v4218, %v4218
  %v4251 = vmul.f32 %v4219, %v4219
  %v4252 = vmul.f32 %v4220, %v4220
  %v4253 = vmul.f32 %v4221, %v4221
  %v4254 = vmul.f32 %v4222, %v4222
  %v4255 = vmul.f32 %v4223, %v4223
  %v4256 = vmul.f32 %v4224, %v4224
  %v4257 = vmul.f32 %v4225, %v4225
  %v4258 = vmul.f32 %v4226, %v4226
  %v4259 = vmul.f32 %v4227, %v4227
  %v4260 = vmul.f32 %v4228, %v4228
  %v4261 = vmul.f32 %v4229, %v4229
  %v4262 = vmul.f32 %v4230, %v4230
  %v4263 = vmul.f32 %v4231, %v4231
  %v4264 = vmul.f32 %v4232, %v4232
  %v4265 = vmul.f32 %v4233, %v4233
  %v4266 = vmul.f32 %v4234, %v4234
  %v4267 = vmul.f32 %v4235, %v4235
  %v4268 = vmul.f32 %v4236, %v4236
  %v4269 = vmul.f32 %v4237, %v4237
  %v4270 = vmul.f32 %v4238, %v4238
  %v4271 = vmul.f32 %v4239, %v4239
  %v4272 = vmul.f32 %v4240, %v4240
  %v4273 = vmul.f32 %v4241, %v4241
  %v4274 = vmul.f32 %v4242, %v4242
  %v4275 = vmul.f32 %v4243, %v4243
  %v4276 = vmul.f32 %v4244, %v4244
  %v4277 = vmul.f32 %v4245, %v4245
  %v4278 = vmul.f32 %v4246, %v4246
  %v4279 = vmul.f32 %v4247, %v4247
  %v4280 = vmul.f32 %v4248, %v4248
  %v4281 = vmul.f32 %v4249, %v4249
  %4314 = vrot.lane.b32.xlu0 %v4250, 126
  %v4315 = vpop.permute.xlu0 %4314
  %4316 = vrot.lane.b32.xlu0 %v4251, 126
  %v4317 = vpop.permute.xlu0 %4316
  %4318 = vrot.lane.b32.xlu0 %v4252, 126
  %v4319 = vpop.permute.xlu0 %4318
  %4320 = vrot.lane.b32.xlu0 %v4253, 126
  %v4321 = vpop.permute.xlu0 %4320
  %4322 = vrot.lane.b32.xlu0 %v4254, 126
  %v4323 = vpop.permute.xlu0 %4322
  %4324 = vrot.lane.b32.xlu0 %v4255, 126
  %v4325 = vpop.permute.xlu0 %4324
  %4326 = vrot.lane.b32.xlu0 %v4256, 126
  %v4327 = vpop.permute.xlu0 %4326
  %4328 = vrot.lane.b32.xlu0 %v4257, 126
  %v4329 = vpop.permute.xlu0 %4328
  %4330 = vrot.lane.b32.xlu0 %v4258, 126
  %v4331 = vpop.permute.xlu0 %4330
  %4332 = vrot.lane.b32.xlu0 %v4259, 126
  %v4333 = vpop.permute.xlu0 %4332
  %4334 = vrot.lane.b32.xlu0 %v4260, 126
  %v4335 = vpop.permute.xlu0 %4334
  %4336 = vrot.lane.b32.xlu0 %v4261, 126
  %v4337 = vpop.permute.xlu0 %4336
  %4338 = vrot.lane.b32.xlu0 %v4262, 126
  %v4339 = vpop.permute.xlu0 %4338
  %4340 = vrot.lane.b32.xlu0 %v4263, 126
  %v4341 = vpop.permute.xlu0 %4340
  %4342 = vrot.lane.b32.xlu0 %v4264, 126
  %v4343 = vpop.permute.xlu0 %4342
  %4344 = vrot.lane.b32.xlu0 %v4265, 126
  %v4345 = vpop.permute.xlu0 %4344
  %4346 = vrot.lane.b32.xlu0 %v4266, 126
  %v4347 = vpop.permute.xlu0 %4346
  %4348 = vrot.lane.b32.xlu0 %v4267, 126
  %v4349 = vpop.permute.xlu0 %4348
  %4350 = vrot.lane.b32.xlu0 %v4268, 126
  %v4351 = vpop.permute.xlu0 %4350
  %4352 = vrot.lane.b32.xlu0 %v4269, 126
  %v4353 = vpop.permute.xlu0 %4352
  %4354 = vrot.lane.b32.xlu0 %v4270, 126
  %v4355 = vpop.permute.xlu0 %4354
  %4356 = vrot.lane.b32.xlu0 %v4271, 126
  %v4357 = vpop.permute.xlu0 %4356
  %4358 = vrot.lane.b32.xlu0 %v4272, 126
  %v4359 = vpop.permute.xlu0 %4358
  %4360 = vrot.lane.b32.xlu0 %v4273, 126
  %v4361 = vpop.permute.xlu0 %4360
  %4362 = vrot.lane.b32.xlu0 %v4274, 126
  %v4363 = vpop.permute.xlu0 %4362
  %4364 = vrot.lane.b32.xlu0 %v4275, 126
  %v4365 = vpop.permute.xlu0 %4364
  %4366 = vrot.lane.b32.xlu0 %v4276, 126
  %v4367 = vpop.permute.xlu0 %4366
  %4368 = vrot.lane.b32.xlu0 %v4277, 126
  %v4369 = vpop.permute.xlu0 %4368
  %4370 = vrot.lane.b32.xlu0 %v4278, 126
  %v4371 = vpop.permute.xlu0 %4370
  %4372 = vrot.lane.b32.xlu0 %v4279, 126
  %v4373 = vpop.permute.xlu0 %4372
  %4374 = vrot.lane.b32.xlu0 %v4280, 126
  %v4375 = vpop.permute.xlu0 %4374
  %4376 = vrot.lane.b32.xlu0 %v4281, 126
  %v4377 = vpop.permute.xlu0 %4376
  %v4410 = vsel %vm3863, %v4315, 0.0
  %4411 = vadd.xlane.f32.xlu0 %v4410
  %v4412 = vpop.xlane.xlu0 %4411
  %v4413 = vsel %vm3863, %v4317, 0.0
  %4414 = vadd.xlane.f32.xlu0 %v4413
  %v4415 = vpop.xlane.xlu0 %4414
  %v4416 = vsel %vm3863, %v4319, 0.0
  %4417 = vadd.xlane.f32.xlu0 %v4416
  %v4418 = vpop.xlane.xlu0 %4417
  %v4419 = vsel %vm3863, %v4321, 0.0
  %4420 = vadd.xlane.f32.xlu0 %v4419
  %v4421 = vpop.xlane.xlu0 %4420
  %v4422 = vsel %vm3863, %v4323, 0.0
  %4423 = vadd.xlane.f32.xlu0 %v4422
  %v4424 = vpop.xlane.xlu0 %4423
  %v4425 = vsel %vm3863, %v4325, 0.0
  %4426 = vadd.xlane.f32.xlu0 %v4425
  %v4427 = vpop.xlane.xlu0 %4426
  %v4428 = vsel %vm3863, %v4327, 0.0
  %4429 = vadd.xlane.f32.xlu0 %v4428
  %v4430 = vpop.xlane.xlu0 %4429
  %v4431 = vsel %vm3863, %v4329, 0.0
  %4432 = vadd.xlane.f32.xlu0 %v4431
  %v4433 = vpop.xlane.xlu0 %4432
  %v4434 = vsel %vm3863, %v4331, 0.0
  %4435 = vadd.xlane.f32.xlu0 %v4434
  %v4436 = vpop.xlane.xlu0 %4435
  %v4437 = vsel %vm3863, %v4333, 0.0
  %4438 = vadd.xlane.f32.xlu0 %v4437
  %v4439 = vpop.xlane.xlu0 %4438
  %v4440 = vsel %vm3863, %v4335, 0.0
  %4441 = vadd.xlane.f32.xlu0 %v4440
  %v4442 = vpop.xlane.xlu0 %4441
  %v4443 = vsel %vm3863, %v4337, 0.0
  %4444 = vadd.xlane.f32.xlu0 %v4443
  %v4445 = vpop.xlane.xlu0 %4444
  %v4446 = vsel %vm3863, %v4339, 0.0
  %4447 = vadd.xlane.f32.xlu0 %v4446
  %v4448 = vpop.xlane.xlu0 %4447
  %v4449 = vsel %vm3863, %v4341, 0.0
  %4450 = vadd.xlane.f32.xlu0 %v4449
  %v4451 = vpop.xlane.xlu0 %4450
  %v4452 = vsel %vm3863, %v4343, 0.0
  %4453 = vadd.xlane.f32.xlu0 %v4452
  %v4454 = vpop.xlane.xlu0 %4453
  %v4455 = vsel %vm3863, %v4345, 0.0
  %4456 = vadd.xlane.f32.xlu0 %v4455
  %v4457 = vpop.xlane.xlu0 %4456
  %v4458 = vsel %vm3863, %v4347, 0.0
  %4459 = vadd.xlane.f32.xlu0 %v4458
  %v4460 = vpop.xlane.xlu0 %4459
  %v4461 = vsel %vm3863, %v4349, 0.0
  %4462 = vadd.xlane.f32.xlu0 %v4461
  %v4463 = vpop.xlane.xlu0 %4462
  %v4464 = vsel %vm3863, %v4351, 0.0
  %4465 = vadd.xlane.f32.xlu0 %v4464
  %v4466 = vpop.xlane.xlu0 %4465
  %v4467 = vsel %vm3863, %v4353, 0.0
  %4468 = vadd.xlane.f32.xlu0 %v4467
  %v4469 = vpop.xlane.xlu0 %4468
  %v4470 = vsel %vm3863, %v4355, 0.0
  %4471 = vadd.xlane.f32.xlu0 %v4470
  %v4472 = vpop.xlane.xlu0 %4471
  %v4473 = vsel %vm3863, %v4357, 0.0
  %4474 = vadd.xlane.f32.xlu0 %v4473
  %v4475 = vpop.xlane.xlu0 %4474
  %v4476 = vsel %vm3863, %v4359, 0.0
  %4477 = vadd.xlane.f32.xlu0 %v4476
  %v4478 = vpop.xlane.xlu0 %4477
  %v4479 = vsel %vm3863, %v4361, 0.0
  %4480 = vadd.xlane.f32.xlu0 %v4479
  %v4481 = vpop.xlane.xlu0 %4480
  %v4482 = vsel %vm3863, %v4363, 0.0
  %4483 = vadd.xlane.f32.xlu0 %v4482
  %v4484 = vpop.xlane.xlu0 %4483
  %v4485 = vsel %vm3863, %v4365, 0.0
  %4486 = vadd.xlane.f32.xlu0 %v4485
  %v4487 = vpop.xlane.xlu0 %4486
  %v4488 = vsel %vm3863, %v4367, 0.0
  %4489 = vadd.xlane.f32.xlu0 %v4488
  %v4490 = vpop.xlane.xlu0 %4489
  %v4491 = vsel %vm3863, %v4369, 0.0
  %4492 = vadd.xlane.f32.xlu0 %v4491
  %v4493 = vpop.xlane.xlu0 %4492
  %v4494 = vsel %vm3863, %v4371, 0.0
  %4495 = vadd.xlane.f32.xlu0 %v4494
  %v4496 = vpop.xlane.xlu0 %4495
  %v4497 = vsel %vm3863, %v4373, 0.0
  %4498 = vadd.xlane.f32.xlu0 %v4497
  %v4499 = vpop.xlane.xlu0 %4498
  %v4500 = vsel %vm3863, %v4375, 0.0
  %4501 = vadd.xlane.f32.xlu0 %v4500
  %v4502 = vpop.xlane.xlu0 %4501
  %v4503 = vsel %vm3863, %v4377, 0.0
  %4504 = vadd.xlane.f32.xlu0 %v4503
  %v4505 = vpop.xlane.xlu0 %4504
  %v4506 = vsel %vm3960, %v4412, 0.0
  %v4507 = vrot.slane %v4506, 4
  %v4508 = vadd.f32 %v4506, %v4507
  %v4509 = vrot.slane %v4508, 2
  %v4510 = vadd.f32 %v4508, %v4509
  %v4511 = vrot.slane %v4510, 1
  %v4512 = vadd.f32 %v4510, %v4511
  %v4513 = vsel %vm3960, %v4415, 0.0
  %v4514 = vrot.slane %v4513, 4
  %v4515 = vadd.f32 %v4513, %v4514
  %v4516 = vrot.slane %v4515, 2
  %v4517 = vadd.f32 %v4515, %v4516
  %v4518 = vrot.slane %v4517, 1
  %v4519 = vadd.f32 %v4517, %v4518
  %v4520 = vsel %vm3960, %v4418, 0.0
  %v4521 = vrot.slane %v4520, 4
  %v4522 = vadd.f32 %v4520, %v4521
  %v4523 = vrot.slane %v4522, 2
  %v4524 = vadd.f32 %v4522, %v4523
  %v4525 = vrot.slane %v4524, 1
  %v4526 = vadd.f32 %v4524, %v4525
  %v4527 = vsel %vm3960, %v4421, 0.0
  %v4528 = vrot.slane %v4527, 4
  %v4529 = vadd.f32 %v4527, %v4528
  %v4530 = vrot.slane %v4529, 2
  %v4531 = vadd.f32 %v4529, %v4530
  %v4532 = vrot.slane %v4531, 1
  %v4533 = vadd.f32 %v4531, %v4532
  %v4534 = vsel %vm3960, %v4424, 0.0
  %v4535 = vrot.slane %v4534, 4
  %v4536 = vadd.f32 %v4534, %v4535
  %v4537 = vrot.slane %v4536, 2
  %v4538 = vadd.f32 %v4536, %v4537
  %v4539 = vrot.slane %v4538, 1
  %v4540 = vadd.f32 %v4538, %v4539
  %v4541 = vsel %vm3960, %v4427, 0.0
  %v4542 = vrot.slane %v4541, 4
  %v4543 = vadd.f32 %v4541, %v4542
  %v4544 = vrot.slane %v4543, 2
  %v4545 = vadd.f32 %v4543, %v4544
  %v4546 = vrot.slane %v4545, 1
  %v4547 = vadd.f32 %v4545, %v4546
  %v4548 = vsel %vm3960, %v4430, 0.0
  %v4549 = vrot.slane %v4548, 4
  %v4550 = vadd.f32 %v4548, %v4549
  %v4551 = vrot.slane %v4550, 2
  %v4552 = vadd.f32 %v4550, %v4551
  %v4553 = vrot.slane %v4552, 1
  %v4554 = vadd.f32 %v4552, %v4553
  %v4555 = vsel %vm3960, %v4433, 0.0
  %v4556 = vrot.slane %v4555, 4
  %v4557 = vadd.f32 %v4555, %v4556
  %v4558 = vrot.slane %v4557, 2
  %v4559 = vadd.f32 %v4557, %v4558
  %v4560 = vrot.slane %v4559, 1
  %v4561 = vadd.f32 %v4559, %v4560
  %v4562 = vsel %vm3960, %v4436, 0.0
  %v4563 = vrot.slane %v4562, 4
  %v4564 = vadd.f32 %v4562, %v4563
  %v4565 = vrot.slane %v4564, 2
  %v4566 = vadd.f32 %v4564, %v4565
  %v4567 = vrot.slane %v4566, 1
  %v4568 = vadd.f32 %v4566, %v4567
  %v4569 = vsel %vm3960, %v4439, 0.0
  %v4570 = vrot.slane %v4569, 4
  %v4571 = vadd.f32 %v4569, %v4570
  %v4572 = vrot.slane %v4571, 2
  %v4573 = vadd.f32 %v4571, %v4572
  %v4574 = vrot.slane %v4573, 1
  %v4575 = vadd.f32 %v4573, %v4574
  %v4576 = vsel %vm3960, %v4442, 0.0
  %v4577 = vrot.slane %v4576, 4
  %v4578 = vadd.f32 %v4576, %v4577
  %v4579 = vrot.slane %v4578, 2
  %v4580 = vadd.f32 %v4578, %v4579
  %v4581 = vrot.slane %v4580, 1
  %v4582 = vadd.f32 %v4580, %v4581
  %v4583 = vsel %vm3960, %v4445, 0.0
  %v4584 = vrot.slane %v4583, 4
  %v4585 = vadd.f32 %v4583, %v4584
  %v4586 = vrot.slane %v4585, 2
  %v4587 = vadd.f32 %v4585, %v4586
  %v4588 = vrot.slane %v4587, 1
  %v4589 = vadd.f32 %v4587, %v4588
  %v4590 = vsel %vm3960, %v4448, 0.0
  %v4591 = vrot.slane %v4590, 4
  %v4592 = vadd.f32 %v4590, %v4591
  %v4593 = vrot.slane %v4592, 2
  %v4594 = vadd.f32 %v4592, %v4593
  %v4595 = vrot.slane %v4594, 1
  %v4596 = vadd.f32 %v4594, %v4595
  %v4597 = vsel %vm3960, %v4451, 0.0
  %v4598 = vrot.slane %v4597, 4
  %v4599 = vadd.f32 %v4597, %v4598
  %v4600 = vrot.slane %v4599, 2
  %v4601 = vadd.f32 %v4599, %v4600
  %v4602 = vrot.slane %v4601, 1
  %v4603 = vadd.f32 %v4601, %v4602
  %v4604 = vsel %vm3960, %v4454, 0.0
  %v4605 = vrot.slane %v4604, 4
  %v4606 = vadd.f32 %v4604, %v4605
  %v4607 = vrot.slane %v4606, 2
  %v4608 = vadd.f32 %v4606, %v4607
  %v4609 = vrot.slane %v4608, 1
  %v4610 = vadd.f32 %v4608, %v4609
  %v4611 = vsel %vm3960, %v4457, 0.0
  %v4612 = vrot.slane %v4611, 4
  %v4613 = vadd.f32 %v4611, %v4612
  %v4614 = vrot.slane %v4613, 2
  %v4615 = vadd.f32 %v4613, %v4614
  %v4616 = vrot.slane %v4615, 1
  %v4617 = vadd.f32 %v4615, %v4616
  %v4618 = vsel %vm3960, %v4460, 0.0
  %v4619 = vrot.slane %v4618, 4
  %v4620 = vadd.f32 %v4618, %v4619
  %v4621 = vrot.slane %v4620, 2
  %v4622 = vadd.f32 %v4620, %v4621
  %v4623 = vrot.slane %v4622, 1
  %v4624 = vadd.f32 %v4622, %v4623
  %v4625 = vsel %vm3960, %v4463, 0.0
  %v4626 = vrot.slane %v4625, 4
  %v4627 = vadd.f32 %v4625, %v4626
  %v4628 = vrot.slane %v4627, 2
  %v4629 = vadd.f32 %v4627, %v4628
  %v4630 = vrot.slane %v4629, 1
  %v4631 = vadd.f32 %v4629, %v4630
  %v4632 = vsel %vm3960, %v4466, 0.0
  %v4633 = vrot.slane %v4632, 4
  %v4634 = vadd.f32 %v4632, %v4633
  %v4635 = vrot.slane %v4634, 2
  %v4636 = vadd.f32 %v4634, %v4635
  %v4637 = vrot.slane %v4636, 1
  %v4638 = vadd.f32 %v4636, %v4637
  %v4639 = vsel %vm3960, %v4469, 0.0
  %v4640 = vrot.slane %v4639, 4
  %v4641 = vadd.f32 %v4639, %v4640
  %v4642 = vrot.slane %v4641, 2
  %v4643 = vadd.f32 %v4641, %v4642
  %v4644 = vrot.slane %v4643, 1
  %v4645 = vadd.f32 %v4643, %v4644
  %v4646 = vsel %vm3960, %v4472, 0.0
  %v4647 = vrot.slane %v4646, 4
  %v4648 = vadd.f32 %v4646, %v4647
  %v4649 = vrot.slane %v4648, 2
  %v4650 = vadd.f32 %v4648, %v4649
  %v4651 = vrot.slane %v4650, 1
  %v4652 = vadd.f32 %v4650, %v4651
  %v4653 = vsel %vm3960, %v4475, 0.0
  %v4654 = vrot.slane %v4653, 4
  %v4655 = vadd.f32 %v4653, %v4654
  %v4656 = vrot.slane %v4655, 2
  %v4657 = vadd.f32 %v4655, %v4656
  %v4658 = vrot.slane %v4657, 1
  %v4659 = vadd.f32 %v4657, %v4658
  %v4660 = vsel %vm3960, %v4478, 0.0
  %v4661 = vrot.slane %v4660, 4
  %v4662 = vadd.f32 %v4660, %v4661
  %v4663 = vrot.slane %v4662, 2
  %v4664 = vadd.f32 %v4662, %v4663
  %v4665 = vrot.slane %v4664, 1
  %v4666 = vadd.f32 %v4664, %v4665
  %v4667 = vsel %vm3960, %v4481, 0.0
  %v4668 = vrot.slane %v4667, 4
  %v4669 = vadd.f32 %v4667, %v4668
  %v4670 = vrot.slane %v4669, 2
  %v4671 = vadd.f32 %v4669, %v4670
  %v4672 = vrot.slane %v4671, 1
  %v4673 = vadd.f32 %v4671, %v4672
  %v4674 = vsel %vm3960, %v4484, 0.0
  %v4675 = vrot.slane %v4674, 4
  %v4676 = vadd.f32 %v4674, %v4675
  %v4677 = vrot.slane %v4676, 2
  %v4678 = vadd.f32 %v4676, %v4677
  %v4679 = vrot.slane %v4678, 1
  %v4680 = vadd.f32 %v4678, %v4679
  %v4681 = vsel %vm3960, %v4487, 0.0
  %v4682 = vrot.slane %v4681, 4
  %v4683 = vadd.f32 %v4681, %v4682
  %v4684 = vrot.slane %v4683, 2
  %v4685 = vadd.f32 %v4683, %v4684
  %v4686 = vrot.slane %v4685, 1
  %v4687 = vadd.f32 %v4685, %v4686
  %v4688 = vsel %vm3960, %v4490, 0.0
  %v4689 = vrot.slane %v4688, 4
  %v4690 = vadd.f32 %v4688, %v4689
  %v4691 = vrot.slane %v4690, 2
  %v4692 = vadd.f32 %v4690, %v4691
  %v4693 = vrot.slane %v4692, 1
  %v4694 = vadd.f32 %v4692, %v4693
  %v4695 = vsel %vm3960, %v4493, 0.0
  %v4696 = vrot.slane %v4695, 4
  %v4697 = vadd.f32 %v4695, %v4696
  %v4698 = vrot.slane %v4697, 2
  %v4699 = vadd.f32 %v4697, %v4698
  %v4700 = vrot.slane %v4699, 1
  %v4701 = vadd.f32 %v4699, %v4700
  %v4702 = vsel %vm3960, %v4496, 0.0
  %v4703 = vrot.slane %v4702, 4
  %v4704 = vadd.f32 %v4702, %v4703
  %v4705 = vrot.slane %v4704, 2
  %v4706 = vadd.f32 %v4704, %v4705
  %v4707 = vrot.slane %v4706, 1
  %v4708 = vadd.f32 %v4706, %v4707
  %v4709 = vsel %vm3960, %v4499, 0.0
  %v4710 = vrot.slane %v4709, 4
  %v4711 = vadd.f32 %v4709, %v4710
  %v4712 = vrot.slane %v4711, 2
  %v4713 = vadd.f32 %v4711, %v4712
  %v4714 = vrot.slane %v4713, 1
  %v4715 = vadd.f32 %v4713, %v4714
  %v4716 = vsel %vm3960, %v4502, 0.0
  %v4717 = vrot.slane %v4716, 4
  %v4718 = vadd.f32 %v4716, %v4717
  %v4719 = vrot.slane %v4718, 2
  %v4720 = vadd.f32 %v4718, %v4719
  %v4721 = vrot.slane %v4720, 1
  %v4722 = vadd.f32 %v4720, %v4721
  %v4723 = vsel %vm3960, %v4505, 0.0
  %v4724 = vrot.slane %v4723, 4
  %v4725 = vadd.f32 %v4723, %v4724
  %v4726 = vrot.slane %v4725, 2
  %v4727 = vadd.f32 %v4725, %v4726
  %v4728 = vrot.slane %v4727, 1
  %v4729 = vadd.f32 %v4727, %v4728
  %v4730 = vmul.f32 %v4512, %v4185
  %v4731 = vmul.f32 %v4519, %v4185
  %v4732 = vmul.f32 %v4526, %v4185
  %v4733 = vmul.f32 %v4533, %v4185
  %v4734 = vmul.f32 %v4540, %v4185
  %v4735 = vmul.f32 %v4547, %v4185
  %v4736 = vmul.f32 %v4554, %v4185
  %v4737 = vmul.f32 %v4561, %v4185
  %v4738 = vmul.f32 %v4568, %v4185
  %v4739 = vmul.f32 %v4575, %v4185
  %v4740 = vmul.f32 %v4582, %v4185
  %v4741 = vmul.f32 %v4589, %v4185
  %v4742 = vmul.f32 %v4596, %v4185
  %v4743 = vmul.f32 %v4603, %v4185
  %v4744 = vmul.f32 %v4610, %v4185
  %v4745 = vmul.f32 %v4617, %v4185
  %v4746 = vmul.f32 %v4624, %v4185
  %v4747 = vmul.f32 %v4631, %v4185
  %v4748 = vmul.f32 %v4638, %v4185
  %v4749 = vmul.f32 %v4645, %v4185
  %v4750 = vmul.f32 %v4652, %v4185
  %v4751 = vmul.f32 %v4659, %v4185
  %v4752 = vmul.f32 %v4666, %v4185
  %v4753 = vmul.f32 %v4673, %v4185
  %v4754 = vmul.f32 %v4680, %v4185
  %v4755 = vmul.f32 %v4687, %v4185
  %v4756 = vmul.f32 %v4694, %v4185
  %v4757 = vmul.f32 %v4701, %v4185
  %v4758 = vmul.f32 %v4708, %v4185
  %v4759 = vmul.f32 %v4715, %v4185
  %v4760 = vmul.f32 %v4722, %v4185
  %v4761 = vmul.f32 %v4729, %v4185
  %v4762 = vadd.f32 %v4730, 1e-05
  %v4763 = vadd.f32 %v4731, 1e-05
  %v4764 = vadd.f32 %v4732, 1e-05
  %v4765 = vadd.f32 %v4733, 1e-05
  %v4766 = vadd.f32 %v4734, 1e-05
  %v4767 = vadd.f32 %v4735, 1e-05
  %v4768 = vadd.f32 %v4736, 1e-05
  %v4769 = vadd.f32 %v4737, 1e-05
  %v4770 = vadd.f32 %v4738, 1e-05
  %v4771 = vadd.f32 %v4739, 1e-05
  %v4772 = vadd.f32 %v4740, 1e-05
  %v4773 = vadd.f32 %v4741, 1e-05
  %v4774 = vadd.f32 %v4742, 1e-05
  %v4775 = vadd.f32 %v4743, 1e-05
  %v4776 = vadd.f32 %v4744, 1e-05
  %v4777 = vadd.f32 %v4745, 1e-05
  %v4778 = vadd.f32 %v4746, 1e-05
  %v4779 = vadd.f32 %v4747, 1e-05
  %v4780 = vadd.f32 %v4748, 1e-05
  %v4781 = vadd.f32 %v4749, 1e-05
  %v4782 = vadd.f32 %v4750, 1e-05
  %v4783 = vadd.f32 %v4751, 1e-05
  %v4784 = vadd.f32 %v4752, 1e-05
  %v4785 = vadd.f32 %v4753, 1e-05
  %v4786 = vadd.f32 %v4754, 1e-05
  %v4787 = vadd.f32 %v4755, 1e-05
  %v4788 = vadd.f32 %v4756, 1e-05
  %v4789 = vadd.f32 %v4757, 1e-05
  %v4790 = vadd.f32 %v4758, 1e-05
  %v4791 = vadd.f32 %v4759, 1e-05
  %v4792 = vadd.f32 %v4760, 1e-05
  %v4793 = vadd.f32 %v4761, 1e-05
  %v4794 = vrsqrt.pop %v4762
  %v4795 = vrsqrt.pop %v4763
  %v4796 = vrsqrt.pop %v4764
  %v4797 = vrsqrt.pop %v4765
  %v4798 = vrsqrt.pop %v4766
  %v4799 = vrsqrt.pop %v4767
  %v4800 = vrsqrt.pop %v4768
  %v4801 = vrsqrt.pop %v4769
  %v4802 = vrsqrt.pop %v4770
  %v4803 = vrsqrt.pop %v4771
  %v4804 = vrsqrt.pop %v4772
  %v4805 = vrsqrt.pop %v4773
  %v4806 = vrsqrt.pop %v4774
  %v4807 = vrsqrt.pop %v4775
  %v4808 = vrsqrt.pop %v4776
  %v4809 = vrsqrt.pop %v4777
  %v4810 = vrsqrt.pop %v4778
  %v4811 = vrsqrt.pop %v4779
  %v4812 = vrsqrt.pop %v4780
  %v4813 = vrsqrt.pop %v4781
  %v4814 = vrsqrt.pop %v4782
  %v4815 = vrsqrt.pop %v4783
  %v4816 = vrsqrt.pop %v4784
  %v4817 = vrsqrt.pop %v4785
  %v4818 = vrsqrt.pop %v4786
  %v4819 = vrsqrt.pop %v4787
  %v4820 = vrsqrt.pop %v4788
  %v4821 = vrsqrt.pop %v4789
  %v4822 = vrsqrt.pop %v4790
  %v4823 = vrsqrt.pop %v4791
  %v4824 = vrsqrt.pop %v4792
  %v4825 = vrsqrt.pop %v4793
  %v4826 = vmul.f32 %v4218, %v4794
  %v4827 = vmul.f32 %v4219, %v4795
  %v4828 = vmul.f32 %v4220, %v4796
  %v4829 = vmul.f32 %v4221, %v4797
  %v4830 = vmul.f32 %v4222, %v4798
  %v4831 = vmul.f32 %v4223, %v4799
  %v4832 = vmul.f32 %v4224, %v4800
  %v4833 = vmul.f32 %v4225, %v4801
  %v4834 = vmul.f32 %v4226, %v4802
  %v4835 = vmul.f32 %v4227, %v4803
  %v4836 = vmul.f32 %v4228, %v4804
  %v4837 = vmul.f32 %v4229, %v4805
  %v4838 = vmul.f32 %v4230, %v4806
  %v4839 = vmul.f32 %v4231, %v4807
  %v4840 = vmul.f32 %v4232, %v4808
  %v4841 = vmul.f32 %v4233, %v4809
  %v4842 = vmul.f32 %v4234, %v4810
  %v4843 = vmul.f32 %v4235, %v4811
  %v4844 = vmul.f32 %v4236, %v4812
  %v4845 = vmul.f32 %v4237, %v4813
  %v4846 = vmul.f32 %v4238, %v4814
  %v4847 = vmul.f32 %v4239, %v4815
  %v4848 = vmul.f32 %v4240, %v4816
  %v4849 = vmul.f32 %v4241, %v4817
  %v4850 = vmul.f32 %v4242, %v4818
  %v4851 = vmul.f32 %v4243, %v4819
  %v4852 = vmul.f32 %v4244, %v4820
  %v4853 = vmul.f32 %v4245, %v4821
  %v4854 = vmul.f32 %v4246, %v4822
  %v4855 = vmul.f32 %v4247, %v4823
  %v4856 = vmul.f32 %v4248, %v4824
  %v4857 = vmul.f32 %v4249, %v4825
  %v4858 = vld [vmem:[%s4] sm:$0x1]
  %v4859 = vld [vmem:[%s4 + $0x1] sm:$0x1]
  %v4860 = vld [vmem:[%s4 + $0x2] sm:$0x1]
  %v4861 = vld [vmem:[%s4 + $0x3] sm:$0x1]
  %v4862 = vld [vmem:[%s4 + $0x4] sm:$0x1]
  %v4863 = vld [vmem:[%s4 + $0x5] sm:$0x1]
  %v4864 = vld [vmem:[%s4 + $0x6] sm:$0x1]
  %v4865 = vld [vmem:[%s4 + $0x7] sm:$0x1]
  %v4866 = vld [vmem:[%s4 + $0x8] sm:$0x1]
  %v4867 = vld [vmem:[%s4 + $0x9] sm:$0x1]
  %v4868 = vld [vmem:[%s4 + $0xa] sm:$0x1]
  %v4869 = vld [vmem:[%s4 + $0xb] sm:$0x1]
  %v4870 = vld [vmem:[%s4 + $0xc] sm:$0x1]
  %v4871 = vld [vmem:[%s4 + $0xd] sm:$0x1]
  %v4872 = vld [vmem:[%s4 + $0xe] sm:$0x1]
  %v4873 = vld [vmem:[%s4 + $0xf] sm:$0x1]
  %v4874 = vld [vmem:[%s4 + $0x10] sm:$0x1]
  %v4875 = vld [vmem:[%s4 + $0x11] sm:$0x1]
  %v4876 = vld [vmem:[%s4 + $0x12] sm:$0x1]
  %v4877 = vld [vmem:[%s4 + $0x13] sm:$0x1]
  %v4878 = vld [vmem:[%s4 + $0x14] sm:$0x1]
  %v4879 = vld [vmem:[%s4 + $0x15] sm:$0x1]
  %v4880 = vld [vmem:[%s4 + $0x16] sm:$0x1]
  %v4881 = vld [vmem:[%s4 + $0x17] sm:$0x1]
  %v4882 = vld [vmem:[%s4 + $0x18] sm:$0x1]
  %v4883 = vld [vmem:[%s4 + $0x19] sm:$0x1]
  %v4884 = vld [vmem:[%s4 + $0x1a] sm:$0x1]
  %v4885 = vld [vmem:[%s4 + $0x1b] sm:$0x1]
  %v4886 = vld [vmem:[%s4 + $0x1c] sm:$0x1]
  %v4887 = vld [vmem:[%s4 + $0x1d] sm:$0x1]
  %v4888 = vld [vmem:[%s4 + $0x1e] sm:$0x1]
  %v4889 = vld [vmem:[%s4 + $0x1f] sm:$0x1]
  %v4922 = vlaneseq
  %v4923 = vshrl.u32 %v4922, 7
  %v4924 = vsub.s32 0, %v4923
  %v4925 = vrot.slane %v4858, %v4924
  %v4926 = vlaneseq
  %v4927 = vshrl.u32 %v4926, 7
  %v4928 = vsub.s32 0, %v4927
  %v4929 = vrot.slane %v4859, %v4928
  %v4930 = vlaneseq
  %v4931 = vshrl.u32 %v4930, 7
  %v4932 = vsub.s32 0, %v4931
  %v4933 = vrot.slane %v4860, %v4932
  %v4934 = vlaneseq
  %v4935 = vshrl.u32 %v4934, 7
  %v4936 = vsub.s32 0, %v4935
  %v4937 = vrot.slane %v4861, %v4936
  %v4938 = vlaneseq
  %v4939 = vshrl.u32 %v4938, 7
  %v4940 = vsub.s32 0, %v4939
  %v4941 = vrot.slane %v4862, %v4940
  %v4942 = vlaneseq
  %v4943 = vshrl.u32 %v4942, 7
  %v4944 = vsub.s32 0, %v4943
  %v4945 = vrot.slane %v4863, %v4944
  %v4946 = vlaneseq
  %v4947 = vshrl.u32 %v4946, 7
  %v4948 = vsub.s32 0, %v4947
  %v4949 = vrot.slane %v4864, %v4948
  %v4950 = vlaneseq
  %v4951 = vshrl.u32 %v4950, 7
  %v4952 = vsub.s32 0, %v4951
  %v4953 = vrot.slane %v4865, %v4952
  %v4954 = vlaneseq
  %v4955 = vshrl.u32 %v4954, 7
  %v4956 = vsub.s32 0, %v4955
  %v4957 = vrot.slane %v4866, %v4956
  %v4958 = vlaneseq
  %v4959 = vshrl.u32 %v4958, 7
  %v4960 = vsub.s32 0, %v4959
  %v4961 = vrot.slane %v4867, %v4960
  %v4962 = vlaneseq
  %v4963 = vshrl.u32 %v4962, 7
  %v4964 = vsub.s32 0, %v4963
  %v4965 = vrot.slane %v4868, %v4964
  %v4966 = vlaneseq
  %v4967 = vshrl.u32 %v4966, 7
  %v4968 = vsub.s32 0, %v4967
  %v4969 = vrot.slane %v4869, %v4968
  %v4970 = vlaneseq
  %v4971 = vshrl.u32 %v4970, 7
  %v4972 = vsub.s32 0, %v4971
  %v4973 = vrot.slane %v4870, %v4972
  %v4974 = vlaneseq
  %v4975 = vshrl.u32 %v4974, 7
  %v4976 = vsub.s32 0, %v4975
  %v4977 = vrot.slane %v4871, %v4976
  %v4978 = vlaneseq
  %v4979 = vshrl.u32 %v4978, 7
  %v4980 = vsub.s32 0, %v4979
  %v4981 = vrot.slane %v4872, %v4980
  %v4982 = vlaneseq
  %v4983 = vshrl.u32 %v4982, 7
  %v4984 = vsub.s32 0, %v4983
  %v4985 = vrot.slane %v4873, %v4984
  %v4986 = vlaneseq
  %v4987 = vshrl.u32 %v4986, 7
  %v4988 = vsub.s32 0, %v4987
  %v4989 = vrot.slane %v4874, %v4988
  %v4990 = vlaneseq
  %v4991 = vshrl.u32 %v4990, 7
  %v4992 = vsub.s32 0, %v4991
  %v4993 = vrot.slane %v4875, %v4992
  %v4994 = vlaneseq
  %v4995 = vshrl.u32 %v4994, 7
  %v4996 = vsub.s32 0, %v4995
  %v4997 = vrot.slane %v4876, %v4996
  %v4998 = vlaneseq
  %v4999 = vshrl.u32 %v4998, 7
  %v5000 = vsub.s32 0, %v4999
  %v5001 = vrot.slane %v4877, %v5000
  %v5002 = vlaneseq
  %v5003 = vshrl.u32 %v5002, 7
  %v5004 = vsub.s32 0, %v5003
  %v5005 = vrot.slane %v4878, %v5004
  %v5006 = vlaneseq
  %v5007 = vshrl.u32 %v5006, 7
  %v5008 = vsub.s32 0, %v5007
  %v5009 = vrot.slane %v4879, %v5008
  %v5010 = vlaneseq
  %v5011 = vshrl.u32 %v5010, 7
  %v5012 = vsub.s32 0, %v5011
  %v5013 = vrot.slane %v4880, %v5012
  %v5014 = vlaneseq
  %v5015 = vshrl.u32 %v5014, 7
  %v5016 = vsub.s32 0, %v5015
  %v5017 = vrot.slane %v4881, %v5016
  %v5018 = vlaneseq
  %v5019 = vshrl.u32 %v5018, 7
  %v5020 = vsub.s32 0, %v5019
  %v5021 = vrot.slane %v4882, %v5020
  %v5022 = vlaneseq
  %v5023 = vshrl.u32 %v5022, 7
  %v5024 = vsub.s32 0, %v5023
  %v5025 = vrot.slane %v4883, %v5024
  %v5026 = vlaneseq
  %v5027 = vshrl.u32 %v5026, 7
  %v5028 = vsub.s32 0, %v5027
  %v5029 = vrot.slane %v4884, %v5028
  %v5030 = vlaneseq
  %v5031 = vshrl.u32 %v5030, 7
  %v5032 = vsub.s32 0, %v5031
  %v5033 = vrot.slane %v4885, %v5032
  %v5034 = vlaneseq
  %v5035 = vshrl.u32 %v5034, 7
  %v5036 = vsub.s32 0, %v5035
  %v5037 = vrot.slane %v4886, %v5036
  %v5038 = vlaneseq
  %v5039 = vshrl.u32 %v5038, 7
  %v5040 = vsub.s32 0, %v5039
  %v5041 = vrot.slane %v4887, %v5040
  %v5042 = vlaneseq
  %v5043 = vshrl.u32 %v5042, 7
  %v5044 = vsub.s32 0, %v5043
  %v5045 = vrot.slane %v4888, %v5044
  %v5046 = vlaneseq
  %v5047 = vshrl.u32 %v5046, 7
  %v5048 = vsub.s32 0, %v5047
  %v5049 = vrot.slane %v4889, %v5048
  %5050 = vset.pattern.permute.xlu0 0
  %5051 = vperm.xlu0 %5050, %v4925
  %v5052 = vpop.permute.xlu0 %5051
  %5054 = vset.pattern.permute.xlu0 0
  %5055 = vperm.xlu0 %5054, %v4929
  %v5056 = vpop.permute.xlu0 %5055
  %5058 = vset.pattern.permute.xlu0 0
  %5059 = vperm.xlu0 %5058, %v4933
  %v5060 = vpop.permute.xlu0 %5059
  %5062 = vset.pattern.permute.xlu0 0
  %5063 = vperm.xlu0 %5062, %v4937
  %v5064 = vpop.permute.xlu0 %5063
  %5066 = vset.pattern.permute.xlu0 0
  %5067 = vperm.xlu0 %5066, %v4941
  %v5068 = vpop.permute.xlu0 %5067
  %5070 = vset.pattern.permute.xlu0 0
  %5071 = vperm.xlu0 %5070, %v4945
  %v5072 = vpop.permute.xlu0 %5071
  %5074 = vset.pattern.permute.xlu0 0
  %5075 = vperm.xlu0 %5074, %v4949
  %v5076 = vpop.permute.xlu0 %5075
  %5078 = vset.pattern.permute.xlu0 0
  %5079 = vperm.xlu0 %5078, %v4953
  %v5080 = vpop.permute.xlu0 %5079
  %5082 = vset.pattern.permute.xlu0 0
  %5083 = vperm.xlu0 %5082, %v4957
  %v5084 = vpop.permute.xlu0 %5083
  %5086 = vset.pattern.permute.xlu0 0
  %5087 = vperm.xlu0 %5086, %v4961
  %v5088 = vpop.permute.xlu0 %5087
  %5090 = vset.pattern.permute.xlu0 0
  %5091 = vperm.xlu0 %5090, %v4965
  %v5092 = vpop.permute.xlu0 %5091
  %5094 = vset.pattern.permute.xlu0 0
  %5095 = vperm.xlu0 %5094, %v4969
  %v5096 = vpop.permute.xlu0 %5095
  %5098 = vset.pattern.permute.xlu0 0
  %5099 = vperm.xlu0 %5098, %v4973
  %v5100 = vpop.permute.xlu0 %5099
  %5102 = vset.pattern.permute.xlu0 0
  %5103 = vperm.xlu0 %5102, %v4977
  %v5104 = vpop.permute.xlu0 %5103
  %5106 = vset.pattern.permute.xlu0 0
  %5107 = vperm.xlu0 %5106, %v4981
  %v5108 = vpop.permute.xlu0 %5107
  %5110 = vset.pattern.permute.xlu0 0
  %5111 = vperm.xlu0 %5110, %v4985
  %v5112 = vpop.permute.xlu0 %5111
  %5114 = vset.pattern.permute.xlu0 0
  %5115 = vperm.xlu0 %5114, %v4989
  %v5116 = vpop.permute.xlu0 %5115
  %5118 = vset.pattern.permute.xlu0 0
  %5119 = vperm.xlu0 %5118, %v4993
  %v5120 = vpop.permute.xlu0 %5119
  %5122 = vset.pattern.permute.xlu0 0
  %5123 = vperm.xlu0 %5122, %v4997
  %v5124 = vpop.permute.xlu0 %5123
  %5126 = vset.pattern.permute.xlu0 0
  %5127 = vperm.xlu0 %5126, %v5001
  %v5128 = vpop.permute.xlu0 %5127
  %5130 = vset.pattern.permute.xlu0 0
  %5131 = vperm.xlu0 %5130, %v5005
  %v5132 = vpop.permute.xlu0 %5131
  %5134 = vset.pattern.permute.xlu0 0
  %5135 = vperm.xlu0 %5134, %v5009
  %v5136 = vpop.permute.xlu0 %5135
  %5138 = vset.pattern.permute.xlu0 0
  %5139 = vperm.xlu0 %5138, %v5013
  %v5140 = vpop.permute.xlu0 %5139
  %5142 = vset.pattern.permute.xlu0 0
  %5143 = vperm.xlu0 %5142, %v5017
  %v5144 = vpop.permute.xlu0 %5143
  %5146 = vset.pattern.permute.xlu0 0
  %5147 = vperm.xlu0 %5146, %v5021
  %v5148 = vpop.permute.xlu0 %5147
  %5150 = vset.pattern.permute.xlu0 0
  %5151 = vperm.xlu0 %5150, %v5025
  %v5152 = vpop.permute.xlu0 %5151
  %5154 = vset.pattern.permute.xlu0 0
  %5155 = vperm.xlu0 %5154, %v5029
  %v5156 = vpop.permute.xlu0 %5155
  %5158 = vset.pattern.permute.xlu0 0
  %5159 = vperm.xlu0 %5158, %v5033
  %v5160 = vpop.permute.xlu0 %5159
  %5162 = vset.pattern.permute.xlu0 0
  %5163 = vperm.xlu0 %5162, %v5037
  %v5164 = vpop.permute.xlu0 %5163
  %5166 = vset.pattern.permute.xlu0 0
  %5167 = vperm.xlu0 %5166, %v5041
  %v5168 = vpop.permute.xlu0 %5167
  %5170 = vset.pattern.permute.xlu0 0
  %5171 = vperm.xlu0 %5170, %v5045
  %v5172 = vpop.permute.xlu0 %5171
  %5174 = vset.pattern.permute.xlu0 0
  %5175 = vperm.xlu0 %5174, %v5049
  %v5176 = vpop.permute.xlu0 %5175
  %v5178 = vmul.f32 %v4826, %v5052
  %v5179 = vmul.f32 %v4827, %v5056
  %v5180 = vmul.f32 %v4828, %v5060
  %v5181 = vmul.f32 %v4829, %v5064
  %v5182 = vmul.f32 %v4830, %v5068
  %v5183 = vmul.f32 %v4831, %v5072
  %v5184 = vmul.f32 %v4832, %v5076
  %v5185 = vmul.f32 %v4833, %v5080
  %v5186 = vmul.f32 %v4834, %v5084
  %v5187 = vmul.f32 %v4835, %v5088
  %v5188 = vmul.f32 %v4836, %v5092
  %v5189 = vmul.f32 %v4837, %v5096
  %v5190 = vmul.f32 %v4838, %v5100
  %v5191 = vmul.f32 %v4839, %v5104
  %v5192 = vmul.f32 %v4840, %v5108
  %v5193 = vmul.f32 %v4841, %v5112
  %v5194 = vmul.f32 %v4842, %v5116
  %v5195 = vmul.f32 %v4843, %v5120
  %v5196 = vmul.f32 %v4844, %v5124
  %v5197 = vmul.f32 %v4845, %v5128
  %v5198 = vmul.f32 %v4846, %v5132
  %v5199 = vmul.f32 %v4847, %v5136
  %v5200 = vmul.f32 %v4848, %v5140
  %v5201 = vmul.f32 %v4849, %v5144
  %v5202 = vmul.f32 %v4850, %v5148
  %v5203 = vmul.f32 %v4851, %v5152
  %v5204 = vmul.f32 %v4852, %v5156
  %v5205 = vmul.f32 %v4853, %v5160
  %v5206 = vmul.f32 %v4854, %v5164
  %v5207 = vmul.f32 %v4855, %v5168
  %v5208 = vmul.f32 %v4856, %v5172
  %v5209 = vmul.f32 %v4857, %v5176
  %v5210 = vld [vmem:[%s5] sm:$0x1]
  %v5211 = vld [vmem:[%s5 + $0x1] sm:$0x1]
  %v5212 = vld [vmem:[%s5 + $0x2] sm:$0x1]
  %v5213 = vld [vmem:[%s5 + $0x3] sm:$0x1]
  %v5214 = vld [vmem:[%s5 + $0x4] sm:$0x1]
  %v5215 = vld [vmem:[%s5 + $0x5] sm:$0x1]
  %v5216 = vld [vmem:[%s5 + $0x6] sm:$0x1]
  %v5217 = vld [vmem:[%s5 + $0x7] sm:$0x1]
  %v5218 = vld [vmem:[%s5 + $0x8] sm:$0x1]
  %v5219 = vld [vmem:[%s5 + $0x9] sm:$0x1]
  %v5220 = vld [vmem:[%s5 + $0xa] sm:$0x1]
  %v5221 = vld [vmem:[%s5 + $0xb] sm:$0x1]
  %v5222 = vld [vmem:[%s5 + $0xc] sm:$0x1]
  %v5223 = vld [vmem:[%s5 + $0xd] sm:$0x1]
  %v5224 = vld [vmem:[%s5 + $0xe] sm:$0x1]
  %v5225 = vld [vmem:[%s5 + $0xf] sm:$0x1]
  %v5226 = vld [vmem:[%s5 + $0x10] sm:$0x1]
  %v5227 = vld [vmem:[%s5 + $0x11] sm:$0x1]
  %v5228 = vld [vmem:[%s5 + $0x12] sm:$0x1]
  %v5229 = vld [vmem:[%s5 + $0x13] sm:$0x1]
  %v5230 = vld [vmem:[%s5 + $0x14] sm:$0x1]
  %v5231 = vld [vmem:[%s5 + $0x15] sm:$0x1]
  %v5232 = vld [vmem:[%s5 + $0x16] sm:$0x1]
  %v5233 = vld [vmem:[%s5 + $0x17] sm:$0x1]
  %v5234 = vld [vmem:[%s5 + $0x18] sm:$0x1]
  %v5235 = vld [vmem:[%s5 + $0x19] sm:$0x1]
  %v5236 = vld [vmem:[%s5 + $0x1a] sm:$0x1]
  %v5237 = vld [vmem:[%s5 + $0x1b] sm:$0x1]
  %v5238 = vld [vmem:[%s5 + $0x1c] sm:$0x1]
  %v5239 = vld [vmem:[%s5 + $0x1d] sm:$0x1]
  %v5240 = vld [vmem:[%s5 + $0x1e] sm:$0x1]
  %v5241 = vld [vmem:[%s5 + $0x1f] sm:$0x1]
  %v5274 = vlaneseq
  %v5275 = vshrl.u32 %v5274, 7
  %v5276 = vsub.s32 0, %v5275
  %v5277 = vrot.slane %v5210, %v5276
  %v5278 = vlaneseq
  %v5279 = vshrl.u32 %v5278, 7
  %v5280 = vsub.s32 0, %v5279
  %v5281 = vrot.slane %v5211, %v5280
  %v5282 = vlaneseq
  %v5283 = vshrl.u32 %v5282, 7
  %v5284 = vsub.s32 0, %v5283
  %v5285 = vrot.slane %v5212, %v5284
  %v5286 = vlaneseq
  %v5287 = vshrl.u32 %v5286, 7
  %v5288 = vsub.s32 0, %v5287
  %v5289 = vrot.slane %v5213, %v5288
  %v5290 = vlaneseq
  %v5291 = vshrl.u32 %v5290, 7
  %v5292 = vsub.s32 0, %v5291
  %v5293 = vrot.slane %v5214, %v5292
  %v5294 = vlaneseq
  %v5295 = vshrl.u32 %v5294, 7
  %v5296 = vsub.s32 0, %v5295
  %v5297 = vrot.slane %v5215, %v5296
  %v5298 = vlaneseq
  %v5299 = vshrl.u32 %v5298, 7
  %v5300 = vsub.s32 0, %v5299
  %v5301 = vrot.slane %v5216, %v5300
  %v5302 = vlaneseq
  %v5303 = vshrl.u32 %v5302, 7
  %v5304 = vsub.s32 0, %v5303
  %v5305 = vrot.slane %v5217, %v5304
  %v5306 = vlaneseq
  %v5307 = vshrl.u32 %v5306, 7
  %v5308 = vsub.s32 0, %v5307
  %v5309 = vrot.slane %v5218, %v5308
  %v5310 = vlaneseq
  %v5311 = vshrl.u32 %v5310, 7
  %v5312 = vsub.s32 0, %v5311
  %v5313 = vrot.slane %v5219, %v5312
  %v5314 = vlaneseq
  %v5315 = vshrl.u32 %v5314, 7
  %v5316 = vsub.s32 0, %v5315
  %v5317 = vrot.slane %v5220, %v5316
  %v5318 = vlaneseq
  %v5319 = vshrl.u32 %v5318, 7
  %v5320 = vsub.s32 0, %v5319
  %v5321 = vrot.slane %v5221, %v5320
  %v5322 = vlaneseq
  %v5323 = vshrl.u32 %v5322, 7
  %v5324 = vsub.s32 0, %v5323
  %v5325 = vrot.slane %v5222, %v5324
  %v5326 = vlaneseq
  %v5327 = vshrl.u32 %v5326, 7
  %v5328 = vsub.s32 0, %v5327
  %v5329 = vrot.slane %v5223, %v5328
  %v5330 = vlaneseq
  %v5331 = vshrl.u32 %v5330, 7
  %v5332 = vsub.s32 0, %v5331
  %v5333 = vrot.slane %v5224, %v5332
  %v5334 = vlaneseq
  %v5335 = vshrl.u32 %v5334, 7
  %v5336 = vsub.s32 0, %v5335
  %v5337 = vrot.slane %v5225, %v5336
  %v5338 = vlaneseq
  %v5339 = vshrl.u32 %v5338, 7
  %v5340 = vsub.s32 0, %v5339
  %v5341 = vrot.slane %v5226, %v5340
  %v5342 = vlaneseq
  %v5343 = vshrl.u32 %v5342, 7
  %v5344 = vsub.s32 0, %v5343
  %v5345 = vrot.slane %v5227, %v5344
  %v5346 = vlaneseq
  %v5347 = vshrl.u32 %v5346, 7
  %v5348 = vsub.s32 0, %v5347
  %v5349 = vrot.slane %v5228, %v5348
  %v5350 = vlaneseq
  %v5351 = vshrl.u32 %v5350, 7
  %v5352 = vsub.s32 0, %v5351
  %v5353 = vrot.slane %v5229, %v5352
  %v5354 = vlaneseq
  %v5355 = vshrl.u32 %v5354, 7
  %v5356 = vsub.s32 0, %v5355
  %v5357 = vrot.slane %v5230, %v5356
  %v5358 = vlaneseq
  %v5359 = vshrl.u32 %v5358, 7
  %v5360 = vsub.s32 0, %v5359
  %v5361 = vrot.slane %v5231, %v5360
  %v5362 = vlaneseq
  %v5363 = vshrl.u32 %v5362, 7
  %v5364 = vsub.s32 0, %v5363
  %v5365 = vrot.slane %v5232, %v5364
  %v5366 = vlaneseq
  %v5367 = vshrl.u32 %v5366, 7
  %v5368 = vsub.s32 0, %v5367
  %v5369 = vrot.slane %v5233, %v5368
  %v5370 = vlaneseq
  %v5371 = vshrl.u32 %v5370, 7
  %v5372 = vsub.s32 0, %v5371
  %v5373 = vrot.slane %v5234, %v5372
  %v5374 = vlaneseq
  %v5375 = vshrl.u32 %v5374, 7
  %v5376 = vsub.s32 0, %v5375
  %v5377 = vrot.slane %v5235, %v5376
  %v5378 = vlaneseq
  %v5379 = vshrl.u32 %v5378, 7
  %v5380 = vsub.s32 0, %v5379
  %v5381 = vrot.slane %v5236, %v5380
  %v5382 = vlaneseq
  %v5383 = vshrl.u32 %v5382, 7
  %v5384 = vsub.s32 0, %v5383
  %v5385 = vrot.slane %v5237, %v5384
  %v5386 = vlaneseq
  %v5387 = vshrl.u32 %v5386, 7
  %v5388 = vsub.s32 0, %v5387
  %v5389 = vrot.slane %v5238, %v5388
  %v5390 = vlaneseq
  %v5391 = vshrl.u32 %v5390, 7
  %v5392 = vsub.s32 0, %v5391
  %v5393 = vrot.slane %v5239, %v5392
  %v5394 = vlaneseq
  %v5395 = vshrl.u32 %v5394, 7
  %v5396 = vsub.s32 0, %v5395
  %v5397 = vrot.slane %v5240, %v5396
  %v5398 = vlaneseq
  %v5399 = vshrl.u32 %v5398, 7
  %v5400 = vsub.s32 0, %v5399
  %v5401 = vrot.slane %v5241, %v5400
  %5402 = vset.pattern.permute.xlu0 0
  %5403 = vperm.xlu0 %5402, %v5277
  %v5404 = vpop.permute.xlu0 %5403
  %5406 = vset.pattern.permute.xlu0 0
  %5407 = vperm.xlu0 %5406, %v5281
  %v5408 = vpop.permute.xlu0 %5407
  %5410 = vset.pattern.permute.xlu0 0
  %5411 = vperm.xlu0 %5410, %v5285
  %v5412 = vpop.permute.xlu0 %5411
  %5414 = vset.pattern.permute.xlu0 0
  %5415 = vperm.xlu0 %5414, %v5289
  %v5416 = vpop.permute.xlu0 %5415
  %5418 = vset.pattern.permute.xlu0 0
  %5419 = vperm.xlu0 %5418, %v5293
  %v5420 = vpop.permute.xlu0 %5419
  %5422 = vset.pattern.permute.xlu0 0
  %5423 = vperm.xlu0 %5422, %v5297
  %v5424 = vpop.permute.xlu0 %5423
  %5426 = vset.pattern.permute.xlu0 0
  %5427 = vperm.xlu0 %5426, %v5301
  %v5428 = vpop.permute.xlu0 %5427
  %5430 = vset.pattern.permute.xlu0 0
  %5431 = vperm.xlu0 %5430, %v5305
  %v5432 = vpop.permute.xlu0 %5431
  %5434 = vset.pattern.permute.xlu0 0
  %5435 = vperm.xlu0 %5434, %v5309
  %v5436 = vpop.permute.xlu0 %5435
  %5438 = vset.pattern.permute.xlu0 0
  %5439 = vperm.xlu0 %5438, %v5313
  %v5440 = vpop.permute.xlu0 %5439
  %5442 = vset.pattern.permute.xlu0 0
  %5443 = vperm.xlu0 %5442, %v5317
  %v5444 = vpop.permute.xlu0 %5443
  %5446 = vset.pattern.permute.xlu0 0
  %5447 = vperm.xlu0 %5446, %v5321
  %v5448 = vpop.permute.xlu0 %5447
  %5450 = vset.pattern.permute.xlu0 0
  %5451 = vperm.xlu0 %5450, %v5325
  %v5452 = vpop.permute.xlu0 %5451
  %5454 = vset.pattern.permute.xlu0 0
  %5455 = vperm.xlu0 %5454, %v5329
  %v5456 = vpop.permute.xlu0 %5455
  %5458 = vset.pattern.permute.xlu0 0
  %5459 = vperm.xlu0 %5458, %v5333
  %v5460 = vpop.permute.xlu0 %5459
  %5462 = vset.pattern.permute.xlu0 0
  %5463 = vperm.xlu0 %5462, %v5337
  %v5464 = vpop.permute.xlu0 %5463
  %5466 = vset.pattern.permute.xlu0 0
  %5467 = vperm.xlu0 %5466, %v5341
  %v5468 = vpop.permute.xlu0 %5467
  %5470 = vset.pattern.permute.xlu0 0
  %5471 = vperm.xlu0 %5470, %v5345
  %v5472 = vpop.permute.xlu0 %5471
  %5474 = vset.pattern.permute.xlu0 0
  %5475 = vperm.xlu0 %5474, %v5349
  %v5476 = vpop.permute.xlu0 %5475
  %5478 = vset.pattern.permute.xlu0 0
  %5479 = vperm.xlu0 %5478, %v5353
  %v5480 = vpop.permute.xlu0 %5479
  %5482 = vset.pattern.permute.xlu0 0
  %5483 = vperm.xlu0 %5482, %v5357
  %v5484 = vpop.permute.xlu0 %5483
  %5486 = vset.pattern.permute.xlu0 0
  %5487 = vperm.xlu0 %5486, %v5361
  %v5488 = vpop.permute.xlu0 %5487
  %5490 = vset.pattern.permute.xlu0 0
  %5491 = vperm.xlu0 %5490, %v5365
  %v5492 = vpop.permute.xlu0 %5491
  %5494 = vset.pattern.permute.xlu0 0
  %5495 = vperm.xlu0 %5494, %v5369
  %v5496 = vpop.permute.xlu0 %5495
  %5498 = vset.pattern.permute.xlu0 0
  %5499 = vperm.xlu0 %5498, %v5373
  %v5500 = vpop.permute.xlu0 %5499
  %5502 = vset.pattern.permute.xlu0 0
  %5503 = vperm.xlu0 %5502, %v5377
  %v5504 = vpop.permute.xlu0 %5503
  %5506 = vset.pattern.permute.xlu0 0
  %5507 = vperm.xlu0 %5506, %v5381
  %v5508 = vpop.permute.xlu0 %5507
  %5510 = vset.pattern.permute.xlu0 0
  %5511 = vperm.xlu0 %5510, %v5385
  %v5512 = vpop.permute.xlu0 %5511
  %5514 = vset.pattern.permute.xlu0 0
  %5515 = vperm.xlu0 %5514, %v5389
  %v5516 = vpop.permute.xlu0 %5515
  %5518 = vset.pattern.permute.xlu0 0
  %5519 = vperm.xlu0 %5518, %v5393
  %v5520 = vpop.permute.xlu0 %5519
  %5522 = vset.pattern.permute.xlu0 0
  %5523 = vperm.xlu0 %5522, %v5397
  %v5524 = vpop.permute.xlu0 %5523
  %5526 = vset.pattern.permute.xlu0 0
  %5527 = vperm.xlu0 %5526, %v5401
  %v5528 = vpop.permute.xlu0 %5527
  %v5530 = vadd.f32 %v5178, %v5404
  %v5531 = vadd.f32 %v5179, %v5408
  %v5532 = vadd.f32 %v5180, %v5412
  %v5533 = vadd.f32 %v5181, %v5416
  %v5534 = vadd.f32 %v5182, %v5420
  %v5535 = vadd.f32 %v5183, %v5424
  %v5536 = vadd.f32 %v5184, %v5428
  %v5537 = vadd.f32 %v5185, %v5432
  %v5538 = vadd.f32 %v5186, %v5436
  %v5539 = vadd.f32 %v5187, %v5440
  %v5540 = vadd.f32 %v5188, %v5444
  %v5541 = vadd.f32 %v5189, %v5448
  %v5542 = vadd.f32 %v5190, %v5452
  %v5543 = vadd.f32 %v5191, %v5456
  %v5544 = vadd.f32 %v5192, %v5460
  %v5545 = vadd.f32 %v5193, %v5464
  %v5546 = vadd.f32 %v5194, %v5468
  %v5547 = vadd.f32 %v5195, %v5472
  %v5548 = vadd.f32 %v5196, %v5476
  %v5549 = vadd.f32 %v5197, %v5480
  %v5550 = vadd.f32 %v5198, %v5484
  %v5551 = vadd.f32 %v5199, %v5488
  %v5552 = vadd.f32 %v5200, %v5492
  %v5553 = vadd.f32 %v5201, %v5496
  %v5554 = vadd.f32 %v5202, %v5500
  %v5555 = vadd.f32 %v5203, %v5504
  %v5556 = vadd.f32 %v5204, %v5508
  %v5557 = vadd.f32 %v5205, %v5512
  %v5558 = vadd.f32 %v5206, %v5516
  %v5559 = vadd.f32 %v5207, %v5520
  %v5560 = vadd.f32 %v5208, %v5524
  %v5561 = vadd.f32 %v5209, %v5528
  %5594 = vrot.lane.b32.xlu0 %v5530, 126
  %v5595 = vpop.permute.xlu0 %5594
  %5596 = vrot.lane.b32.xlu0 %v5531, 126
  %v5597 = vpop.permute.xlu0 %5596
  %5598 = vrot.lane.b32.xlu0 %v5532, 126
  %v5599 = vpop.permute.xlu0 %5598
  %5600 = vrot.lane.b32.xlu0 %v5533, 126
  %v5601 = vpop.permute.xlu0 %5600
  %5602 = vrot.lane.b32.xlu0 %v5534, 126
  %v5603 = vpop.permute.xlu0 %5602
  %5604 = vrot.lane.b32.xlu0 %v5535, 126
  %v5605 = vpop.permute.xlu0 %5604
  %5606 = vrot.lane.b32.xlu0 %v5536, 126
  %v5607 = vpop.permute.xlu0 %5606
  %5608 = vrot.lane.b32.xlu0 %v5537, 126
  %v5609 = vpop.permute.xlu0 %5608
  %5610 = vrot.lane.b32.xlu0 %v5538, 126
  %v5611 = vpop.permute.xlu0 %5610
  %5612 = vrot.lane.b32.xlu0 %v5539, 126
  %v5613 = vpop.permute.xlu0 %5612
  %5614 = vrot.lane.b32.xlu0 %v5540, 126
  %v5615 = vpop.permute.xlu0 %5614
  %5616 = vrot.lane.b32.xlu0 %v5541, 126
  %v5617 = vpop.permute.xlu0 %5616
  %5618 = vrot.lane.b32.xlu0 %v5542, 126
  %v5619 = vpop.permute.xlu0 %5618
  %5620 = vrot.lane.b32.xlu0 %v5543, 126
  %v5621 = vpop.permute.xlu0 %5620
  %5622 = vrot.lane.b32.xlu0 %v5544, 126
  %v5623 = vpop.permute.xlu0 %5622
  %5624 = vrot.lane.b32.xlu0 %v5545, 126
  %v5625 = vpop.permute.xlu0 %5624
  %5626 = vrot.lane.b32.xlu0 %v5546, 126
  %v5627 = vpop.permute.xlu0 %5626
  %5628 = vrot.lane.b32.xlu0 %v5547, 126
  %v5629 = vpop.permute.xlu0 %5628
  %5630 = vrot.lane.b32.xlu0 %v5548, 126
  %v5631 = vpop.permute.xlu0 %5630
  %5632 = vrot.lane.b32.xlu0 %v5549, 126
  %v5633 = vpop.permute.xlu0 %5632
  %5634 = vrot.lane.b32.xlu0 %v5550, 126
  %v5635 = vpop.permute.xlu0 %5634
  %5636 = vrot.lane.b32.xlu0 %v5551, 126
  %v5637 = vpop.permute.xlu0 %5636
  %5638 = vrot.lane.b32.xlu0 %v5552, 126
  %v5639 = vpop.permute.xlu0 %5638
  %5640 = vrot.lane.b32.xlu0 %v5553, 126
  %v5641 = vpop.permute.xlu0 %5640
  %5642 = vrot.lane.b32.xlu0 %v5554, 126
  %v5643 = vpop.permute.xlu0 %5642
  %5644 = vrot.lane.b32.xlu0 %v5555, 126
  %v5645 = vpop.permute.xlu0 %5644
  %5646 = vrot.lane.b32.xlu0 %v5556, 126
  %v5647 = vpop.permute.xlu0 %5646
  %5648 = vrot.lane.b32.xlu0 %v5557, 126
  %v5649 = vpop.permute.xlu0 %5648
  %5650 = vrot.lane.b32.xlu0 %v5558, 126
  %v5651 = vpop.permute.xlu0 %5650
  %5652 = vrot.lane.b32.xlu0 %v5559, 126
  %v5653 = vpop.permute.xlu0 %5652
  %5654 = vrot.lane.b32.xlu0 %v5560, 126
  %v5655 = vpop.permute.xlu0 %5654
  %5656 = vrot.lane.b32.xlu0 %v5561, 126
  %v5657 = vpop.permute.xlu0 %5656
  %5690 = vst.msk [vmem:[%s6] sm:$0x3] %vm3863, %v5595
  %5691 = vst.msk [vmem:[%s6 + $0x2] sm:$0x3] %vm3863, %v5597
  %5692 = vst.msk [vmem:[%s6 + $0x4] sm:$0x3] %vm3863, %v5599
  %5693 = vst.msk [vmem:[%s6 + $0x6] sm:$0x3] %vm3863, %v5601
  %5694 = vst.msk [vmem:[%s6 + $0x8] sm:$0x3] %vm3863, %v5603
  %5695 = vst.msk [vmem:[%s6 + $0xa] sm:$0x3] %vm3863, %v5605
  %5696 = vst.msk [vmem:[%s6 + $0xc] sm:$0x3] %vm3863, %v5607
  %5697 = vst.msk [vmem:[%s6 + $0xe] sm:$0x3] %vm3863, %v5609
  %5698 = vst.msk [vmem:[%s6 + $0x10] sm:$0x3] %vm3863, %v5611
  %5699 = vst.msk [vmem:[%s6 + $0x12] sm:$0x3] %vm3863, %v5613
  %5700 = vst.msk [vmem:[%s6 + $0x14] sm:$0x3] %vm3863, %v5615
  %5701 = vst.msk [vmem:[%s6 + $0x16] sm:$0x3] %vm3863, %v5617
  %5702 = vst.msk [vmem:[%s6 + $0x18] sm:$0x3] %vm3863, %v5619
  %5703 = vst.msk [vmem:[%s6 + $0x1a] sm:$0x3] %vm3863, %v5621
  %5704 = vst.msk [vmem:[%s6 + $0x1c] sm:$0x3] %vm3863, %v5623
  %5705 = vst.msk [vmem:[%s6 + $0x1e] sm:$0x3] %vm3863, %v5625
  %5706 = vst.msk [vmem:[%s6 + $0x20] sm:$0x3] %vm3863, %v5627
  %5707 = vst.msk [vmem:[%s6 + $0x22] sm:$0x3] %vm3863, %v5629
  %5708 = vst.msk [vmem:[%s6 + $0x24] sm:$0x3] %vm3863, %v5631
  %5709 = vst.msk [vmem:[%s6 + $0x26] sm:$0x3] %vm3863, %v5633
  %5710 = vst.msk [vmem:[%s6 + $0x28] sm:$0x3] %vm3863, %v5635
  %5711 = vst.msk [vmem:[%s6 + $0x2a] sm:$0x3] %vm3863, %v5637
  %5712 = vst.msk [vmem:[%s6 + $0x2c] sm:$0x3] %vm3863, %v5639
  %5713 = vst.msk [vmem:[%s6 + $0x2e] sm:$0x3] %vm3863, %v5641
  %5714 = vst.msk [vmem:[%s6 + $0x30] sm:$0x3] %vm3863, %v5643
  %5715 = vst.msk [vmem:[%s6 + $0x32] sm:$0x3] %vm3863, %v5645
  %5716 = vst.msk [vmem:[%s6 + $0x34] sm:$0x3] %vm3863, %v5647
  %5717 = vst.msk [vmem:[%s6 + $0x36] sm:$0x3] %vm3863, %v5649
  %5718 = vst.msk [vmem:[%s6 + $0x38] sm:$0x3] %vm3863, %v5651
  %5719 = vst.msk [vmem:[%s6 + $0x3a] sm:$0x3] %vm3863, %v5653
  %5720 = vst.msk [vmem:[%s6 + $0x3c] sm:$0x3] %vm3863, %v5655
  %5721 = vst.msk [vmem:[%s6 + $0x3e] sm:$0x3] %vm3863, %v5657
  // Predicated region
  $region26: #{tpu_custom_call.1} parent=0 // pred_check
    _
  $region27: #{tpu_custom_call.1} parent=0 // pred_check_branch
    %5723 = sbr.rel (0) target = $region29
  $region28: #{tpu_custom_call.1} parent=0 // pred_region
    _
  $region29: #{tpu_custom_call.1} parent=0 // pred_fallthru
    _
  // Predicated region
  $region30: #{tpu_custom_call.1} parent=0 // pred_check
    _
  $region31: #{tpu_custom_call.1} parent=0 // pred_check_branch
    %5725 = sbr.rel (0) target = $region33
  $region32: #{tpu_custom_call.1} parent=0 // pred_region
    _
  $region33: #{tpu_custom_call.1} parent=0 // pred_fallthru
    _

</llo_original>
